<compile_context>
chip_gen: v5e
topology: v5e:2x2
jax: 0.10.0
libtpu: 0.0.40
codegen_flags: <defaults>
</compile_context>

<pallas_src>
import numpy as np
import jax
import jax.numpy as jnp
from jax.experimental import pallas as pl
from jax.experimental.pallas import tpu as pltpu

NCLS = 10


# ---------------------------------------------------------------------------
# The one fused kernel: conv1+pool+relu -> conv2+pool+relu -> fc1+relu ->
# fc2+log_softmax, all activations kept in VMEM / vregs.
# ---------------------------------------------------------------------------
def _net_kernel(x_ref, w1_ref, b1_ref, w2_ref, b2_ref,
                fw1_ref, fb1_ref, fw2_ref, fb2_ref, o_ref):
    tb = x_ref.shape[0]
    xv = x_ref[...]                                         # (tb, 28, 28) f32

    # ---- conv1 as ONE K=140 matmul (5 shifted bands folded into K) ----------
    x_cat = jnp.concatenate([xv[:, i:i + 24, :] for i in range(5)], axis=-1)
    lhs1 = x_cat.reshape(tb * 24, 140).astype(jnp.bfloat16)
    acc1 = jnp.dot(lhs1, w1_ref[...],
                   preferred_element_type=jnp.float32)      # (tb*24, 256)

    # fused 2x2 max-pool + bias + ReLU (bias commutes with max-pool);
    # W-parity split sits exactly on the 128-lane boundary -> whole-vreg max.
    pw = jnp.maximum(acc1[:, :128], acc1[:, 128:])          # (tb*24, 128)
    ph = pw.reshape(tb, 12, 2, 128)
    ph = jnp.maximum(ph[:, :, 0, :], ph[:, :, 1, :])        # (tb, 12, 128)
    h1 = jnp.maximum(ph + b1_ref[...], 0.0)                 # lanes 120..127 stay 0

    # ---- conv2 as ONE K=640 matmul (5 bands x 128 lanes, lane-aligned) ------
    h_cat = jnp.concatenate([h1[:, i:i + 8, :] for i in range(5)], axis=-1)
    lhs2 = h_cat.reshape(tb * 8, 640).astype(jnp.bfloat16)
    acc2 = jnp.dot(lhs2, w2_ref[...],
                   preferred_element_type=jnp.float32)      # (tb*8, 256)

    pw2 = jnp.maximum(acc2[:, :128], acc2[:, 128:])         # (tb*8, 128)
    ph2 = pw2.reshape(tb, 4, 2, 128)
    ph2 = jnp.maximum(ph2[:, :, 0, :], ph2[:, :, 1, :])     # (tb, 4, 128)
    h2 = jnp.maximum(ph2 + b2_ref[...], 0.0)                # lanes 80..127 stay 0
    # TODO(synk): Dropout2d / F.dropout are eval-mode identities here (train-mode
    # RNG via pltpu.prng_* not reproduced).

    # ---- fc1 + ReLU: 4 accumulated dots (one per pooled row), bias added once
    #      (single K=512 dot possible but needs a sublane->lane flatten of h2;
    #       keep the accumulation form per review guidance).
    z1 = jnp.dot(h2[:, 0, :].astype(jnp.bfloat16), fw1_ref[0],
                 preferred_element_type=jnp.float32)
    for h in range(1, 4):
        z1 = z1 + jnp.dot(h2[:, h, :].astype(jnp.bfloat16), fw1_ref[h],
                          preferred_element_type=jnp.float32)
    a1 = jnp.maximum(z1 + fb1_ref[...], 0.0).astype(jnp.bfloat16)   # (tb, 128)

    # ---- fc2 + masked log_softmax (output padded to 128 lanes) --------------
    z2 = jnp.dot(a1, fw2_ref[...], preferred_element_type=jnp.float32) + fb2_ref[...]
    mask = jax.lax.broadcasted_iota(jnp.int32, z2.shape, 1) < NCLS
    zm = jnp.where(mask, z2, -jnp.inf)
    m = jnp.max(zm, axis=-1, keepdims=True)
    lse = jnp.log(jnp.sum(jnp.exp(zm - m), axis=-1, keepdims=True)) + m
    o_ref[...] = z2 - lse


# ---------------------------------------------------------------------------
# One-time parameter repack (torch layout -> kernel-friendly banded layout)
# ---------------------------------------------------------------------------
def prepare_params(params):
    w1 = np.asarray(params["conv1_w"], np.float32)      # (10, 1, 5, 5)
    b1 = np.asarray(params["conv1_b"], np.float32)      # (10,)
    w2 = np.asarray(params["conv2_w"], np.float32)      # (20, 10, 5, 5)
    b2 = np.asarray(params["conv2_b"], np.float32)      # (20,)
    f1 = np.asarray(params["fc1_w"], np.float32)        # (50, 320)
    fb1 = np.asarray(params["fc1_b"], np.float32)
    f2 = np.asarray(params["fc2_w"], np.float32)        # (10, 50)
    fb2 = np.asarray(params["fc2_b"], np.float32)

    # conv1 banded weight, K folded: K index = band*28 + input column,
    # out lane = parity*128 + w2*10 + oc  (parity split on the 128-lane boundary).
    W1 = np.zeros((5, 28, 2, 128), np.float32)
    for i in range(5):
        for j in range(5):
            for ow in range(24):
                par, wq = ow % 2, ow // 2
                W1[i, ow + j, par, wq * 10:wq * 10 + 10] = w1[:, 0, i, j]
    w1band = W1.reshape(140, 256)

    B1 = np.zeros((1, 128), np.float32)
    for wq in range(12):
        B1[0, wq * 10:wq * 10 + 10] = b1

    # conv2 banded weight: K index = band*128 + (in_col*10 + in_ch),
    # out lane = parity*128 + w2*20 + oc.  K padded 120 -> 128 per band.
    W2 = np.zeros((5, 128, 2, 128), np.float32)
    for i in range(5):
        for j in range(5):
            for ow in range(8):
                par, wq = ow % 2, ow // 2
                win = ow + j
                W2[i, win * 10:win * 10 + 10, par, wq * 20:wq * 20 + 20] = \
                    w2[:, :, i, j].T
    w2band = W2.reshape(640, 256)

    B2 = np.zeros((1, 128), np.float32)
    for wq in range(4):
        B2[0, wq * 20:wq * 20 + 20] = b2

    # fc1: torch flatten index = c*16 + h*4 + w; kernel lane (per pooled row h)
    # is w*20 + c.  Output padded 50 -> 128 lanes.
    FW1 = np.zeros((4, 128, 128), np.float32)
    for h in range(4):
        for w in range(4):
            for c in range(20):
                FW1[h, w * 20 + c, :50] = f1[:, c * 16 + h * 4 + w]
    FB1 = np.zeros((1, 128), np.float32)
    FB1[0, :50] = fb1

    # fc2: pad (50, 10) -> (128, 128) for lane-dense output stores.
    FW2 = np.zeros((128, 128), np.float32)
    FW2[:50, :10] = f2.T
    FB2 = np.zeros((1, 128), np.float32)
    FB2[0, :10] = fb2

    return dict(
        w1band=jnp.asarray(w1band, jnp.bfloat16),
        b1t=jnp.asarray(B1, jnp.float32),
        w2band=jnp.asarray(w2band, jnp.bfloat16),
        b2t=jnp.asarray(B2, jnp.float32),
        fw1=jnp.asarray(FW1, jnp.bfloat16),
        fb1=jnp.asarray(FB1, jnp.float32),
        fw2=jnp.asarray(FW2, jnp.bfloat16),
        fb2=jnp.asarray(FB2, jnp.float32),
    )


# ---------------------------------------------------------------------------
# Batch-tile selection: big tiles to amortize per-step overhead, but keep the
# grid length >= 2 for large batches so v7x's two TensorCores both get work.
# ---------------------------------------------------------------------------
def _pick_tb(n):
    if n <= 128:
        return max(8, -(-n // 8) * 8)       # single tile, sublane-aligned
    if n <= 512:
        return 128                          # grid of 2..4
    return 256                              # large batches: 256-row tiles


# ---------------------------------------------------------------------------
# Forward wrapper: a single pallas_call, batch-tiled grid
# ---------------------------------------------------------------------------
@jax.jit
def net_forward(prep, x):
    # x: (N, 1, 28, 28) float32 (NCHW, like the torch module)
    if x.ndim == 4:
        x = x.reshape(x.shape[0], 28, 28)
    n = x.shape[0]
    tb = _pick_tb(n)
    npad = ((n + tb - 1) // tb) * tb
    if npad != n:
        x = jnp.pad(x, ((0, npad - n), (0, 0), (0, 0)))

    out = pl.pallas_call(
        _net_kernel,
        out_shape=jax.ShapeDtypeStruct((npad, 128), jnp.float32),
        grid=(npad // tb,),
        in_specs=[
            pl.BlockSpec((tb, 28, 28), lambda i: (i, 0, 0)),     # input batch tile
            pl.BlockSpec((140, 256), lambda i: (0, 0)),          # conv1 band (VMEM-resident)
            pl.BlockSpec((1, 128), lambda i: (0, 0)),
            pl.BlockSpec((640, 256), lambda i: (0, 0)),          # conv2 band
            pl.BlockSpec((1, 128), lambda i: (0, 0)),
            pl.BlockSpec((4, 128, 128), lambda i: (0, 0, 0)),    # fc1 (permuted, padded)
            pl.BlockSpec((1, 128), lambda i: (0, 0)),
            pl.BlockSpec((128, 128), lambda i: (0, 0)),          # fc2 (padded)
            pl.BlockSpec((1, 128), lambda i: (0, 0)),
        ],
        out_specs=pl.BlockSpec((tb, 128), lambda i: (i, 0)),     # lane-dense logits slab
        compiler_params=pltpu.CompilerParams(
            dimension_semantics=("parallel",),
            vmem_limit_bytes=48 * 1024 * 1024),
    )(x.astype(jnp.float32), prep["w1band"], prep["b1t"], prep["w2band"],
      prep["b2t"], prep["fw1"], prep["fb1"], prep["fw2"], prep["fb2"])
    return out[:n, :NCLS]


# ---------------------------------------------------------------------------
# Torch-layout parameter init + pure-JAX reference (for a numerics check)
# ---------------------------------------------------------------------------
def init_params(key):
    ks = jax.random.split(key, 8)

    def uni(k, shape, fan_in):
        bound = 1.0 / (fan_in ** 0.5)
        return jax.random.uniform(k, shape, jnp.float32, -bound, bound)

    return dict(
        conv1_w=uni(ks[0], (10, 1, 5, 5), 1 * 5 * 5),
        conv1_b=uni(ks[1], (10,), 1 * 5 * 5),
        conv2_w=uni(ks[2], (20, 10, 5, 5), 10 * 5 * 5),
        conv2_b=uni(ks[3], (20,), 10 * 5 * 5),
        fc1_w=uni(ks[4], (50, 320), 320),
        fc1_b=uni(ks[5], (50,), 320),
        fc2_w=uni(ks[6], (10, 50), 50),
        fc2_b=uni(ks[7], (10,), 50),
    )


def reference_forward(params, x):
    prec = jax.lax.Precision.HIGHEST

    def conv(v, w, b):
        y = jax.lax.conv_general_dilated(
            v, w, (1, 1), "VALID",
            dimension_numbers=("NCHW", "OIHW", "NCHW"), precision=prec)
        return y + b[None, :, None, None]

    def pool_relu(v):
        v = jax.lax.reduce_window(v, -jnp.inf, jax.lax.max,
                                  (1, 1, 2, 2), (1, 1, 2, 2), "VALID")
        return jnp.maximum(v, 0.0)

    h = pool_relu(conv(x, params["conv1_w"], params["conv1_b"]))
    h = pool_relu(conv(h, params["conv2_w"], params["conv2_b"]))
    h = h.reshape(h.shape[0], 320)
    h = jnp.maximum(jnp.dot(h, params["fc1_w"].T, precision=prec) + params["fc1_b"], 0.0)
    h = jnp.dot(h, params["fc2_w"].T, precision=prec) + params["fc2_b"]
    return jax.nn.log_softmax(h, axis=-1)


if __name__ == "__main__":
    key = jax.random.PRNGKey(0)
    pkey, xkey = jax.random.split(key)
    params = init_params(pkey)
    prep = prepare_params(params)

    # small batch (single grid step): tight check vs the f32 reference
    x = jax.random.normal(xkey, (2, 1, 28, 28), dtype=jnp.float32)
    out = jax.block_until_ready(net_forward(prep, x))
    assert out.shape == (2, NCLS)
    assert jnp.allclose(jnp.sum(jnp.exp(out), axis=-1), 1.0, atol=1e-4)
    ref = reference_forward(params, x)
    assert jnp.allclose(out, ref, atol=5e-2), float(jnp.max(jnp.abs(out - ref)))

    # larger batch exercises the big-tile, multi-step grid path (tb=128, grid=3)
    xb = jax.random.normal(jax.random.PRNGKey(1), (300, 1, 28, 28), dtype=jnp.float32)
    outb = jax.block_until_ready(net_forward(prep, xb))
    assert outb.shape == (300, NCLS)
    assert jnp.allclose(jnp.sum(jnp.exp(outb), axis=-1), 1.0, atol=1e-4)
    refb = reference_forward(params, xb)
    # looser tolerance: bf16-MXU error over many more samples
    assert jnp.allclose(outb, refb, atol=1.5e-1), float(jnp.max(jnp.abs(outb - refb)))

    print("KERNEL_OK")
</pallas_src>

<mosaic_0001>
module attributes {stable_mosaic.version = 11 : i64} {
  func.func @_net_kernel(%arg0: i32, %arg1: memref<8x28x28xf32, #tpu.memory_space<vmem>>, %arg2: memref<140x256xbf16, #tpu.memory_space<vmem>>, %arg3: memref<1x128xf32, #tpu.memory_space<vmem>>, %arg4: memref<640x256xbf16, #tpu.memory_space<vmem>>, %arg5: memref<1x128xf32, #tpu.memory_space<vmem>>, %arg6: memref<4x128x128xbf16, #tpu.memory_space<vmem>>, %arg7: memref<1x128xf32, #tpu.memory_space<vmem>>, %arg8: memref<128x128xbf16, #tpu.memory_space<vmem>>, %arg9: memref<1x128xf32, #tpu.memory_space<vmem>>, %arg10: memref<8x128xf32, #tpu.memory_space<vmem>>) attributes {dimension_semantics = [#tpu.dimension_semantics<parallel>], iteration_bounds = array<i64: 1>, scalar_prefetch = 0 : i64, scratch_operands = 0 : i64, tpu.core_type = #tpu.core_type<tc>, window_params = [{transform_indices = @transform_0, window_bounds = array<i64: 8, 28, 28>}, {pipeline_mode = #tpu.pipeline_mode<synchronous>, transform_indices = @transform_1, window_bounds = array<i64: 140, 256>}, {pipeline_mode = #tpu.pipeline_mode<synchronous>, transform_indices = @transform_2, window_bounds = array<i64: 1, 128>}, {pipeline_mode = #tpu.pipeline_mode<synchronous>, transform_indices = @transform_3, window_bounds = array<i64: 640, 256>}, {pipeline_mode = #tpu.pipeline_mode<synchronous>, transform_indices = @transform_4, window_bounds = array<i64: 1, 128>}, {pipeline_mode = #tpu.pipeline_mode<synchronous>, transform_indices = @transform_5, window_bounds = array<i64: 4, 128, 128>}, {pipeline_mode = #tpu.pipeline_mode<synchronous>, transform_indices = @transform_6, window_bounds = array<i64: 1, 128>}, {pipeline_mode = #tpu.pipeline_mode<synchronous>, transform_indices = @transform_7, window_bounds = array<i64: 128, 128>}, {pipeline_mode = #tpu.pipeline_mode<synchronous>, transform_indices = @transform_8, window_bounds = array<i64: 1, 128>}, {transform_indices = @transform_9, window_bounds = array<i64: 8, 128>}]} {
    %c0 = arith.constant 0 : index
    %c0_0 = arith.constant 0 : index
    %c0_1 = arith.constant 0 : index
    %0 = vector.load %arg1[%c0, %c0_0, %c0_1] : memref<8x28x28xf32, #tpu.memory_space<vmem>>, vector<8x28x28xf32>
    %1 = vector.extract_strided_slice %0 {offsets = [0, 0, 0], sizes = [8, 24, 28], strides = [1, 1, 1]} : vector<8x28x28xf32> to vector<8x24x28xf32>
    %2 = vector.extract_strided_slice %0 {offsets = [0, 1, 0], sizes = [8, 24, 28], strides = [1, 1, 1]} : vector<8x28x28xf32> to vector<8x24x28xf32>
    %3 = vector.extract_strided_slice %0 {offsets = [0, 2, 0], sizes = [8, 24, 28], strides = [1, 1, 1]} : vector<8x28x28xf32> to vector<8x24x28xf32>
    %4 = vector.extract_strided_slice %0 {offsets = [0, 3, 0], sizes = [8, 24, 28], strides = [1, 1, 1]} : vector<8x28x28xf32> to vector<8x24x28xf32>
    %5 = vector.extract_strided_slice %0 {offsets = [0, 4, 0], sizes = [8, 24, 28], strides = [1, 1, 1]} : vector<8x28x28xf32> to vector<8x24x28xf32>
    %6 = tpu.concatenate %1, %2, %3, %4, %5 in 2 : vector<8x24x28xf32>, vector<8x24x28xf32>, vector<8x24x28xf32>, vector<8x24x28xf32>, vector<8x24x28xf32> -> vector<8x24x140xf32>
    %7 = vector.shape_cast %6 : vector<8x24x140xf32> to vector<192x140xf32>
    %8 = arith.truncf %7 : vector<192x140xf32> to vector<192x140xbf16>
    %c0_2 = arith.constant 0 : index
    %c0_3 = arith.constant 0 : index
    %9 = vector.load %arg2[%c0_2, %c0_3] : memref<140x256xbf16, #tpu.memory_space<vmem>>, vector<140x256xbf16>
    %cst = arith.constant dense<0.000000e+00> : vector<192x256xf32>
    %10 = tpu.matmul %8, %9, %cst {dimension_numbers = #tpu.dot_dimension_numbers<[1], [0], [0], [1], [0, 0, 1, 1], [], []>} : vector<192x140xbf16>, vector<140x256xbf16>, vector<192x256xf32> -> vector<192x256xf32>
    %11 = vector.extract_strided_slice %10 {offsets = [0, 0], sizes = [192, 128], strides = [1, 1]} : vector<192x256xf32> to vector<192x128xf32>
    %12 = vector.extract_strided_slice %10 {offsets = [0, 128], sizes = [192, 128], strides = [1, 1]} : vector<192x256xf32> to vector<192x128xf32>
    %13 = arith.maximumf %11, %12 : vector<192x128xf32>
    %14 = vector.shape_cast %13 : vector<192x128xf32> to vector<8x12x2x128xf32>
    %15 = vector.extract_strided_slice %14 {offsets = [0, 0, 0, 0], sizes = [8, 12, 1, 128], strides = [1, 1, 1, 1]} : vector<8x12x2x128xf32> to vector<8x12x1x128xf32>
    %16 = vector.shape_cast %15 : vector<8x12x1x128xf32> to vector<8x12x128xf32>
    %17 = vector.extract_strided_slice %14 {offsets = [0, 0, 1, 0], sizes = [8, 12, 1, 128], strides = [1, 1, 1, 1]} : vector<8x12x2x128xf32> to vector<8x12x1x128xf32>
    %18 = vector.shape_cast %17 : vector<8x12x1x128xf32> to vector<8x12x128xf32>
    %19 = arith.maximumf %16, %18 : vector<8x12x128xf32>
    %c0_4 = arith.constant 0 : index
    %c0_5 = arith.constant 0 : index
    %20 = vector.load %arg3[%c0_4, %c0_5] : memref<1x128xf32, #tpu.memory_space<vmem>>, vector<1x128xf32>
    %21 = vector.shape_cast %20 : vector<1x128xf32> to vector<1x1x128xf32>
    %22 = vector.broadcast %21 : vector<1x1x128xf32> to vector<8x12x128xf32>
    %23 = arith.addf %19, %22 : vector<8x12x128xf32>
    %cst_6 = arith.constant 0.000000e+00 : f32
    %24 = vector.broadcast %cst_6 : f32 to vector<8x12x128xf32>
    %25 = arith.maximumf %23, %24 : vector<8x12x128xf32>
    %26 = vector.extract_strided_slice %25 {offsets = [0, 0, 0], sizes = [8, 8, 128], strides = [1, 1, 1]} : vector<8x12x128xf32> to vector<8x8x128xf32>
    %27 = vector.extract_strided_slice %25 {offsets = [0, 1, 0], sizes = [8, 8, 128], strides = [1, 1, 1]} : vector<8x12x128xf32> to vector<8x8x128xf32>
    %28 = vector.extract_strided_slice %25 {offsets = [0, 2, 0], sizes = [8, 8, 128], strides = [1, 1, 1]} : vector<8x12x128xf32> to vector<8x8x128xf32>
    %29 = vector.extract_strided_slice %25 {offsets = [0, 3, 0], sizes = [8, 8, 128], strides = [1, 1, 1]} : vector<8x12x128xf32> to vector<8x8x128xf32>
    %30 = vector.extract_strided_slice %25 {offsets = [0, 4, 0], sizes = [8, 8, 128], strides = [1, 1, 1]} : vector<8x12x128xf32> to vector<8x8x128xf32>
    %31 = tpu.concatenate %26, %27, %28, %29, %30 in 2 : vector<8x8x128xf32>, vector<8x8x128xf32>, vector<8x8x128xf32>, vector<8x8x128xf32>, vector<8x8x128xf32> -> vector<8x8x640xf32>
    %32 = vector.shape_cast %31 : vector<8x8x640xf32> to vector<64x640xf32>
    %33 = arith.truncf %32 : vector<64x640xf32> to vector<64x640xbf16>
    %c0_7 = arith.constant 0 : index
    %c0_8 = arith.constant 0 : index
    %34 = vector.load %arg4[%c0_7, %c0_8] : memref<640x256xbf16, #tpu.memory_space<vmem>>, vector<640x256xbf16>
    %cst_9 = arith.constant dense<0.000000e+00> : vector<64x256xf32>
    %35 = tpu.matmul %33, %34, %cst_9 {dimension_numbers = #tpu.dot_dimension_numbers<[1], [0], [0], [1], [0, 0, 1, 1], [], []>} : vector<64x640xbf16>, vector<640x256xbf16>, vector<64x256xf32> -> vector<64x256xf32>
    %36 = vector.extract_strided_slice %35 {offsets = [0, 0], sizes = [64, 128], strides = [1, 1]} : vector<64x256xf32> to vector<64x128xf32>
    %37 = vector.extract_strided_slice %35 {offsets = [0, 128], sizes = [64, 128], strides = [1, 1]} : vector<64x256xf32> to vector<64x128xf32>
    %38 = arith.maximumf %36, %37 : vector<64x128xf32>
    %39 = vector.shape_cast %38 : vector<64x128xf32> to vector<8x4x2x128xf32>
    %40 = vector.extract_strided_slice %39 {offsets = [0, 0, 0, 0], sizes = [8, 4, 1, 128], strides = [1, 1, 1, 1]} : vector<8x4x2x128xf32> to vector<8x4x1x128xf32>
    %41 = vector.shape_cast %40 : vector<8x4x1x128xf32> to vector<8x4x128xf32>
    %42 = vector.extract_strided_slice %39 {offsets = [0, 0, 1, 0], sizes = [8, 4, 1, 128], strides = [1, 1, 1, 1]} : vector<8x4x2x128xf32> to vector<8x4x1x128xf32>
    %43 = vector.shape_cast %42 : vector<8x4x1x128xf32> to vector<8x4x128xf32>
    %44 = arith.maximumf %41, %43 : vector<8x4x128xf32>
    %c0_10 = arith.constant 0 : index
    %c0_11 = arith.constant 0 : index
    %45 = vector.load %arg5[%c0_10, %c0_11] : memref<1x128xf32, #tpu.memory_space<vmem>>, vector<1x128xf32>
    %46 = vector.shape_cast %45 : vector<1x128xf32> to vector<1x1x128xf32>
    %47 = vector.broadcast %46 : vector<1x1x128xf32> to vector<8x4x128xf32>
    %48 = arith.addf %44, %47 : vector<8x4x128xf32>
    %cst_12 = arith.constant 0.000000e+00 : f32
    %49 = vector.broadcast %cst_12 : f32 to vector<8x4x128xf32>
    %50 = arith.maximumf %48, %49 : vector<8x4x128xf32>
    %51 = vector.extract_strided_slice %50 {offsets = [0, 0, 0], sizes = [8, 1, 128], strides = [1, 1, 1]} : vector<8x4x128xf32> to vector<8x1x128xf32>
    %52 = vector.shape_cast %51 : vector<8x1x128xf32> to vector<8x128xf32>
    %53 = arith.truncf %52 : vector<8x128xf32> to vector<8x128xbf16>
    %c0_13 = arith.constant 0 : index
    %c0_14 = arith.constant 0 : index
    %c0_15 = arith.constant 0 : index
    %54 = vector.load %arg6[%c0_13, %c0_14, %c0_15] : memref<4x128x128xbf16, #tpu.memory_space<vmem>>, vector<1x128x128xbf16>
    %55 = vector.shape_cast %54 : vector<1x128x128xbf16> to vector<128x128xbf16>
    %cst_16 = arith.constant dense<0.000000e+00> : vector<8x128xf32>
    %56 = tpu.matmul %53, %55, %cst_16 {dimension_numbers = #tpu.dot_dimension_numbers<[1], [0], [0], [1], [0, 0, 1, 1], [], []>} : vector<8x128xbf16>, vector<128x128xbf16>, vector<8x128xf32> -> vector<8x128xf32>
    %57 = vector.extract_strided_slice %50 {offsets = [0, 1, 0], sizes = [8, 1, 128], strides = [1, 1, 1]} : vector<8x4x128xf32> to vector<8x1x128xf32>
    %58 = vector.shape_cast %57 : vector<8x1x128xf32> to vector<8x128xf32>
    %59 = arith.truncf %58 : vector<8x128xf32> to vector<8x128xbf16>
    %c1 = arith.constant 1 : index
    %c0_17 = arith.constant 0 : index
    %c0_18 = arith.constant 0 : index
    %60 = vector.load %arg6[%c1, %c0_17, %c0_18] : memref<4x128x128xbf16, #tpu.memory_space<vmem>>, vector<1x128x128xbf16>
    %61 = vector.shape_cast %60 : vector<1x128x128xbf16> to vector<128x128xbf16>
    %cst_19 = arith.constant dense<0.000000e+00> : vector<8x128xf32>
    %62 = tpu.matmul %59, %61, %cst_19 {dimension_numbers = #tpu.dot_dimension_numbers<[1], [0], [0], [1], [0, 0, 1, 1], [], []>} : vector<8x128xbf16>, vector<128x128xbf16>, vector<8x128xf32> -> vector<8x128xf32>
    %63 = arith.addf %56, %62 : vector<8x128xf32>
    %64 = vector.extract_strided_slice %50 {offsets = [0, 2, 0], sizes = [8, 1, 128], strides = [1, 1, 1]} : vector<8x4x128xf32> to vector<8x1x128xf32>
    %65 = vector.shape_cast %64 : vector<8x1x128xf32> to vector<8x128xf32>
    %66 = arith.truncf %65 : vector<8x128xf32> to vector<8x128xbf16>
    %c2 = arith.constant 2 : index
    %c0_20 = arith.constant 0 : index
    %c0_21 = arith.constant 0 : index
    %67 = vector.load %arg6[%c2, %c0_20, %c0_21] : memref<4x128x128xbf16, #tpu.memory_space<vmem>>, vector<1x128x128xbf16>
    %68 = vector.shape_cast %67 : vector<1x128x128xbf16> to vector<128x128xbf16>
    %cst_22 = arith.constant dense<0.000000e+00> : vector<8x128xf32>
    %69 = tpu.matmul %66, %68, %cst_22 {dimension_numbers = #tpu.dot_dimension_numbers<[1], [0], [0], [1], [0, 0, 1, 1], [], []>} : vector<8x128xbf16>, vector<128x128xbf16>, vector<8x128xf32> -> vector<8x128xf32>
    %70 = arith.addf %63, %69 : vector<8x128xf32>
    %71 = vector.extract_strided_slice %50 {offsets = [0, 3, 0], sizes = [8, 1, 128], strides = [1, 1, 1]} : vector<8x4x128xf32> to vector<8x1x128xf32>
    %72 = vector.shape_cast %71 : vector<8x1x128xf32> to vector<8x128xf32>
    %73 = arith.truncf %72 : vector<8x128xf32> to vector<8x128xbf16>
    %c3 = arith.constant 3 : index
    %c0_23 = arith.constant 0 : index
    %c0_24 = arith.constant 0 : index
    %74 = vector.load %arg6[%c3, %c0_23, %c0_24] : memref<4x128x128xbf16, #tpu.memory_space<vmem>>, vector<1x128x128xbf16>
    %75 = vector.shape_cast %74 : vector<1x128x128xbf16> to vector<128x128xbf16>
    %cst_25 = arith.constant dense<0.000000e+00> : vector<8x128xf32>
    %76 = tpu.matmul %73, %75, %cst_25 {dimension_numbers = #tpu.dot_dimension_numbers<[1], [0], [0], [1], [0, 0, 1, 1], [], []>} : vector<8x128xbf16>, vector<128x128xbf16>, vector<8x128xf32> -> vector<8x128xf32>
    %77 = arith.addf %70, %76 : vector<8x128xf32>
    %c0_26 = arith.constant 0 : index
    %c0_27 = arith.constant 0 : index
    %78 = vector.load %arg7[%c0_26, %c0_27] : memref<1x128xf32, #tpu.memory_space<vmem>>, vector<1x128xf32>
    %79 = vector.broadcast %78 : vector<1x128xf32> to vector<8x128xf32>
    %80 = arith.addf %77, %79 : vector<8x128xf32>
    %cst_28 = arith.constant 0.000000e+00 : f32
    %81 = vector.broadcast %cst_28 : f32 to vector<8x128xf32>
    %82 = arith.maximumf %80, %81 : vector<8x128xf32>
    %83 = arith.truncf %82 : vector<8x128xf32> to vector<8x128xbf16>
    %c0_29 = arith.constant 0 : index
    %c0_30 = arith.constant 0 : index
    %84 = vector.load %arg8[%c0_29, %c0_30] : memref<128x128xbf16, #tpu.memory_space<vmem>>, vector<128x128xbf16>
    %cst_31 = arith.constant dense<0.000000e+00> : vector<8x128xf32>
    %85 = tpu.matmul %83, %84, %cst_31 {dimension_numbers = #tpu.dot_dimension_numbers<[1], [0], [0], [1], [0, 0, 1, 1], [], []>} : vector<8x128xbf16>, vector<128x128xbf16>, vector<8x128xf32> -> vector<8x128xf32>
    %c0_32 = arith.constant 0 : index
    %c0_33 = arith.constant 0 : index
    %86 = vector.load %arg9[%c0_32, %c0_33] : memref<1x128xf32, #tpu.memory_space<vmem>>, vector<1x128xf32>
    %87 = vector.broadcast %86 : vector<1x128xf32> to vector<8x128xf32>
    %88 = arith.addf %85, %87 : vector<8x128xf32>
    %89 = tpu.iota {dimensions = array<i32: 1>} : vector<8x128xi32>
    %c10_i32 = arith.constant 10 : i32
    %90 = vector.broadcast %c10_i32 : i32 to vector<8x128xi32>
    %91 = arith.cmpi slt, %89, %90 : vector<8x128xi32>
    %cst_34 = arith.constant 0xFF800000 : f32
    %92 = vector.broadcast %cst_34 : f32 to vector<8x128xf32>
    %93 = arith.select %91, %88, %92 : vector<8x128xi1>, vector<8x128xf32>
    %cst_35 = arith.constant dense<0xFF800000> : vector<8xf32>
    %94 = vector.multi_reduction <maximumf>, %93, %cst_35 [1] : vector<8x128xf32> to vector<8xf32>
    %95 = vector.shape_cast %94 : vector<8xf32> to vector<8x1xf32>
    %96 = vector.broadcast %95 : vector<8x1xf32> to vector<8x128xf32>
    %97 = arith.subf %93, %96 : vector<8x128xf32>
    %98 = math.exp %97 : vector<8x128xf32>
    %cst_36 = arith.constant dense<0.000000e+00> : vector<8xf32>
    %99 = vector.multi_reduction <add>, %98, %cst_36 [1] : vector<8x128xf32> to vector<8xf32>
    %100 = vector.shape_cast %99 : vector<8xf32> to vector<8x1xf32>
    %101 = math.log %100 : vector<8x1xf32>
    %102 = arith.addf %101, %95 : vector<8x1xf32>
    %103 = vector.broadcast %102 : vector<8x1xf32> to vector<8x128xf32>
    %104 = arith.subf %88, %103 : vector<8x128xf32>
    %c0_37 = arith.constant 0 : index
    %c0_38 = arith.constant 0 : index
    %105 = vector.load %arg10[%c0_37, %c0_38] : memref<8x128xf32, #tpu.memory_space<vmem>>, vector<8x128xf32>
    tpu.vector_store %arg10[%c0_37, %c0_38], %104 {strides = array<i32>} : memref<8x128xf32, #tpu.memory_space<vmem>>, vector<8x128xf32>,
    return
  }
  func.func @transform_0(%arg0: i32) -> (i32, i32, i32) {
    %c0_i32 = arith.constant 0 : i32
    %c0_i32_0 = arith.constant 0 : i32
    %c0_i32_1 = arith.constant 0 : i32
    return %arg0, %c0_i32, %c0_i32_0 : i32, i32, i32
  }
  func.func @transform_1(%arg0: i32) -> (i32, i32) {
    %c0_i32 = arith.constant 0 : i32
    %c0_i32_0 = arith.constant 0 : i32
    %c0_i32_1 = arith.constant 0 : i32
    return %c0_i32, %c0_i32_0 : i32, i32
  }
  func.func @transform_2(%arg0: i32) -> (i32, i32) {
    %c0_i32 = arith.constant 0 : i32
    %c0_i32_0 = arith.constant 0 : i32
    %c0_i32_1 = arith.constant 0 : i32
    return %c0_i32, %c0_i32_0 : i32, i32
  }
  func.func @transform_3(%arg0: i32) -> (i32, i32) {
    %c0_i32 = arith.constant 0 : i32
    %c0_i32_0 = arith.constant 0 : i32
    %c0_i32_1 = arith.constant 0 : i32
    return %c0_i32, %c0_i32_0 : i32, i32
  }
  func.func @transform_4(%arg0: i32) -> (i32, i32) {
    %c0_i32 = arith.constant 0 : i32
    %c0_i32_0 = arith.constant 0 : i32
    %c0_i32_1 = arith.constant 0 : i32
    return %c0_i32, %c0_i32_0 : i32, i32
  }
  func.func @transform_5(%arg0: i32) -> (i32, i32, i32) {
    %c0_i32 = arith.constant 0 : i32
    %c0_i32_0 = arith.constant 0 : i32
    %c0_i32_1 = arith.constant 0 : i32
    %c0_i32_2 = arith.constant 0 : i32
    return %c0_i32, %c0_i32_0, %c0_i32_1 : i32, i32, i32
  }
  func.func @transform_6(%arg0: i32) -> (i32, i32) {
    %c0_i32 = arith.constant 0 : i32
    %c0_i32_0 = arith.constant 0 : i32
    %c0_i32_1 = arith.constant 0 : i32
    return %c0_i32, %c0_i32_0 : i32, i32
  }
  func.func @transform_7(%arg0: i32) -> (i32, i32) {
    %c0_i32 = arith.constant 0 : i32
    %c0_i32_0 = arith.constant 0 : i32
    %c0_i32_1 = arith.constant 0 : i32
    return %c0_i32, %c0_i32_0 : i32, i32
  }
  func.func @transform_8(%arg0: i32) -> (i32, i32) {
    %c0_i32 = arith.constant 0 : i32
    %c0_i32_0 = arith.constant 0 : i32
    %c0_i32_1 = arith.constant 0 : i32
    return %c0_i32, %c0_i32_0 : i32, i32
  }
  func.func @transform_9(%arg0: i32) -> (i32, i32) {
    %c0_i32 = arith.constant 0 : i32
    %c0_i32_0 = arith.constant 0 : i32
    return %arg0, %c0_i32 : i32, i32
  }
}

</mosaic_0001>

<llo_original>
// kernel: net_forward.1
$region0: #{net_forward.1}
  #allocation0 [shape = 'u32[]', space=smem, size = 0x4, offset = 0x4, fixed_abs, tag = 'smem constant byte address 0x4 - core index']
  #allocation1 [shape = 'u32[72,128]{1,0:T(1,128)}', space=vmem, size = 0x9000, scoped, tag = 'internal scratch']
  %s0 = inlined_call_operand.vmem [shape: f32[8,28,28], index: 0, kind: input, shape index: {}]
  %s1 = inlined_call_operand.vmem [shape: bf16[140,256], index: 1, kind: input, shape index: {}]
  %s2 = inlined_call_operand.vmem [shape: f32[1,128], index: 2, kind: input, shape index: {}]
  %s3 = inlined_call_operand.hbm [shape: bf16[640,256], index: 3, kind: input, shape index: {}]
  %s4 = inlined_call_operand.vmem [shape: f32[1,128], index: 4, kind: input, shape index: {}]
  %s5 = inlined_call_operand.vmem [shape: bf16[4,128,128], index: 5, kind: input, shape index: {}]
  %s6 = inlined_call_operand.vmem [shape: f32[1,128], index: 6, kind: input, shape index: {}]
  %s7 = inlined_call_operand.vmem [shape: bf16[128,128], index: 7, kind: input, shape index: {}]
  %s8 = inlined_call_operand.vmem [shape: f32[1,128], index: 8, kind: input, shape index: {}]
  %s9 = inlined_call_operand.vmem [shape: f32[8,128], index: 9, kind: output, shape index: {}]
  %s10 = sld [smem:[#allocation0]]
  $region50: #{net_forward.1} parent=0
    _
  %s12 = ssub.s32 1, %s10
  %s13 = scalar_select 0, %s12, %s10
  $region1: #{net_forward.1} parent=0
    #allocation2 [shape = 'u8[327680]{0}', space=vmem, size = 0x50000, scoped, tag = 'input window, operand 3, single buffered']
    #allocation3 [shape = 's32[1]{0}', space=sflag, size = 0x4, scoped, tag = 'scoped memory for net_forward.1']
    %14 = vsyncpa [#allocation3], 0
    // Predicated region
    $region2: #{net_forward.1} parent=1 // pred_check
      _
    $region3: #{net_forward.1} parent=1 // pred_check_branch
      %16 = sbr.rel (0) target = $region5
    $region4: #{net_forward.1} parent=1 // pred_region
      _
    $region5: #{net_forward.1} parent=1 // pred_fallthru
      _
    // Predicated region
    $region6: #{net_forward.1} parent=1 // pred_check
      _
    $region7: #{net_forward.1} parent=1 // pred_check_branch
      %18 = sbr.rel (0) target = $region9
    $region8: #{net_forward.1} parent=1 // pred_region
      _
    $region9: #{net_forward.1} parent=1 // pred_fallthru
      _
    // Predicated region
    $region10: #{net_forward.1} parent=1 // pred_check
      _
    $region11: #{net_forward.1} parent=1 // pred_check_branch
      %20 = sbr.rel (0) target = $region13
    $region12: #{net_forward.1} parent=1 // pred_region
      _
    $region13: #{net_forward.1} parent=1 // pred_fallthru
      _
    // Predicated region
    $region14: #{net_forward.1} parent=1 // pred_check
      _
    $region15: #{net_forward.1} parent=1 // pred_check_branch
      %22 = sbr.rel (0) target = $region17
    $region16: #{net_forward.1} parent=1 // pred_region
      %24 = vsyncadd [#allocation3], 0
      %s25 = sshll.u32 %s3, 4
      %s26 = int_to_ptr.hbm [resolvable:$true] %s25
      %s27 = sshll.u32 [#allocation2], 4
      %s28 = int_to_ptr.vmem [resolvable:$true] %s27
      %33 = dma.hbm_to_vmem [thread:$0]  %s26, 10240, %s28, [#allocation3], 128, 128, 8
    $region17: #{net_forward.1} parent=1 // pred_fallthru
      _
    // Predicated region
    $region18: #{net_forward.1} parent=1 // pred_check
      _
    $region19: #{net_forward.1} parent=1 // pred_check_branch
      %35 = sbr.rel (0) target = $region21
    $region20: #{net_forward.1} parent=1 // pred_region
      _
    $region21: #{net_forward.1} parent=1 // pred_fallthru
      _
    // Predicated region
    $region22: #{net_forward.1} parent=1 // pred_check
      _
    $region23: #{net_forward.1} parent=1 // pred_check_branch
      %37 = sbr.rel (0) target = $region25
    $region24: #{net_forward.1} parent=1 // pred_region
      _
    $region25: #{net_forward.1} parent=1 // pred_fallthru
      _
    // Predicated region
    $region26: #{net_forward.1} parent=1 // pred_check
      _
    $region27: #{net_forward.1} parent=1 // pred_check_branch
      %39 = sbr.rel (0) target = $region29
    $region28: #{net_forward.1} parent=1 // pred_region
      _
    $region29: #{net_forward.1} parent=1 // pred_fallthru
      _
    // Predicated region
    $region30: #{net_forward.1} parent=1 // pred_check
      _
    $region31: #{net_forward.1} parent=1 // pred_check_branch
      %41 = sbr.rel (0) target = $region33
    $region32: #{net_forward.1} parent=1 // pred_region
      _
    $region33: #{net_forward.1} parent=1 // pred_fallthru
      _
    // Predicated region
    $region34: #{net_forward.1} parent=1 // pred_check
      _
    $region35: #{net_forward.1} parent=1 // pred_check_branch
      %43 = sbr.rel (0) target = $region37
    $region36: #{net_forward.1} parent=1 // pred_region
      _
    $region37: #{net_forward.1} parent=1 // pred_fallthru
      _
    // Predicated region
    $region38: #{net_forward.1} parent=1 // pred_check
      _
    $region39: #{net_forward.1} parent=1 // pred_check_branch
      %45 = sbr.rel (0) target = $region41
    $region40: #{net_forward.1} parent=1 // pred_region
      %47 = dma.done [#allocation3], 10240
    $region41: #{net_forward.1} parent=1 // pred_fallthru
      _
    %v49 = vld [vmem:[%s0] sm:$0xff]
    %v50 = vld [vmem:[%s0 + $0x8] sm:$0xff]
    %v51 = vld [vmem:[%s0 + $0x10] sm:$0xff]
    %v52 = vld [vmem:[%s0 + $0x18] sm:$0xf]
    %v53 = vld [vmem:[%s0 + $0x20] sm:$0xff]
    %v54 = vld [vmem:[%s0 + $0x28] sm:$0xff]
    %v55 = vld [vmem:[%s0 + $0x30] sm:$0xff]
    %v56 = vld [vmem:[%s0 + $0x38] sm:$0xf]
    %v57 = vld [vmem:[%s0 + $0x40] sm:$0xff]
    %v58 = vld [vmem:[%s0 + $0x48] sm:$0xff]
    %v59 = vld [vmem:[%s0 + $0x50] sm:$0xff]
    %v60 = vld [vmem:[%s0 + $0x58] sm:$0xf]
    %v61 = vld [vmem:[%s0 + $0x60] sm:$0xff]
    %v62 = vld [vmem:[%s0 + $0x68] sm:$0xff]
    %v63 = vld [vmem:[%s0 + $0x70] sm:$0xff]
    %v64 = vld [vmem:[%s0 + $0x78] sm:$0xf]
    %v65 = vld [vmem:[%s0 + $0x80] sm:$0xff]
    %v66 = vld [vmem:[%s0 + $0x88] sm:$0xff]
    %v67 = vld [vmem:[%s0 + $0x90] sm:$0xff]
    %v68 = vld [vmem:[%s0 + $0x98] sm:$0xf]
    %v69 = vld [vmem:[%s0 + $0xa0] sm:$0xff]
    %v70 = vld [vmem:[%s0 + $0xa8] sm:$0xff]
    %v71 = vld [vmem:[%s0 + $0xb0] sm:$0xff]
    %v72 = vld [vmem:[%s0 + $0xb8] sm:$0xf]
    %v73 = vld [vmem:[%s0 + $0xc0] sm:$0xff]
    %v74 = vld [vmem:[%s0 + $0xc8] sm:$0xff]
    %v75 = vld [vmem:[%s0 + $0xd0] sm:$0xff]
    %v76 = vld [vmem:[%s0 + $0xd8] sm:$0xf]
    %v77 = vld [vmem:[%s0 + $0xe0] sm:$0xff]
    %v78 = vld [vmem:[%s0 + $0xe8] sm:$0xff]
    %v79 = vld [vmem:[%s0 + $0xf0] sm:$0xff]
    %v80 = vld [vmem:[%s0 + $0xf8] sm:$0xf]
    %vm113 = vcmask 1046528
    %v114 = vrot.slane %v49, 1
    %v115 = vrot.slane %v50, 1
    %v116 = vsel %vm113, %v114, %v115
    %v117 = vrot.slane %v51, 1
    %v118 = vsel %vm113, %v115, %v117
    %v119 = vrot.slane %v52, 1
    %v120 = vsel %vm113, %v117, %v119
    %v121 = vrot.slane %v53, 1
    %v122 = vrot.slane %v54, 1
    %v123 = vsel %vm113, %v121, %v122
    %v124 = vrot.slane %v55, 1
    %v125 = vsel %vm113, %v122, %v124
    %v126 = vrot.slane %v56, 1
    %v127 = vsel %vm113, %v124, %v126
    %v128 = vrot.slane %v57, 1
    %v129 = vrot.slane %v58, 1
    %v130 = vsel %vm113, %v128, %v129
    %v131 = vrot.slane %v59, 1
    %v132 = vsel %vm113, %v129, %v131
    %v133 = vrot.slane %v60, 1
    %v134 = vsel %vm113, %v131, %v133
    %v135 = vrot.slane %v61, 1
    %v136 = vrot.slane %v62, 1
    %v137 = vsel %vm113, %v135, %v136
    %v138 = vrot.slane %v63, 1
    %v139 = vsel %vm113, %v136, %v138
    %v140 = vrot.slane %v64, 1
    %v141 = vsel %vm113, %v138, %v140
    %v142 = vrot.slane %v65, 1
    %v143 = vrot.slane %v66, 1
    %v144 = vsel %vm113, %v142, %v143
    %v145 = vrot.slane %v67, 1
    %v146 = vsel %vm113, %v143, %v145
    %v147 = vrot.slane %v68, 1
    %v148 = vsel %vm113, %v145, %v147
    %v149 = vrot.slane %v69, 1
    %v150 = vrot.slane %v70, 1
    %v151 = vsel %vm113, %v149, %v150
    %v152 = vrot.slane %v71, 1
    %v153 = vsel %vm113, %v150, %v152
    %v154 = vrot.slane %v72, 1
    %v155 = vsel %vm113, %v152, %v154
    %v156 = vrot.slane %v73, 1
    %v157 = vrot.slane %v74, 1
    %v158 = vsel %vm113, %v156, %v157
    %v159 = vrot.slane %v75, 1
    %v160 = vsel %vm113, %v157, %v159
    %v161 = vrot.slane %v76, 1
    %v162 = vsel %vm113, %v159, %v161
    %v163 = vrot.slane %v77, 1
    %v164 = vrot.slane %v78, 1
    %v165 = vsel %vm113, %v163, %v164
    %v166 = vrot.slane %v79, 1
    %v167 = vsel %vm113, %v164, %v166
    %v168 = vrot.slane %v80, 1
    %v169 = vsel %vm113, %v166, %v168
    %170 = vrot.lane.b32.xlu0 %v116, 28
    %v171 = vpop.permute.xlu0 %170
    %172 = vrot.lane.b32.xlu0 %v118, 28
    %v173 = vpop.permute.xlu0 %172
    %174 = vrot.lane.b32.xlu0 %v120, 28
    %v175 = vpop.permute.xlu0 %174
    %176 = vrot.lane.b32.xlu0 %v123, 28
    %v177 = vpop.permute.xlu0 %176
    %178 = vrot.lane.b32.xlu0 %v125, 28
    %v179 = vpop.permute.xlu0 %178
    %180 = vrot.lane.b32.xlu0 %v127, 28
    %v181 = vpop.permute.xlu0 %180
    %182 = vrot.lane.b32.xlu0 %v130, 28
    %v183 = vpop.permute.xlu0 %182
    %184 = vrot.lane.b32.xlu0 %v132, 28
    %v185 = vpop.permute.xlu0 %184
    %186 = vrot.lane.b32.xlu0 %v134, 28
    %v187 = vpop.permute.xlu0 %186
    %188 = vrot.lane.b32.xlu0 %v137, 28
    %v189 = vpop.permute.xlu0 %188
    %190 = vrot.lane.b32.xlu0 %v139, 28
    %v191 = vpop.permute.xlu0 %190
    %192 = vrot.lane.b32.xlu0 %v141, 28
    %v193 = vpop.permute.xlu0 %192
    %194 = vrot.lane.b32.xlu0 %v144, 28
    %v195 = vpop.permute.xlu0 %194
    %196 = vrot.lane.b32.xlu0 %v146, 28
    %v197 = vpop.permute.xlu0 %196
    %198 = vrot.lane.b32.xlu0 %v148, 28
    %v199 = vpop.permute.xlu0 %198
    %200 = vrot.lane.b32.xlu0 %v151, 28
    %v201 = vpop.permute.xlu0 %200
    %202 = vrot.lane.b32.xlu0 %v153, 28
    %v203 = vpop.permute.xlu0 %202
    %204 = vrot.lane.b32.xlu0 %v155, 28
    %v205 = vpop.permute.xlu0 %204
    %206 = vrot.lane.b32.xlu0 %v158, 28
    %v207 = vpop.permute.xlu0 %206
    %208 = vrot.lane.b32.xlu0 %v160, 28
    %v209 = vpop.permute.xlu0 %208
    %210 = vrot.lane.b32.xlu0 %v162, 28
    %v211 = vpop.permute.xlu0 %210
    %212 = vrot.lane.b32.xlu0 %v165, 28
    %v213 = vpop.permute.xlu0 %212
    %214 = vrot.lane.b32.xlu0 %v167, 28
    %v215 = vpop.permute.xlu0 %214
    %216 = vrot.lane.b32.xlu0 %v169, 28
    %v217 = vpop.permute.xlu0 %216
    %vm242 = vcmask 1045504
    %v243 = vrot.slane %v49, 2
    %v244 = vrot.slane %v50, 2
    %v245 = vsel %vm242, %v243, %v244
    %v246 = vrot.slane %v51, 2
    %v247 = vsel %vm242, %v244, %v246
    %v248 = vrot.slane %v52, 2
    %v249 = vsel %vm242, %v246, %v248
    %v250 = vrot.slane %v53, 2
    %v251 = vrot.slane %v54, 2
    %v252 = vsel %vm242, %v250, %v251
    %v253 = vrot.slane %v55, 2
    %v254 = vsel %vm242, %v251, %v253
    %v255 = vrot.slane %v56, 2
    %v256 = vsel %vm242, %v253, %v255
    %v257 = vrot.slane %v57, 2
    %v258 = vrot.slane %v58, 2
    %v259 = vsel %vm242, %v257, %v258
    %v260 = vrot.slane %v59, 2
    %v261 = vsel %vm242, %v258, %v260
    %v262 = vrot.slane %v60, 2
    %v263 = vsel %vm242, %v260, %v262
    %v264 = vrot.slane %v61, 2
    %v265 = vrot.slane %v62, 2
    %v266 = vsel %vm242, %v264, %v265
    %v267 = vrot.slane %v63, 2
    %v268 = vsel %vm242, %v265, %v267
    %v269 = vrot.slane %v64, 2
    %v270 = vsel %vm242, %v267, %v269
    %v271 = vrot.slane %v65, 2
    %v272 = vrot.slane %v66, 2
    %v273 = vsel %vm242, %v271, %v272
    %v274 = vrot.slane %v67, 2
    %v275 = vsel %vm242, %v272, %v274
    %v276 = vrot.slane %v68, 2
    %v277 = vsel %vm242, %v274, %v276
    %v278 = vrot.slane %v69, 2
    %v279 = vrot.slane %v70, 2
    %v280 = vsel %vm242, %v278, %v279
    %v281 = vrot.slane %v71, 2
    %v282 = vsel %vm242, %v279, %v281
    %v283 = vrot.slane %v72, 2
    %v284 = vsel %vm242, %v281, %v283
    %v285 = vrot.slane %v73, 2
    %v286 = vrot.slane %v74, 2
    %v287 = vsel %vm242, %v285, %v286
    %v288 = vrot.slane %v75, 2
    %v289 = vsel %vm242, %v286, %v288
    %v290 = vrot.slane %v76, 2
    %v291 = vsel %vm242, %v288, %v290
    %v292 = vrot.slane %v77, 2
    %v293 = vrot.slane %v78, 2
    %v294 = vsel %vm242, %v292, %v293
    %v295 = vrot.slane %v79, 2
    %v296 = vsel %vm242, %v293, %v295
    %v297 = vrot.slane %v80, 2
    %v298 = vsel %vm242, %v295, %v297
    %299 = vrot.lane.b32.xlu0 %v245, 56
    %v300 = vpop.permute.xlu0 %299
    %301 = vrot.lane.b32.xlu0 %v247, 56
    %v302 = vpop.permute.xlu0 %301
    %303 = vrot.lane.b32.xlu0 %v249, 56
    %v304 = vpop.permute.xlu0 %303
    %305 = vrot.lane.b32.xlu0 %v252, 56
    %v306 = vpop.permute.xlu0 %305
    %307 = vrot.lane.b32.xlu0 %v254, 56
    %v308 = vpop.permute.xlu0 %307
    %309 = vrot.lane.b32.xlu0 %v256, 56
    %v310 = vpop.permute.xlu0 %309
    %311 = vrot.lane.b32.xlu0 %v259, 56
    %v312 = vpop.permute.xlu0 %311
    %313 = vrot.lane.b32.xlu0 %v261, 56
    %v314 = vpop.permute.xlu0 %313
    %315 = vrot.lane.b32.xlu0 %v263, 56
    %v316 = vpop.permute.xlu0 %315
    %317 = vrot.lane.b32.xlu0 %v266, 56
    %v318 = vpop.permute.xlu0 %317
    %319 = vrot.lane.b32.xlu0 %v268, 56
    %v320 = vpop.permute.xlu0 %319
    %321 = vrot.lane.b32.xlu0 %v270, 56
    %v322 = vpop.permute.xlu0 %321
    %323 = vrot.lane.b32.xlu0 %v273, 56
    %v324 = vpop.permute.xlu0 %323
    %325 = vrot.lane.b32.xlu0 %v275, 56
    %v326 = vpop.permute.xlu0 %325
    %327 = vrot.lane.b32.xlu0 %v277, 56
    %v328 = vpop.permute.xlu0 %327
    %329 = vrot.lane.b32.xlu0 %v280, 56
    %v330 = vpop.permute.xlu0 %329
    %331 = vrot.lane.b32.xlu0 %v282, 56
    %v332 = vpop.permute.xlu0 %331
    %333 = vrot.lane.b32.xlu0 %v284, 56
    %v334 = vpop.permute.xlu0 %333
    %335 = vrot.lane.b32.xlu0 %v287, 56
    %v336 = vpop.permute.xlu0 %335
    %337 = vrot.lane.b32.xlu0 %v289, 56
    %v338 = vpop.permute.xlu0 %337
    %339 = vrot.lane.b32.xlu0 %v291, 56
    %v340 = vpop.permute.xlu0 %339
    %341 = vrot.lane.b32.xlu0 %v294, 56
    %v342 = vpop.permute.xlu0 %341
    %343 = vrot.lane.b32.xlu0 %v296, 56
    %v344 = vpop.permute.xlu0 %343
    %345 = vrot.lane.b32.xlu0 %v298, 56
    %v346 = vpop.permute.xlu0 %345
    %vm371 = vcmask 1044480
    %v372 = vrot.slane %v49, 3
    %v373 = vrot.slane %v50, 3
    %v374 = vsel %vm371, %v372, %v373
    %v375 = vrot.slane %v51, 3
    %v376 = vsel %vm371, %v373, %v375
    %v377 = vrot.slane %v52, 3
    %v378 = vsel %vm371, %v375, %v377
    %v379 = vrot.slane %v53, 3
    %v380 = vrot.slane %v54, 3
    %v381 = vsel %vm371, %v379, %v380
    %v382 = vrot.slane %v55, 3
    %v383 = vsel %vm371, %v380, %v382
    %v384 = vrot.slane %v56, 3
    %v385 = vsel %vm371, %v382, %v384
    %v386 = vrot.slane %v57, 3
    %v387 = vrot.slane %v58, 3
    %v388 = vsel %vm371, %v386, %v387
    %v389 = vrot.slane %v59, 3
    %v390 = vsel %vm371, %v387, %v389
    %v391 = vrot.slane %v60, 3
    %v392 = vsel %vm371, %v389, %v391
    %v393 = vrot.slane %v61, 3
    %v394 = vrot.slane %v62, 3
    %v395 = vsel %vm371, %v393, %v394
    %v396 = vrot.slane %v63, 3
    %v397 = vsel %vm371, %v394, %v396
    %v398 = vrot.slane %v64, 3
    %v399 = vsel %vm371, %v396, %v398
    %v400 = vrot.slane %v65, 3
    %v401 = vrot.slane %v66, 3
    %v402 = vsel %vm371, %v400, %v401
    %v403 = vrot.slane %v67, 3
    %v404 = vsel %vm371, %v401, %v403
    %v405 = vrot.slane %v68, 3
    %v406 = vsel %vm371, %v403, %v405
    %v407 = vrot.slane %v69, 3
    %v408 = vrot.slane %v70, 3
    %v409 = vsel %vm371, %v407, %v408
    %v410 = vrot.slane %v71, 3
    %v411 = vsel %vm371, %v408, %v410
    %v412 = vrot.slane %v72, 3
    %v413 = vsel %vm371, %v410, %v412
    %v414 = vrot.slane %v73, 3
    %v415 = vrot.slane %v74, 3
    %v416 = vsel %vm371, %v414, %v415
    %v417 = vrot.slane %v75, 3
    %v418 = vsel %vm371, %v415, %v417
    %v419 = vrot.slane %v76, 3
    %v420 = vsel %vm371, %v417, %v419
    %v421 = vrot.slane %v77, 3
    %v422 = vrot.slane %v78, 3
    %v423 = vsel %vm371, %v421, %v422
    %v424 = vrot.slane %v79, 3
    %v425 = vsel %vm371, %v422, %v424
    %v426 = vrot.slane %v80, 3
    %v427 = vsel %vm371, %v424, %v426
    %428 = vrot.lane.b32.xlu0 %v374, 84
    %v429 = vpop.permute.xlu0 %428
    %430 = vrot.lane.b32.xlu0 %v376, 84
    %v431 = vpop.permute.xlu0 %430
    %432 = vrot.lane.b32.xlu0 %v378, 84
    %v433 = vpop.permute.xlu0 %432
    %434 = vrot.lane.b32.xlu0 %v381, 84
    %v435 = vpop.permute.xlu0 %434
    %436 = vrot.lane.b32.xlu0 %v383, 84
    %v437 = vpop.permute.xlu0 %436
    %438 = vrot.lane.b32.xlu0 %v385, 84
    %v439 = vpop.permute.xlu0 %438
    %440 = vrot.lane.b32.xlu0 %v388, 84
    %v441 = vpop.permute.xlu0 %440
    %442 = vrot.lane.b32.xlu0 %v390, 84
    %v443 = vpop.permute.xlu0 %442
    %444 = vrot.lane.b32.xlu0 %v392, 84
    %v445 = vpop.permute.xlu0 %444
    %446 = vrot.lane.b32.xlu0 %v395, 84
    %v447 = vpop.permute.xlu0 %446
    %448 = vrot.lane.b32.xlu0 %v397, 84
    %v449 = vpop.permute.xlu0 %448
    %450 = vrot.lane.b32.xlu0 %v399, 84
    %v451 = vpop.permute.xlu0 %450
    %452 = vrot.lane.b32.xlu0 %v402, 84
    %v453 = vpop.permute.xlu0 %452
    %454 = vrot.lane.b32.xlu0 %v404, 84
    %v455 = vpop.permute.xlu0 %454
    %456 = vrot.lane.b32.xlu0 %v406, 84
    %v457 = vpop.permute.xlu0 %456
    %458 = vrot.lane.b32.xlu0 %v409, 84
    %v459 = vpop.permute.xlu0 %458
    %460 = vrot.lane.b32.xlu0 %v411, 84
    %v461 = vpop.permute.xlu0 %460
    %462 = vrot.lane.b32.xlu0 %v413, 84
    %v463 = vpop.permute.xlu0 %462
    %464 = vrot.lane.b32.xlu0 %v416, 84
    %v465 = vpop.permute.xlu0 %464
    %466 = vrot.lane.b32.xlu0 %v418, 84
    %v467 = vpop.permute.xlu0 %466
    %468 = vrot.lane.b32.xlu0 %v420, 84
    %v469 = vpop.permute.xlu0 %468
    %470 = vrot.lane.b32.xlu0 %v423, 84
    %v471 = vpop.permute.xlu0 %470
    %472 = vrot.lane.b32.xlu0 %v425, 84
    %v473 = vpop.permute.xlu0 %472
    %474 = vrot.lane.b32.xlu0 %v427, 84
    %v475 = vpop.permute.xlu0 %474
    %vm500 = vcmask 1043456
    %v501 = vrot.slane %v49, 4
    %v502 = vrot.slane %v50, 4
    %v503 = vsel %vm500, %v501, %v502
    %v504 = vrot.slane %v51, 4
    %v505 = vsel %vm500, %v502, %v504
    %v506 = vrot.slane %v52, 4
    %v507 = vsel %vm500, %v504, %v506
    %v508 = vrot.slane %v53, 4
    %v509 = vrot.slane %v54, 4
    %v510 = vsel %vm500, %v508, %v509
    %v511 = vrot.slane %v55, 4
    %v512 = vsel %vm500, %v509, %v511
    %v513 = vrot.slane %v56, 4
    %v514 = vsel %vm500, %v511, %v513
    %v515 = vrot.slane %v57, 4
    %v516 = vrot.slane %v58, 4
    %v517 = vsel %vm500, %v515, %v516
    %v518 = vrot.slane %v59, 4
    %v519 = vsel %vm500, %v516, %v518
    %v520 = vrot.slane %v60, 4
    %v521 = vsel %vm500, %v518, %v520
    %v522 = vrot.slane %v61, 4
    %v523 = vrot.slane %v62, 4
    %v524 = vsel %vm500, %v522, %v523
    %v525 = vrot.slane %v63, 4
    %v526 = vsel %vm500, %v523, %v525
    %v527 = vrot.slane %v64, 4
    %v528 = vsel %vm500, %v525, %v527
    %v529 = vrot.slane %v65, 4
    %v530 = vrot.slane %v66, 4
    %v531 = vsel %vm500, %v529, %v530
    %v532 = vrot.slane %v67, 4
    %v533 = vsel %vm500, %v530, %v532
    %v534 = vrot.slane %v68, 4
    %v535 = vsel %vm500, %v532, %v534
    %v536 = vrot.slane %v69, 4
    %v537 = vrot.slane %v70, 4
    %v538 = vsel %vm500, %v536, %v537
    %v539 = vrot.slane %v71, 4
    %v540 = vsel %vm500, %v537, %v539
    %v541 = vrot.slane %v72, 4
    %v542 = vsel %vm500, %v539, %v541
    %v543 = vrot.slane %v73, 4
    %v544 = vrot.slane %v74, 4
    %v545 = vsel %vm500, %v543, %v544
    %v546 = vrot.slane %v75, 4
    %v547 = vsel %vm500, %v544, %v546
    %v548 = vrot.slane %v76, 4
    %v549 = vsel %vm500, %v546, %v548
    %v550 = vrot.slane %v77, 4
    %v551 = vrot.slane %v78, 4
    %v552 = vsel %vm500, %v550, %v551
    %v553 = vrot.slane %v79, 4
    %v554 = vsel %vm500, %v551, %v553
    %v555 = vrot.slane %v80, 4
    %v556 = vsel %vm500, %v553, %v555
    %557 = vrot.lane.b32.xlu0 %v503, 112
    %v558 = vpop.permute.xlu0 %557
    %559 = vrot.lane.b32.xlu0 %v505, 112
    %v560 = vpop.permute.xlu0 %559
    %561 = vrot.lane.b32.xlu0 %v507, 112
    %v562 = vpop.permute.xlu0 %561
    %563 = vrot.lane.b32.xlu0 %v510, 112
    %v564 = vpop.permute.xlu0 %563
    %565 = vrot.lane.b32.xlu0 %v512, 112
    %v566 = vpop.permute.xlu0 %565
    %567 = vrot.lane.b32.xlu0 %v514, 112
    %v568 = vpop.permute.xlu0 %567
    %569 = vrot.lane.b32.xlu0 %v517, 112
    %v570 = vpop.permute.xlu0 %569
    %571 = vrot.lane.b32.xlu0 %v519, 112
    %v572 = vpop.permute.xlu0 %571
    %573 = vrot.lane.b32.xlu0 %v521, 112
    %v574 = vpop.permute.xlu0 %573
    %575 = vrot.lane.b32.xlu0 %v524, 112
    %v576 = vpop.permute.xlu0 %575
    %577 = vrot.lane.b32.xlu0 %v526, 112
    %v578 = vpop.permute.xlu0 %577
    %579 = vrot.lane.b32.xlu0 %v528, 112
    %v580 = vpop.permute.xlu0 %579
    %581 = vrot.lane.b32.xlu0 %v531, 112
    %v582 = vpop.permute.xlu0 %581
    %583 = vrot.lane.b32.xlu0 %v533, 112
    %v584 = vpop.permute.xlu0 %583
    %585 = vrot.lane.b32.xlu0 %v535, 112
    %v586 = vpop.permute.xlu0 %585
    %587 = vrot.lane.b32.xlu0 %v538, 112
    %v588 = vpop.permute.xlu0 %587
    %589 = vrot.lane.b32.xlu0 %v540, 112
    %v590 = vpop.permute.xlu0 %589
    %591 = vrot.lane.b32.xlu0 %v542, 112
    %v592 = vpop.permute.xlu0 %591
    %593 = vrot.lane.b32.xlu0 %v545, 112
    %v594 = vpop.permute.xlu0 %593
    %595 = vrot.lane.b32.xlu0 %v547, 112
    %v596 = vpop.permute.xlu0 %595
    %597 = vrot.lane.b32.xlu0 %v549, 112
    %v598 = vpop.permute.xlu0 %597
    %599 = vrot.lane.b32.xlu0 %v552, 112
    %v600 = vpop.permute.xlu0 %599
    %601 = vrot.lane.b32.xlu0 %v554, 112
    %v602 = vpop.permute.xlu0 %601
    %603 = vrot.lane.b32.xlu0 %v556, 112
    %v604 = vpop.permute.xlu0 %603
    %vm629 = vcmask 228352
    %v630 = vsel %vm629, %v49, %v171
    %v631 = vsel %vm629, %v50, %v173
    %v632 = vsel %vm629, %v51, %v175
    %v633 = vsel %vm629, %v53, %v177
    %v634 = vsel %vm629, %v54, %v179
    %v635 = vsel %vm629, %v55, %v181
    %v636 = vsel %vm629, %v57, %v183
    %v637 = vsel %vm629, %v58, %v185
    %v638 = vsel %vm629, %v59, %v187
    %v639 = vsel %vm629, %v61, %v189
    %v640 = vsel %vm629, %v62, %v191
    %v641 = vsel %vm629, %v63, %v193
    %v642 = vsel %vm629, %v65, %v195
    %v643 = vsel %vm629, %v66, %v197
    %v644 = vsel %vm629, %v67, %v199
    %v645 = vsel %vm629, %v69, %v201
    %v646 = vsel %vm629, %v70, %v203
    %v647 = vsel %vm629, %v71, %v205
    %v648 = vsel %vm629, %v73, %v207
    %v649 = vsel %vm629, %v74, %v209
    %v650 = vsel %vm629, %v75, %v211
    %v651 = vsel %vm629, %v77, %v213
    %v652 = vsel %vm629, %v78, %v215
    %v653 = vsel %vm629, %v79, %v217
    %vm654 = vcmask 457728
    %v655 = vsel %vm654, %v630, %v300
    %v656 = vsel %vm654, %v631, %v302
    %v657 = vsel %vm654, %v632, %v304
    %v658 = vsel %vm654, %v633, %v306
    %v659 = vsel %vm654, %v634, %v308
    %v660 = vsel %vm654, %v635, %v310
    %v661 = vsel %vm654, %v636, %v312
    %v662 = vsel %vm654, %v637, %v314
    %v663 = vsel %vm654, %v638, %v316
    %v664 = vsel %vm654, %v639, %v318
    %v665 = vsel %vm654, %v640, %v320
    %v666 = vsel %vm654, %v641, %v322
    %v667 = vsel %vm654, %v642, %v324
    %v668 = vsel %vm654, %v643, %v326
    %v669 = vsel %vm654, %v644, %v328
    %v670 = vsel %vm654, %v645, %v330
    %v671 = vsel %vm654, %v646, %v332
    %v672 = vsel %vm654, %v647, %v334
    %v673 = vsel %vm654, %v648, %v336
    %v674 = vsel %vm654, %v649, %v338
    %v675 = vsel %vm654, %v650, %v340
    %v676 = vsel %vm654, %v651, %v342
    %v677 = vsel %vm654, %v652, %v344
    %v678 = vsel %vm654, %v653, %v346
    %vm679 = vcmask 687104
    %v680 = vsel %vm679, %v655, %v429
    %v681 = vsel %vm679, %v656, %v431
    %v682 = vsel %vm679, %v657, %v433
    %v683 = vsel %vm679, %v658, %v435
    %v684 = vsel %vm679, %v659, %v437
    %v685 = vsel %vm679, %v660, %v439
    %v686 = vsel %vm679, %v661, %v441
    %v687 = vsel %vm679, %v662, %v443
    %v688 = vsel %vm679, %v663, %v445
    %v689 = vsel %vm679, %v664, %v447
    %v690 = vsel %vm679, %v665, %v449
    %v691 = vsel %vm679, %v666, %v451
    %v692 = vsel %vm679, %v667, %v453
    %v693 = vsel %vm679, %v668, %v455
    %v694 = vsel %vm679, %v669, %v457
    %v695 = vsel %vm679, %v670, %v459
    %v696 = vsel %vm679, %v671, %v461
    %v697 = vsel %vm679, %v672, %v463
    %v698 = vsel %vm679, %v673, %v465
    %v699 = vsel %vm679, %v674, %v467
    %v700 = vsel %vm679, %v675, %v469
    %v701 = vsel %vm679, %v676, %v471
    %v702 = vsel %vm679, %v677, %v473
    %v703 = vsel %vm679, %v678, %v475
    %vm704 = vcmask 916480
    %v705 = vsel %vm704, %v680, %v558
    %v706 = vsel %vm704, %v681, %v560
    %v707 = vsel %vm704, %v682, %v562
    %v708 = vsel %vm704, %v683, %v564
    %v709 = vsel %vm704, %v684, %v566
    %v710 = vsel %vm704, %v685, %v568
    %v711 = vsel %vm704, %v686, %v570
    %v712 = vsel %vm704, %v687, %v572
    %v713 = vsel %vm704, %v688, %v574
    %v714 = vsel %vm704, %v689, %v576
    %v715 = vsel %vm704, %v690, %v578
    %v716 = vsel %vm704, %v691, %v580
    %v717 = vsel %vm704, %v692, %v582
    %v718 = vsel %vm704, %v693, %v584
    %v719 = vsel %vm704, %v694, %v586
    %v720 = vsel %vm704, %v695, %v588
    %v721 = vsel %vm704, %v696, %v590
    %v722 = vsel %vm704, %v697, %v592
    %v723 = vsel %vm704, %v698, %v594
    %v724 = vsel %vm704, %v699, %v596
    %v725 = vsel %vm704, %v700, %v598
    %v726 = vsel %vm704, %v701, %v600
    %v727 = vsel %vm704, %v702, %v602
    %v728 = vsel %vm704, %v703, %v604
    %v729 = vpack.c.bf16 %v706, %v705
    %v730 = vpack.c.bf16 %v560, %v558
    %v731 = vpack.c.bf16 %v708, %v707
    %v732 = vpack.c.bf16 %v564, %v562
    %v733 = vpack.c.bf16 %v710, %v709
    %v734 = vpack.c.bf16 %v568, %v566
    %v735 = vpack.c.bf16 %v712, %v711
    %v736 = vpack.c.bf16 %v572, %v570
    %v737 = vpack.c.bf16 %v714, %v713
    %v738 = vpack.c.bf16 %v576, %v574
    %v739 = vpack.c.bf16 %v716, %v715
    %v740 = vpack.c.bf16 %v580, %v578
    %v741 = vpack.c.bf16 %v718, %v717
    %v742 = vpack.c.bf16 %v584, %v582
    %v743 = vpack.c.bf16 %v720, %v719
    %v744 = vpack.c.bf16 %v588, %v586
    %v745 = vpack.c.bf16 %v722, %v721
    %v746 = vpack.c.bf16 %v592, %v590
    %v747 = vpack.c.bf16 %v724, %v723
    %v748 = vpack.c.bf16 %v596, %v594
    %v749 = vpack.c.bf16 %v726, %v725
    %v750 = vpack.c.bf16 %v600, %v598
    %v751 = vpack.c.bf16 %v728, %v727
    %v752 = vpack.c.bf16 %v604, %v602
    %v753 = vld [vmem:[%s1] sm:$0xff]
    %v754 = vld [vmem:[%s1 + $0x8] sm:$0xff]
    %v755 = vld [vmem:[%s1 + $0x10] sm:$0xff]
    %v756 = vld [vmem:[%s1 + $0x18] sm:$0xff]
    %v757 = vld [vmem:[%s1 + $0x20] sm:$0xff]
    %v758 = vld [vmem:[%s1 + $0x28] sm:$0xff]
    %v759 = vld [vmem:[%s1 + $0x30] sm:$0xff]
    %v760 = vld [vmem:[%s1 + $0x38] sm:$0xff]
    %v761 = vld [vmem:[%s1 + $0x40] sm:$0xff]
    %v762 = vld [vmem:[%s1 + $0x48] sm:$0xff]
    %v763 = vld [vmem:[%s1 + $0x50] sm:$0xff]
    %v764 = vld [vmem:[%s1 + $0x58] sm:$0xff]
    %v765 = vld [vmem:[%s1 + $0x60] sm:$0xff]
    %v766 = vld [vmem:[%s1 + $0x68] sm:$0xff]
    %v767 = vld [vmem:[%s1 + $0x70] sm:$0xff]
    %v768 = vld [vmem:[%s1 + $0x78] sm:$0xff]
    %v769 = vld [vmem:[%s1 + $0x80] sm:$0xff]
    %v770 = vld [vmem:[%s1 + $0x88] sm:$0x33]
    %v789 = vunpack.c.l.b16 %v753
    %v790 = vunpack.c.h.b16 %v753
    %v791 = vunpack.c.l.b16 %v754
    %v792 = vunpack.c.h.b16 %v754
    %v793 = vunpack.c.l.b16 %v755
    %v794 = vunpack.c.h.b16 %v755
    %v795 = vunpack.c.l.b16 %v756
    %v796 = vunpack.c.h.b16 %v756
    %v797 = vunpack.c.l.b16 %v757
    %v798 = vunpack.c.h.b16 %v757
    %v799 = vunpack.c.l.b16 %v758
    %v800 = vunpack.c.h.b16 %v758
    %v801 = vunpack.c.l.b16 %v759
    %v802 = vunpack.c.h.b16 %v759
    %v803 = vunpack.c.l.b16 %v760
    %v804 = vunpack.c.h.b16 %v760
    %v805 = vunpack.c.l.b16 %v761
    %v806 = vunpack.c.h.b16 %v761
    %v807 = vunpack.c.l.b16 %v762
    %v808 = vunpack.c.h.b16 %v762
    %v809 = vunpack.c.l.b16 %v763
    %v810 = vunpack.c.h.b16 %v763
    %v811 = vunpack.c.l.b16 %v764
    %v812 = vunpack.c.h.b16 %v764
    %v813 = vunpack.c.l.b16 %v765
    %v814 = vunpack.c.h.b16 %v765
    %v815 = vunpack.c.l.b16 %v766
    %v816 = vunpack.c.h.b16 %v766
    %v817 = vunpack.c.l.b16 %v767
    %v818 = vunpack.c.h.b16 %v767
    %v819 = vunpack.c.l.b16 %v768
    %v820 = vunpack.c.h.b16 %v768
    %v821 = vunpack.c.l.b16 %v769
    %v822 = vunpack.c.h.b16 %v769
    %v823 = vunpack.c.l.b16 %v770
    %v824 = vunpack.c.h.b16 %v770
    %v825 = vpack.c.b16 %v791, %v789
    %v826 = vpack.c.b16 %v792, %v790
    %v827 = vpack.c.b16 %v795, %v793
    %v828 = vpack.c.b16 %v796, %v794
    %v829 = vpack.c.b16 %v799, %v797
    %v830 = vpack.c.b16 %v800, %v798
    %v831 = vpack.c.b16 %v803, %v801
    %v832 = vpack.c.b16 %v804, %v802
    %v833 = vpack.c.b16 %v807, %v805
    %v834 = vpack.c.b16 %v808, %v806
    %v835 = vpack.c.b16 %v811, %v809
    %v836 = vpack.c.b16 %v812, %v810
    %v837 = vpack.c.b16 %v815, %v813
    %v838 = vpack.c.b16 %v816, %v814
    %v839 = vpack.c.b16 %v819, %v817
    %v840 = vpack.c.b16 %v820, %v818
    %v841 = vpack.c.b16 %v823, %v821
    %v842 = vpack.c.b16 %v824, %v822
    %vm859 = vcmask 97280
    %v861 = vsel %vm859, %v730, 0
    %v864 = vsel %vm859, %v732, 0
    %v867 = vsel %vm859, %v734, 0
    %v870 = vsel %vm859, %v736, 0
    %v873 = vsel %vm859, %v738, 0
    %v876 = vsel %vm859, %v740, 0
    %v879 = vsel %vm859, %v742, 0
    %v882 = vsel %vm859, %v744, 0
    %v885 = vsel %vm859, %v746, 0
    %v888 = vsel %vm859, %v748, 0
    %v891 = vsel %vm859, %v750, 0
    %v894 = vsel %vm859, %v752, 0
    %v897 = vsel %vm242, %v841, 0
    %v900 = vsel %vm242, %v842, 0
    %902 = vmatpush.bf16.msra.mxu0 %v839
    %903 = vmatpush.bf16.msra.mxu0 %v837
    %904 = vmatpush.bf16.msra.mxu0 %v835
    %905 = vmatpush.bf16.msra.mxu0 %v833
    %906 = vmatpush.bf16.msra.mxu0 %v831
    %907 = vmatpush.bf16.msra.mxu0 %v829
    %908 = vmatpush.bf16.msra.mxu0 %v827
    %909 = vmatpush.bf16.msra.mxu0 %v825
    %910 = vmatmul.bf16.gmra.mxu0 %v729
    %v911 = vpop.f32.mrf.mxu0
    %v912 = vadd.f32 0.0, %v911
    %v913 = vpop.f32.mrf.mxu0
    %v914 = vadd.f32 0.0, %v913
    %915 = vmatmul.bf16.gmra.mxu0 %v731
    %v916 = vpop.f32.mrf.mxu0
    %v917 = vadd.f32 0.0, %v916
    %v918 = vpop.f32.mrf.mxu0
    %v919 = vadd.f32 0.0, %v918
    %920 = vmatmul.bf16.gmra.mxu0 %v733
    %v921 = vpop.f32.mrf.mxu0
    %v922 = vadd.f32 0.0, %v921
    %v923 = vpop.f32.mrf.mxu0
    %v924 = vadd.f32 0.0, %v923
    %925 = vmatmul.bf16.gmra.mxu0 %v735
    %v926 = vpop.f32.mrf.mxu0
    %v927 = vadd.f32 0.0, %v926
    %v928 = vpop.f32.mrf.mxu0
    %v929 = vadd.f32 0.0, %v928
    %930 = vmatmul.bf16.gmra.mxu0 %v737
    %v931 = vpop.f32.mrf.mxu0
    %v932 = vadd.f32 0.0, %v931
    %v933 = vpop.f32.mrf.mxu0
    %v934 = vadd.f32 0.0, %v933
    %935 = vmatmul.bf16.gmra.mxu0 %v739
    %v936 = vpop.f32.mrf.mxu0
    %v937 = vadd.f32 0.0, %v936
    %v938 = vpop.f32.mrf.mxu0
    %v939 = vadd.f32 0.0, %v938
    %940 = vmatmul.bf16.gmra.mxu0 %v741
    %v941 = vpop.f32.mrf.mxu0
    %v942 = vadd.f32 0.0, %v941
    %v943 = vpop.f32.mrf.mxu0
    %v944 = vadd.f32 0.0, %v943
    %945 = vmatmul.bf16.gmra.mxu0 %v743
    %v946 = vpop.f32.mrf.mxu0
    %v947 = vadd.f32 0.0, %v946
    %v948 = vpop.f32.mrf.mxu0
    %v949 = vadd.f32 0.0, %v948
    %950 = vmatmul.bf16.gmra.mxu0 %v745
    %v951 = vpop.f32.mrf.mxu0
    %v952 = vadd.f32 0.0, %v951
    %v953 = vpop.f32.mrf.mxu0
    %v954 = vadd.f32 0.0, %v953
    %955 = vmatmul.bf16.gmra.mxu0 %v747
    %v956 = vpop.f32.mrf.mxu0
    %v957 = vadd.f32 0.0, %v956
    %v958 = vpop.f32.mrf.mxu0
    %v959 = vadd.f32 0.0, %v958
    %960 = vmatmul.bf16.gmra.mxu0 %v749
    %v961 = vpop.f32.mrf.mxu0
    %v962 = vadd.f32 0.0, %v961
    %v963 = vpop.f32.mrf.mxu0
    %v964 = vadd.f32 0.0, %v963
    %965 = vmatmul.bf16.gmra.mxu0 %v751
    %v966 = vpop.f32.mrf.mxu0
    %v967 = vadd.f32 0.0, %v966
    %v968 = vpop.f32.mrf.mxu0
    %v969 = vadd.f32 0.0, %v968
    %970 = vdwg.mxu0
    %971 = vmatpush.bf16.msra.mxu0 0
    %972 = vmatpush.bf16.msra.mxu0 0
    %973 = vmatpush.bf16.msra.mxu0 0
    %974 = vmatpush.bf16.msra.mxu0 0
    %975 = vmatpush.bf16.msra.mxu0 0
    %976 = vmatpush.bf16.msra.mxu0 0
    %977 = vmatpush.bf16.msra.mxu0 0
    %978 = vmatpush.bf16.msra.mxu0 %v897
    %979 = vmatmul.bf16.gmra.mxu0 %v861
    %v980 = vpop.f32.mrf.mxu0
    %v981 = vadd.f32 %v912, %v980
    %v982 = vpop.f32.mrf.mxu0
    %v983 = vadd.f32 %v914, %v982
    %984 = vmatmul.bf16.gmra.mxu0 %v864
    %v985 = vpop.f32.mrf.mxu0
    %v986 = vadd.f32 %v917, %v985
    %v987 = vpop.f32.mrf.mxu0
    %v988 = vadd.f32 %v919, %v987
    %989 = vmatmul.bf16.gmra.mxu0 %v867
    %v990 = vpop.f32.mrf.mxu0
    %v991 = vadd.f32 %v922, %v990
    %v992 = vpop.f32.mrf.mxu0
    %v993 = vadd.f32 %v924, %v992
    %994 = vmatmul.bf16.gmra.mxu0 %v870
    %v995 = vpop.f32.mrf.mxu0
    %v996 = vadd.f32 %v927, %v995
    %v997 = vpop.f32.mrf.mxu0
    %v998 = vadd.f32 %v929, %v997
    %999 = vmatmul.bf16.gmra.mxu0 %v873
    %v1000 = vpop.f32.mrf.mxu0
    %v1001 = vadd.f32 %v932, %v1000
    %v1002 = vpop.f32.mrf.mxu0
    %v1003 = vadd.f32 %v934, %v1002
    %1004 = vmatmul.bf16.gmra.mxu0 %v876
    %v1005 = vpop.f32.mrf.mxu0
    %v1006 = vadd.f32 %v937, %v1005
    %v1007 = vpop.f32.mrf.mxu0
    %v1008 = vadd.f32 %v939, %v1007
    %1009 = vmatmul.bf16.gmra.mxu0 %v879
    %v1010 = vpop.f32.mrf.mxu0
    %v1011 = vadd.f32 %v942, %v1010
    %v1012 = vpop.f32.mrf.mxu0
    %v1013 = vadd.f32 %v944, %v1012
    %1014 = vmatmul.bf16.gmra.mxu0 %v882
    %v1015 = vpop.f32.mrf.mxu0
    %v1016 = vadd.f32 %v947, %v1015
    %v1017 = vpop.f32.mrf.mxu0
    %v1018 = vadd.f32 %v949, %v1017
    %1019 = vmatmul.bf16.gmra.mxu0 %v885
    %v1020 = vpop.f32.mrf.mxu0
    %v1021 = vadd.f32 %v952, %v1020
    %v1022 = vpop.f32.mrf.mxu0
    %v1023 = vadd.f32 %v954, %v1022
    %1024 = vmatmul.bf16.gmra.mxu0 %v888
    %v1025 = vpop.f32.mrf.mxu0
    %v1026 = vadd.f32 %v957, %v1025
    %v1027 = vpop.f32.mrf.mxu0
    %v1028 = vadd.f32 %v959, %v1027
    %1029 = vmatmul.bf16.gmra.mxu0 %v891
    %v1030 = vpop.f32.mrf.mxu0
    %v1031 = vadd.f32 %v962, %v1030
    %v1032 = vpop.f32.mrf.mxu0
    %v1033 = vadd.f32 %v964, %v1032
    %1034 = vmatmul.bf16.gmra.mxu0 %v894
    %v1035 = vpop.f32.mrf.mxu0
    %v1036 = vadd.f32 %v967, %v1035
    %v1037 = vpop.f32.mrf.mxu0
    %v1038 = vadd.f32 %v969, %v1037
    %1039 = vdwg.mxu0
    %1040 = vmatpush.bf16.msra.mxu0 %v840
    %1041 = vmatpush.bf16.msra.mxu0 %v838
    %1042 = vmatpush.bf16.msra.mxu0 %v836
    %1043 = vmatpush.bf16.msra.mxu0 %v834
    %1044 = vmatpush.bf16.msra.mxu0 %v832
    %1045 = vmatpush.bf16.msra.mxu0 %v830
    %1046 = vmatpush.bf16.msra.mxu0 %v828
    %1047 = vmatpush.bf16.msra.mxu0 %v826
    %1048 = vmatmul.bf16.gmra.mxu0 %v729
    %v1049 = vpop.f32.mrf.mxu0
    %v1050 = vadd.f32 0.0, %v1049
    %v1051 = vpop.f32.mrf.mxu0
    %v1052 = vadd.f32 0.0, %v1051
    %1053 = vmatmul.bf16.gmra.mxu0 %v731
    %v1054 = vpop.f32.mrf.mxu0
    %v1055 = vadd.f32 0.0, %v1054
    %v1056 = vpop.f32.mrf.mxu0
    %v1057 = vadd.f32 0.0, %v1056
    %1058 = vmatmul.bf16.gmra.mxu0 %v733
    %v1059 = vpop.f32.mrf.mxu0
    %v1060 = vadd.f32 0.0, %v1059
    %v1061 = vpop.f32.mrf.mxu0
    %v1062 = vadd.f32 0.0, %v1061
    %1063 = vmatmul.bf16.gmra.mxu0 %v735
    %v1064 = vpop.f32.mrf.mxu0
    %v1065 = vadd.f32 0.0, %v1064
    %v1066 = vpop.f32.mrf.mxu0
    %v1067 = vadd.f32 0.0, %v1066
    %1068 = vmatmul.bf16.gmra.mxu0 %v737
    %v1069 = vpop.f32.mrf.mxu0
    %v1070 = vadd.f32 0.0, %v1069
    %v1071 = vpop.f32.mrf.mxu0
    %v1072 = vadd.f32 0.0, %v1071
    %1073 = vmatmul.bf16.gmra.mxu0 %v739
    %v1074 = vpop.f32.mrf.mxu0
    %v1075 = vadd.f32 0.0, %v1074
    %v1076 = vpop.f32.mrf.mxu0
    %v1077 = vadd.f32 0.0, %v1076
    %1078 = vmatmul.bf16.gmra.mxu0 %v741
    %v1079 = vpop.f32.mrf.mxu0
    %v1080 = vadd.f32 0.0, %v1079
    %v1081 = vpop.f32.mrf.mxu0
    %v1082 = vadd.f32 0.0, %v1081
    %1083 = vmatmul.bf16.gmra.mxu0 %v743
    %v1084 = vpop.f32.mrf.mxu0
    %v1085 = vadd.f32 0.0, %v1084
    %v1086 = vpop.f32.mrf.mxu0
    %v1087 = vadd.f32 0.0, %v1086
    %1088 = vmatmul.bf16.gmra.mxu0 %v745
    %v1089 = vpop.f32.mrf.mxu0
    %v1090 = vadd.f32 0.0, %v1089
    %v1091 = vpop.f32.mrf.mxu0
    %v1092 = vadd.f32 0.0, %v1091
    %1093 = vmatmul.bf16.gmra.mxu0 %v747
    %v1094 = vpop.f32.mrf.mxu0
    %v1095 = vadd.f32 0.0, %v1094
    %v1096 = vpop.f32.mrf.mxu0
    %v1097 = vadd.f32 0.0, %v1096
    %1098 = vmatmul.bf16.gmra.mxu0 %v749
    %v1099 = vpop.f32.mrf.mxu0
    %v1100 = vadd.f32 0.0, %v1099
    %v1101 = vpop.f32.mrf.mxu0
    %v1102 = vadd.f32 0.0, %v1101
    %1103 = vmatmul.bf16.gmra.mxu0 %v751
    %v1104 = vpop.f32.mrf.mxu0
    %v1105 = vadd.f32 0.0, %v1104
    %v1106 = vpop.f32.mrf.mxu0
    %v1107 = vadd.f32 0.0, %v1106
    %1108 = vdwg.mxu0
    %1109 = vmatpush.bf16.msra.mxu0 0
    %1110 = vmatpush.bf16.msra.mxu0 0
    %1111 = vmatpush.bf16.msra.mxu0 0
    %1112 = vmatpush.bf16.msra.mxu0 0
    %1113 = vmatpush.bf16.msra.mxu0 0
    %1114 = vmatpush.bf16.msra.mxu0 0
    %1115 = vmatpush.bf16.msra.mxu0 0
    %1116 = vmatpush.bf16.msra.mxu0 %v900
    %1117 = vmatmul.bf16.gmra.mxu0 %v861
    %v1118 = vpop.f32.mrf.mxu0
    %v1119 = vadd.f32 %v1050, %v1118
    %v1120 = vpop.f32.mrf.mxu0
    %v1121 = vadd.f32 %v1052, %v1120
    %1122 = vmatmul.bf16.gmra.mxu0 %v864
    %v1123 = vpop.f32.mrf.mxu0
    %v1124 = vadd.f32 %v1055, %v1123
    %v1125 = vpop.f32.mrf.mxu0
    %v1126 = vadd.f32 %v1057, %v1125
    %1127 = vmatmul.bf16.gmra.mxu0 %v867
    %v1128 = vpop.f32.mrf.mxu0
    %v1129 = vadd.f32 %v1060, %v1128
    %v1130 = vpop.f32.mrf.mxu0
    %v1131 = vadd.f32 %v1062, %v1130
    %1132 = vmatmul.bf16.gmra.mxu0 %v870
    %v1133 = vpop.f32.mrf.mxu0
    %v1134 = vadd.f32 %v1065, %v1133
    %v1135 = vpop.f32.mrf.mxu0
    %v1136 = vadd.f32 %v1067, %v1135
    %1137 = vmatmul.bf16.gmra.mxu0 %v873
    %v1138 = vpop.f32.mrf.mxu0
    %v1139 = vadd.f32 %v1070, %v1138
    %v1140 = vpop.f32.mrf.mxu0
    %v1141 = vadd.f32 %v1072, %v1140
    %1142 = vmatmul.bf16.gmra.mxu0 %v876
    %v1143 = vpop.f32.mrf.mxu0
    %v1144 = vadd.f32 %v1075, %v1143
    %v1145 = vpop.f32.mrf.mxu0
    %v1146 = vadd.f32 %v1077, %v1145
    %1147 = vmatmul.bf16.gmra.mxu0 %v879
    %v1148 = vpop.f32.mrf.mxu0
    %v1149 = vadd.f32 %v1080, %v1148
    %v1150 = vpop.f32.mrf.mxu0
    %v1151 = vadd.f32 %v1082, %v1150
    %1152 = vmatmul.bf16.gmra.mxu0 %v882
    %v1153 = vpop.f32.mrf.mxu0
    %v1154 = vadd.f32 %v1085, %v1153
    %v1155 = vpop.f32.mrf.mxu0
    %v1156 = vadd.f32 %v1087, %v1155
    %1157 = vmatmul.bf16.gmra.mxu0 %v885
    %v1158 = vpop.f32.mrf.mxu0
    %v1159 = vadd.f32 %v1090, %v1158
    %v1160 = vpop.f32.mrf.mxu0
    %v1161 = vadd.f32 %v1092, %v1160
    %1162 = vmatmul.bf16.gmra.mxu0 %v888
    %v1163 = vpop.f32.mrf.mxu0
    %v1164 = vadd.f32 %v1095, %v1163
    %v1165 = vpop.f32.mrf.mxu0
    %v1166 = vadd.f32 %v1097, %v1165
    %1167 = vmatmul.bf16.gmra.mxu0 %v891
    %v1168 = vpop.f32.mrf.mxu0
    %v1169 = vadd.f32 %v1100, %v1168
    %v1170 = vpop.f32.mrf.mxu0
    %v1171 = vadd.f32 %v1102, %v1170
    %1172 = vmatmul.bf16.gmra.mxu0 %v894
    %v1173 = vpop.f32.mrf.mxu0
    %v1174 = vadd.f32 %v1105, %v1173
    %v1175 = vpop.f32.mrf.mxu0
    %v1176 = vadd.f32 %v1107, %v1175
    %1177 = vdwg.mxu0
    %v1178 = vmax.f32 %v981, %v1119
    %v1179 = vmax.f32 %v983, %v1121
    %v1180 = vmax.f32 %v986, %v1124
    %v1181 = vmax.f32 %v988, %v1126
    %v1182 = vmax.f32 %v991, %v1129
    %v1183 = vmax.f32 %v993, %v1131
    %v1184 = vmax.f32 %v996, %v1134
    %v1185 = vmax.f32 %v998, %v1136
    %v1186 = vmax.f32 %v1001, %v1139
    %v1187 = vmax.f32 %v1003, %v1141
    %v1188 = vmax.f32 %v1006, %v1144
    %v1189 = vmax.f32 %v1008, %v1146
    %v1190 = vmax.f32 %v1011, %v1149
    %v1191 = vmax.f32 %v1013, %v1151
    %v1192 = vmax.f32 %v1016, %v1154
    %v1193 = vmax.f32 %v1018, %v1156
    %v1194 = vmax.f32 %v1021, %v1159
    %v1195 = vmax.f32 %v1023, %v1161
    %v1196 = vmax.f32 %v1026, %v1164
    %v1197 = vmax.f32 %v1028, %v1166
    %v1198 = vmax.f32 %v1031, %v1169
    %v1199 = vmax.f32 %v1033, %v1171
    %v1200 = vmax.f32 %v1036, %v1174
    %v1201 = vmax.f32 %v1038, %v1176
    %v1226 = vrot.slane %v1178, 2
    %v1227 = vrot.slane %v1178, 4
    %v1228 = vrot.slane %v1178, 6
    %v1229 = vrot.slane %v1179, 2
    %v1230 = vrot.slane %v1179, 4
    %v1231 = vrot.slane %v1179, 6
    %v1232 = vrot.slane %v1180, 2
    %v1233 = vrot.slane %v1180, 4
    %v1234 = vrot.slane %v1180, 6
    %v1235 = vrot.slane %v1181, 2
    %v1236 = vrot.slane %v1181, 4
    %v1237 = vrot.slane %v1181, 6
    %v1238 = vrot.slane %v1182, 2
    %v1239 = vrot.slane %v1182, 4
    %v1240 = vrot.slane %v1182, 6
    %v1241 = vrot.slane %v1183, 2
    %v1242 = vrot.slane %v1183, 4
    %v1243 = vrot.slane %v1183, 6
    %v1244 = vrot.slane %v1184, 2
    %v1245 = vrot.slane %v1184, 4
    %v1246 = vrot.slane %v1184, 6
    %v1247 = vrot.slane %v1185, 2
    %v1248 = vrot.slane %v1185, 4
    %v1249 = vrot.slane %v1185, 6
    %v1250 = vrot.slane %v1186, 2
    %v1251 = vrot.slane %v1186, 4
    %v1252 = vrot.slane %v1186, 6
    %v1253 = vrot.slane %v1187, 2
    %v1254 = vrot.slane %v1187, 4
    %v1255 = vrot.slane %v1187, 6
    %v1256 = vrot.slane %v1188, 2
    %v1257 = vrot.slane %v1188, 4
    %v1258 = vrot.slane %v1188, 6
    %v1259 = vrot.slane %v1189, 2
    %v1260 = vrot.slane %v1189, 4
    %v1261 = vrot.slane %v1189, 6
    %v1262 = vrot.slane %v1190, 2
    %v1263 = vrot.slane %v1190, 4
    %v1264 = vrot.slane %v1190, 6
    %v1265 = vrot.slane %v1191, 2
    %v1266 = vrot.slane %v1191, 4
    %v1267 = vrot.slane %v1191, 6
    %v1268 = vrot.slane %v1192, 2
    %v1269 = vrot.slane %v1192, 4
    %v1270 = vrot.slane %v1192, 6
    %v1271 = vrot.slane %v1193, 2
    %v1272 = vrot.slane %v1193, 4
    %v1273 = vrot.slane %v1193, 6
    %v1274 = vrot.slane %v1194, 2
    %v1275 = vrot.slane %v1194, 4
    %v1276 = vrot.slane %v1194, 6
    %v1277 = vrot.slane %v1195, 2
    %v1278 = vrot.slane %v1195, 4
    %v1279 = vrot.slane %v1195, 6
    %v1280 = vrot.slane %v1196, 2
    %v1281 = vrot.slane %v1196, 4
    %v1282 = vrot.slane %v1196, 6
    %v1283 = vrot.slane %v1197, 2
    %v1284 = vrot.slane %v1197, 4
    %v1285 = vrot.slane %v1197, 6
    %v1286 = vrot.slane %v1198, 2
    %v1287 = vrot.slane %v1198, 4
    %v1288 = vrot.slane %v1198, 6
    %v1289 = vrot.slane %v1199, 2
    %v1290 = vrot.slane %v1199, 4
    %v1291 = vrot.slane %v1199, 6
    %v1292 = vrot.slane %v1200, 2
    %v1293 = vrot.slane %v1200, 4
    %v1294 = vrot.slane %v1200, 6
    %v1295 = vrot.slane %v1201, 2
    %v1296 = vrot.slane %v1201, 4
    %v1297 = vrot.slane %v1201, 6
    %v1370 = vrot.slane %v1178, 7
    %v1371 = vrot.slane %v1370, 2
    %v1372 = vrot.slane %v1226, 7
    %v1373 = vrot.slane %v1372, 2
    %v1374 = vrot.slane %v1227, 7
    %v1375 = vrot.slane %v1374, 2
    %v1376 = vrot.slane %v1228, 7
    %v1377 = vrot.slane %v1376, 2
    %v1378 = vrot.slane %v1179, 7
    %v1379 = vrot.slane %v1378, 2
    %v1380 = vrot.slane %v1229, 7
    %v1381 = vrot.slane %v1380, 2
    %v1382 = vrot.slane %v1230, 7
    %v1383 = vrot.slane %v1382, 2
    %v1384 = vrot.slane %v1231, 7
    %v1385 = vrot.slane %v1384, 2
    %v1386 = vrot.slane %v1180, 7
    %v1387 = vrot.slane %v1386, 2
    %v1388 = vrot.slane %v1232, 7
    %v1389 = vrot.slane %v1388, 2
    %v1390 = vrot.slane %v1233, 7
    %v1391 = vrot.slane %v1390, 2
    %v1392 = vrot.slane %v1234, 7
    %v1393 = vrot.slane %v1392, 2
    %v1394 = vrot.slane %v1181, 7
    %v1395 = vrot.slane %v1394, 2
    %v1396 = vrot.slane %v1235, 7
    %v1397 = vrot.slane %v1396, 2
    %v1398 = vrot.slane %v1236, 7
    %v1399 = vrot.slane %v1398, 2
    %v1400 = vrot.slane %v1237, 7
    %v1401 = vrot.slane %v1400, 2
    %v1402 = vrot.slane %v1182, 7
    %v1403 = vrot.slane %v1402, 2
    %v1404 = vrot.slane %v1238, 7
    %v1405 = vrot.slane %v1404, 2
    %v1406 = vrot.slane %v1239, 7
    %v1407 = vrot.slane %v1406, 2
    %v1408 = vrot.slane %v1240, 7
    %v1409 = vrot.slane %v1408, 2
    %v1410 = vrot.slane %v1183, 7
    %v1411 = vrot.slane %v1410, 2
    %v1412 = vrot.slane %v1241, 7
    %v1413 = vrot.slane %v1412, 2
    %v1414 = vrot.slane %v1242, 7
    %v1415 = vrot.slane %v1414, 2
    %v1416 = vrot.slane %v1243, 7
    %v1417 = vrot.slane %v1416, 2
    %v1418 = vrot.slane %v1184, 7
    %v1419 = vrot.slane %v1418, 2
    %v1420 = vrot.slane %v1244, 7
    %v1421 = vrot.slane %v1420, 2
    %v1422 = vrot.slane %v1245, 7
    %v1423 = vrot.slane %v1422, 2
    %v1424 = vrot.slane %v1246, 7
    %v1425 = vrot.slane %v1424, 2
    %v1426 = vrot.slane %v1185, 7
    %v1427 = vrot.slane %v1426, 2
    %v1428 = vrot.slane %v1247, 7
    %v1429 = vrot.slane %v1428, 2
    %v1430 = vrot.slane %v1248, 7
    %v1431 = vrot.slane %v1430, 2
    %v1432 = vrot.slane %v1249, 7
    %v1433 = vrot.slane %v1432, 2
    %v1434 = vrot.slane %v1186, 7
    %v1435 = vrot.slane %v1434, 2
    %v1436 = vrot.slane %v1250, 7
    %v1437 = vrot.slane %v1436, 2
    %v1438 = vrot.slane %v1251, 7
    %v1439 = vrot.slane %v1438, 2
    %v1440 = vrot.slane %v1252, 7
    %v1441 = vrot.slane %v1440, 2
    %v1442 = vrot.slane %v1187, 7
    %v1443 = vrot.slane %v1442, 2
    %v1444 = vrot.slane %v1253, 7
    %v1445 = vrot.slane %v1444, 2
    %v1446 = vrot.slane %v1254, 7
    %v1447 = vrot.slane %v1446, 2
    %v1448 = vrot.slane %v1255, 7
    %v1449 = vrot.slane %v1448, 2
    %v1450 = vrot.slane %v1188, 7
    %v1451 = vrot.slane %v1450, 2
    %v1452 = vrot.slane %v1256, 7
    %v1453 = vrot.slane %v1452, 2
    %v1454 = vrot.slane %v1257, 7
    %v1455 = vrot.slane %v1454, 2
    %v1456 = vrot.slane %v1258, 7
    %v1457 = vrot.slane %v1456, 2
    %v1458 = vrot.slane %v1189, 7
    %v1459 = vrot.slane %v1458, 2
    %v1460 = vrot.slane %v1259, 7
    %v1461 = vrot.slane %v1460, 2
    %v1462 = vrot.slane %v1260, 7
    %v1463 = vrot.slane %v1462, 2
    %v1464 = vrot.slane %v1261, 7
    %v1465 = vrot.slane %v1464, 2
    %v1466 = vrot.slane %v1190, 7
    %v1467 = vrot.slane %v1466, 2
    %v1468 = vrot.slane %v1262, 7
    %v1469 = vrot.slane %v1468, 2
    %v1470 = vrot.slane %v1263, 7
    %v1471 = vrot.slane %v1470, 2
    %v1472 = vrot.slane %v1264, 7
    %v1473 = vrot.slane %v1472, 2
    %v1474 = vrot.slane %v1191, 7
    %v1475 = vrot.slane %v1474, 2
    %v1476 = vrot.slane %v1265, 7
    %v1477 = vrot.slane %v1476, 2
    %v1478 = vrot.slane %v1266, 7
    %v1479 = vrot.slane %v1478, 2
    %v1480 = vrot.slane %v1267, 7
    %v1481 = vrot.slane %v1480, 2
    %v1482 = vrot.slane %v1192, 7
    %v1483 = vrot.slane %v1482, 2
    %v1484 = vrot.slane %v1268, 7
    %v1485 = vrot.slane %v1484, 2
    %v1486 = vrot.slane %v1269, 7
    %v1487 = vrot.slane %v1486, 2
    %v1488 = vrot.slane %v1270, 7
    %v1489 = vrot.slane %v1488, 2
    %v1490 = vrot.slane %v1193, 7
    %v1491 = vrot.slane %v1490, 2
    %v1492 = vrot.slane %v1271, 7
    %v1493 = vrot.slane %v1492, 2
    %v1494 = vrot.slane %v1272, 7
    %v1495 = vrot.slane %v1494, 2
    %v1496 = vrot.slane %v1273, 7
    %v1497 = vrot.slane %v1496, 2
    %v1498 = vrot.slane %v1194, 7
    %v1499 = vrot.slane %v1498, 2
    %v1500 = vrot.slane %v1274, 7
    %v1501 = vrot.slane %v1500, 2
    %v1502 = vrot.slane %v1275, 7
    %v1503 = vrot.slane %v1502, 2
    %v1504 = vrot.slane %v1276, 7
    %v1505 = vrot.slane %v1504, 2
    %v1506 = vrot.slane %v1195, 7
    %v1507 = vrot.slane %v1506, 2
    %v1508 = vrot.slane %v1277, 7
    %v1509 = vrot.slane %v1508, 2
    %v1510 = vrot.slane %v1278, 7
    %v1511 = vrot.slane %v1510, 2
    %v1512 = vrot.slane %v1279, 7
    %v1513 = vrot.slane %v1512, 2
    %v1514 = vrot.slane %v1196, 7
    %v1515 = vrot.slane %v1514, 2
    %v1516 = vrot.slane %v1280, 7
    %v1517 = vrot.slane %v1516, 2
    %v1518 = vrot.slane %v1281, 7
    %v1519 = vrot.slane %v1518, 2
    %v1520 = vrot.slane %v1282, 7
    %v1521 = vrot.slane %v1520, 2
    %v1522 = vrot.slane %v1197, 7
    %v1523 = vrot.slane %v1522, 2
    %v1524 = vrot.slane %v1283, 7
    %v1525 = vrot.slane %v1524, 2
    %v1526 = vrot.slane %v1284, 7
    %v1527 = vrot.slane %v1526, 2
    %v1528 = vrot.slane %v1285, 7
    %v1529 = vrot.slane %v1528, 2
    %v1530 = vrot.slane %v1198, 7
    %v1531 = vrot.slane %v1530, 2
    %v1532 = vrot.slane %v1286, 7
    %v1533 = vrot.slane %v1532, 2
    %v1534 = vrot.slane %v1287, 7
    %v1535 = vrot.slane %v1534, 2
    %v1536 = vrot.slane %v1288, 7
    %v1537 = vrot.slane %v1536, 2
    %v1538 = vrot.slane %v1199, 7
    %v1539 = vrot.slane %v1538, 2
    %v1540 = vrot.slane %v1289, 7
    %v1541 = vrot.slane %v1540, 2
    %v1542 = vrot.slane %v1290, 7
    %v1543 = vrot.slane %v1542, 2
    %v1544 = vrot.slane %v1291, 7
    %v1545 = vrot.slane %v1544, 2
    %v1546 = vrot.slane %v1200, 7
    %v1547 = vrot.slane %v1546, 2
    %v1548 = vrot.slane %v1292, 7
    %v1549 = vrot.slane %v1548, 2
    %v1550 = vrot.slane %v1293, 7
    %v1551 = vrot.slane %v1550, 2
    %v1552 = vrot.slane %v1294, 7
    %v1553 = vrot.slane %v1552, 2
    %v1554 = vrot.slane %v1201, 7
    %v1555 = vrot.slane %v1554, 2
    %v1556 = vrot.slane %v1295, 7
    %v1557 = vrot.slane %v1556, 2
    %v1558 = vrot.slane %v1296, 7
    %v1559 = vrot.slane %v1558, 2
    %v1560 = vrot.slane %v1297, 7
    %v1561 = vrot.slane %v1560, 2
    %v1658 = vmax.f32 %v1178, %v1371
    %v1659 = vmax.f32 %v1226, %v1373
    %v1660 = vmax.f32 %v1227, %v1375
    %v1661 = vmax.f32 %v1228, %v1377
    %v1662 = vmax.f32 %v1179, %v1379
    %v1663 = vmax.f32 %v1229, %v1381
    %v1664 = vmax.f32 %v1230, %v1383
    %v1665 = vmax.f32 %v1231, %v1385
    %v1666 = vmax.f32 %v1180, %v1387
    %v1667 = vmax.f32 %v1232, %v1389
    %v1668 = vmax.f32 %v1233, %v1391
    %v1669 = vmax.f32 %v1234, %v1393
    %v1670 = vmax.f32 %v1181, %v1395
    %v1671 = vmax.f32 %v1235, %v1397
    %v1672 = vmax.f32 %v1236, %v1399
    %v1673 = vmax.f32 %v1237, %v1401
    %v1674 = vmax.f32 %v1182, %v1403
    %v1675 = vmax.f32 %v1238, %v1405
    %v1676 = vmax.f32 %v1239, %v1407
    %v1677 = vmax.f32 %v1240, %v1409
    %v1678 = vmax.f32 %v1183, %v1411
    %v1679 = vmax.f32 %v1241, %v1413
    %v1680 = vmax.f32 %v1242, %v1415
    %v1681 = vmax.f32 %v1243, %v1417
    %v1682 = vmax.f32 %v1184, %v1419
    %v1683 = vmax.f32 %v1244, %v1421
    %v1684 = vmax.f32 %v1245, %v1423
    %v1685 = vmax.f32 %v1246, %v1425
    %v1686 = vmax.f32 %v1185, %v1427
    %v1687 = vmax.f32 %v1247, %v1429
    %v1688 = vmax.f32 %v1248, %v1431
    %v1689 = vmax.f32 %v1249, %v1433
    %v1690 = vmax.f32 %v1186, %v1435
    %v1691 = vmax.f32 %v1250, %v1437
    %v1692 = vmax.f32 %v1251, %v1439
    %v1693 = vmax.f32 %v1252, %v1441
    %v1694 = vmax.f32 %v1187, %v1443
    %v1695 = vmax.f32 %v1253, %v1445
    %v1696 = vmax.f32 %v1254, %v1447
    %v1697 = vmax.f32 %v1255, %v1449
    %v1698 = vmax.f32 %v1188, %v1451
    %v1699 = vmax.f32 %v1256, %v1453
    %v1700 = vmax.f32 %v1257, %v1455
    %v1701 = vmax.f32 %v1258, %v1457
    %v1702 = vmax.f32 %v1189, %v1459
    %v1703 = vmax.f32 %v1259, %v1461
    %v1704 = vmax.f32 %v1260, %v1463
    %v1705 = vmax.f32 %v1261, %v1465
    %v1706 = vmax.f32 %v1190, %v1467
    %v1707 = vmax.f32 %v1262, %v1469
    %v1708 = vmax.f32 %v1263, %v1471
    %v1709 = vmax.f32 %v1264, %v1473
    %v1710 = vmax.f32 %v1191, %v1475
    %v1711 = vmax.f32 %v1265, %v1477
    %v1712 = vmax.f32 %v1266, %v1479
    %v1713 = vmax.f32 %v1267, %v1481
    %v1714 = vmax.f32 %v1192, %v1483
    %v1715 = vmax.f32 %v1268, %v1485
    %v1716 = vmax.f32 %v1269, %v1487
    %v1717 = vmax.f32 %v1270, %v1489
    %v1718 = vmax.f32 %v1193, %v1491
    %v1719 = vmax.f32 %v1271, %v1493
    %v1720 = vmax.f32 %v1272, %v1495
    %v1721 = vmax.f32 %v1273, %v1497
    %v1722 = vmax.f32 %v1194, %v1499
    %v1723 = vmax.f32 %v1274, %v1501
    %v1724 = vmax.f32 %v1275, %v1503
    %v1725 = vmax.f32 %v1276, %v1505
    %v1726 = vmax.f32 %v1195, %v1507
    %v1727 = vmax.f32 %v1277, %v1509
    %v1728 = vmax.f32 %v1278, %v1511
    %v1729 = vmax.f32 %v1279, %v1513
    %v1730 = vmax.f32 %v1196, %v1515
    %v1731 = vmax.f32 %v1280, %v1517
    %v1732 = vmax.f32 %v1281, %v1519
    %v1733 = vmax.f32 %v1282, %v1521
    %v1734 = vmax.f32 %v1197, %v1523
    %v1735 = vmax.f32 %v1283, %v1525
    %v1736 = vmax.f32 %v1284, %v1527
    %v1737 = vmax.f32 %v1285, %v1529
    %v1738 = vmax.f32 %v1198, %v1531
    %v1739 = vmax.f32 %v1286, %v1533
    %v1740 = vmax.f32 %v1287, %v1535
    %v1741 = vmax.f32 %v1288, %v1537
    %v1742 = vmax.f32 %v1199, %v1539
    %v1743 = vmax.f32 %v1289, %v1541
    %v1744 = vmax.f32 %v1290, %v1543
    %v1745 = vmax.f32 %v1291, %v1545
    %v1746 = vmax.f32 %v1200, %v1547
    %v1747 = vmax.f32 %v1292, %v1549
    %v1748 = vmax.f32 %v1293, %v1551
    %v1749 = vmax.f32 %v1294, %v1553
    %v1750 = vmax.f32 %v1201, %v1555
    %v1751 = vmax.f32 %v1295, %v1557
    %v1752 = vmax.f32 %v1296, %v1559
    %v1753 = vmax.f32 %v1297, %v1561
    %v1754 = vld [vmem:[%s2] sm:$0x1]
    %v1756 = vperm.slane %v1754, 0
    %v1757 = vrot.slane %v1756, 2
    %v1758 = vrot.slane %v1756, 4
    %v1759 = vrot.slane %v1756, 6
    %v1760 = vrot.slane %v1756, 1
    %v1761 = vrot.slane %v1757, 1
    %v1762 = vrot.slane %v1758, 1
    %v1763 = vrot.slane %v1759, 1
    %v1772 = vadd.f32 %v1658, %v1756
    %v1773 = vadd.f32 %v1659, %v1760
    %v1774 = vadd.f32 %v1660, %v1757
    %v1775 = vadd.f32 %v1661, %v1761
    %v1776 = vadd.f32 %v1662, %v1758
    %v1777 = vadd.f32 %v1663, %v1762
    %v1778 = vadd.f32 %v1664, %v1759
    %v1779 = vadd.f32 %v1665, %v1763
    %v1780 = vadd.f32 %v1666, %v1756
    %v1781 = vadd.f32 %v1667, %v1760
    %v1782 = vadd.f32 %v1668, %v1757
    %v1783 = vadd.f32 %v1669, %v1761
    %v1784 = vadd.f32 %v1670, %v1756
    %v1785 = vadd.f32 %v1671, %v1760
    %v1786 = vadd.f32 %v1672, %v1757
    %v1787 = vadd.f32 %v1673, %v1761
    %v1788 = vadd.f32 %v1674, %v1758
    %v1789 = vadd.f32 %v1675, %v1762
    %v1790 = vadd.f32 %v1676, %v1759
    %v1791 = vadd.f32 %v1677, %v1763
    %v1792 = vadd.f32 %v1678, %v1756
    %v1793 = vadd.f32 %v1679, %v1760
    %v1794 = vadd.f32 %v1680, %v1757
    %v1795 = vadd.f32 %v1681, %v1761
    %v1796 = vadd.f32 %v1682, %v1756
    %v1797 = vadd.f32 %v1683, %v1760
    %v1798 = vadd.f32 %v1684, %v1757
    %v1799 = vadd.f32 %v1685, %v1761
    %v1800 = vadd.f32 %v1686, %v1758
    %v1801 = vadd.f32 %v1687, %v1762
    %v1802 = vadd.f32 %v1688, %v1759
    %v1803 = vadd.f32 %v1689, %v1763
    %v1804 = vadd.f32 %v1690, %v1756
    %v1805 = vadd.f32 %v1691, %v1760
    %v1806 = vadd.f32 %v1692, %v1757
    %v1807 = vadd.f32 %v1693, %v1761
    %v1808 = vadd.f32 %v1694, %v1756
    %v1809 = vadd.f32 %v1695, %v1760
    %v1810 = vadd.f32 %v1696, %v1757
    %v1811 = vadd.f32 %v1697, %v1761
    %v1812 = vadd.f32 %v1698, %v1758
    %v1813 = vadd.f32 %v1699, %v1762
    %v1814 = vadd.f32 %v1700, %v1759
    %v1815 = vadd.f32 %v1701, %v1763
    %v1816 = vadd.f32 %v1702, %v1756
    %v1817 = vadd.f32 %v1703, %v1760
    %v1818 = vadd.f32 %v1704, %v1757
    %v1819 = vadd.f32 %v1705, %v1761
    %v1820 = vadd.f32 %v1706, %v1756
    %v1821 = vadd.f32 %v1707, %v1760
    %v1822 = vadd.f32 %v1708, %v1757
    %v1823 = vadd.f32 %v1709, %v1761
    %v1824 = vadd.f32 %v1710, %v1758
    %v1825 = vadd.f32 %v1711, %v1762
    %v1826 = vadd.f32 %v1712, %v1759
    %v1827 = vadd.f32 %v1713, %v1763
    %v1828 = vadd.f32 %v1714, %v1756
    %v1829 = vadd.f32 %v1715, %v1760
    %v1830 = vadd.f32 %v1716, %v1757
    %v1831 = vadd.f32 %v1717, %v1761
    %v1832 = vadd.f32 %v1718, %v1756
    %v1833 = vadd.f32 %v1719, %v1760
    %v1834 = vadd.f32 %v1720, %v1757
    %v1835 = vadd.f32 %v1721, %v1761
    %v1836 = vadd.f32 %v1722, %v1758
    %v1837 = vadd.f32 %v1723, %v1762
    %v1838 = vadd.f32 %v1724, %v1759
    %v1839 = vadd.f32 %v1725, %v1763
    %v1840 = vadd.f32 %v1726, %v1756
    %v1841 = vadd.f32 %v1727, %v1760
    %v1842 = vadd.f32 %v1728, %v1757
    %v1843 = vadd.f32 %v1729, %v1761
    %v1844 = vadd.f32 %v1730, %v1756
    %v1845 = vadd.f32 %v1731, %v1760
    %v1846 = vadd.f32 %v1732, %v1757
    %v1847 = vadd.f32 %v1733, %v1761
    %v1848 = vadd.f32 %v1734, %v1758
    %v1849 = vadd.f32 %v1735, %v1762
    %v1850 = vadd.f32 %v1736, %v1759
    %v1851 = vadd.f32 %v1737, %v1763
    %v1852 = vadd.f32 %v1738, %v1756
    %v1853 = vadd.f32 %v1739, %v1760
    %v1854 = vadd.f32 %v1740, %v1757
    %v1855 = vadd.f32 %v1741, %v1761
    %v1856 = vadd.f32 %v1742, %v1756
    %v1857 = vadd.f32 %v1743, %v1760
    %v1858 = vadd.f32 %v1744, %v1757
    %v1859 = vadd.f32 %v1745, %v1761
    %v1860 = vadd.f32 %v1746, %v1758
    %v1861 = vadd.f32 %v1747, %v1762
    %v1862 = vadd.f32 %v1748, %v1759
    %v1863 = vadd.f32 %v1749, %v1763
    %v1864 = vadd.f32 %v1750, %v1756
    %v1865 = vadd.f32 %v1751, %v1760
    %v1866 = vadd.f32 %v1752, %v1757
    %v1867 = vadd.f32 %v1753, %v1761
    %v1868 = vmax.f32 %v1772, 0.0
    %v1869 = vmax.f32 %v1773, 0.0
    %v1870 = vmax.f32 %v1774, 0.0
    %v1871 = vmax.f32 %v1775, 0.0
    %v1872 = vmax.f32 %v1776, 0.0
    %v1873 = vmax.f32 %v1777, 0.0
    %v1874 = vmax.f32 %v1778, 0.0
    %v1875 = vmax.f32 %v1779, 0.0
    %v1876 = vmax.f32 %v1780, 0.0
    %v1877 = vmax.f32 %v1781, 0.0
    %v1878 = vmax.f32 %v1782, 0.0
    %v1879 = vmax.f32 %v1783, 0.0
    %v1880 = vmax.f32 %v1784, 0.0
    %v1881 = vmax.f32 %v1785, 0.0
    %v1882 = vmax.f32 %v1786, 0.0
    %v1883 = vmax.f32 %v1787, 0.0
    %v1884 = vmax.f32 %v1788, 0.0
    %v1885 = vmax.f32 %v1789, 0.0
    %v1886 = vmax.f32 %v1790, 0.0
    %v1887 = vmax.f32 %v1791, 0.0
    %v1888 = vmax.f32 %v1792, 0.0
    %v1889 = vmax.f32 %v1793, 0.0
    %v1890 = vmax.f32 %v1794, 0.0
    %v1891 = vmax.f32 %v1795, 0.0
    %v1892 = vmax.f32 %v1796, 0.0
    %v1893 = vmax.f32 %v1797, 0.0
    %v1894 = vmax.f32 %v1798, 0.0
    %v1895 = vmax.f32 %v1799, 0.0
    %v1896 = vmax.f32 %v1800, 0.0
    %v1897 = vmax.f32 %v1801, 0.0
    %v1898 = vmax.f32 %v1802, 0.0
    %v1899 = vmax.f32 %v1803, 0.0
    %v1900 = vmax.f32 %v1804, 0.0
    %v1901 = vmax.f32 %v1805, 0.0
    %v1902 = vmax.f32 %v1806, 0.0
    %v1903 = vmax.f32 %v1807, 0.0
    %v1904 = vmax.f32 %v1808, 0.0
    %v1905 = vmax.f32 %v1809, 0.0
    %v1906 = vmax.f32 %v1810, 0.0
    %v1907 = vmax.f32 %v1811, 0.0
    %v1908 = vmax.f32 %v1812, 0.0
    %v1909 = vmax.f32 %v1813, 0.0
    %v1910 = vmax.f32 %v1814, 0.0
    %v1911 = vmax.f32 %v1815, 0.0
    %v1912 = vmax.f32 %v1816, 0.0
    %v1913 = vmax.f32 %v1817, 0.0
    %v1914 = vmax.f32 %v1818, 0.0
    %v1915 = vmax.f32 %v1819, 0.0
    %v1916 = vmax.f32 %v1820, 0.0
    %v1917 = vmax.f32 %v1821, 0.0
    %v1918 = vmax.f32 %v1822, 0.0
    %v1919 = vmax.f32 %v1823, 0.0
    %v1920 = vmax.f32 %v1824, 0.0
    %v1921 = vmax.f32 %v1825, 0.0
    %v1922 = vmax.f32 %v1826, 0.0
    %v1923 = vmax.f32 %v1827, 0.0
    %v1924 = vmax.f32 %v1828, 0.0
    %v1925 = vmax.f32 %v1829, 0.0
    %v1926 = vmax.f32 %v1830, 0.0
    %v1927 = vmax.f32 %v1831, 0.0
    %v1928 = vmax.f32 %v1832, 0.0
    %v1929 = vmax.f32 %v1833, 0.0
    %v1930 = vmax.f32 %v1834, 0.0
    %v1931 = vmax.f32 %v1835, 0.0
    %v1932 = vmax.f32 %v1836, 0.0
    %v1933 = vmax.f32 %v1837, 0.0
    %v1934 = vmax.f32 %v1838, 0.0
    %v1935 = vmax.f32 %v1839, 0.0
    %v1936 = vmax.f32 %v1840, 0.0
    %v1937 = vmax.f32 %v1841, 0.0
    %v1938 = vmax.f32 %v1842, 0.0
    %v1939 = vmax.f32 %v1843, 0.0
    %v1940 = vmax.f32 %v1844, 0.0
    %v1941 = vmax.f32 %v1845, 0.0
    %v1942 = vmax.f32 %v1846, 0.0
    %v1943 = vmax.f32 %v1847, 0.0
    %v1944 = vmax.f32 %v1848, 0.0
    %v1945 = vmax.f32 %v1849, 0.0
    %v1946 = vmax.f32 %v1850, 0.0
    %v1947 = vmax.f32 %v1851, 0.0
    %v1948 = vmax.f32 %v1852, 0.0
    %v1949 = vmax.f32 %v1853, 0.0
    %v1950 = vmax.f32 %v1854, 0.0
    %v1951 = vmax.f32 %v1855, 0.0
    %v1952 = vmax.f32 %v1856, 0.0
    %v1953 = vmax.f32 %v1857, 0.0
    %v1954 = vmax.f32 %v1858, 0.0
    %v1955 = vmax.f32 %v1859, 0.0
    %v1956 = vmax.f32 %v1860, 0.0
    %v1957 = vmax.f32 %v1861, 0.0
    %v1958 = vmax.f32 %v1862, 0.0
    %v1959 = vmax.f32 %v1863, 0.0
    %v1960 = vmax.f32 %v1864, 0.0
    %v1961 = vmax.f32 %v1865, 0.0
    %v1962 = vmax.f32 %v1866, 0.0
    %v1963 = vmax.f32 %v1867, 0.0
    %v2028 = vperm.slane %v1868, 0
    %v2029 = vperm.slane %v1869, 0
    %v2030 = vperm.slane %v1870, 0
    %v2031 = vperm.slane %v1871, 0
    %v2032 = vperm.slane %v1872, 0
    %v2033 = vperm.slane %v1873, 0
    %v2034 = vperm.slane %v1874, 0
    %v2035 = vperm.slane %v1875, 0
    %v2036 = vperm.slane %v1880, 0
    %v2037 = vperm.slane %v1881, 0
    %v2038 = vperm.slane %v1882, 0
    %v2039 = vperm.slane %v1883, 0
    %v2040 = vperm.slane %v1884, 0
    %v2041 = vperm.slane %v1885, 0
    %v2042 = vperm.slane %v1886, 0
    %v2043 = vperm.slane %v1887, 0
    %v2044 = vperm.slane %v1892, 0
    %v2045 = vperm.slane %v1893, 0
    %v2046 = vperm.slane %v1894, 0
    %v2047 = vperm.slane %v1895, 0
    %v2048 = vperm.slane %v1896, 0
    %v2049 = vperm.slane %v1897, 0
    %v2050 = vperm.slane %v1898, 0
    %v2051 = vperm.slane %v1899, 0
    %v2052 = vperm.slane %v1904, 0
    %v2053 = vperm.slane %v1905, 0
    %v2054 = vperm.slane %v1906, 0
    %v2055 = vperm.slane %v1907, 0
    %v2056 = vperm.slane %v1908, 0
    %v2057 = vperm.slane %v1909, 0
    %v2058 = vperm.slane %v1910, 0
    %v2059 = vperm.slane %v1911, 0
    %v2060 = vperm.slane %v1916, 0
    %v2061 = vperm.slane %v1917, 0
    %v2062 = vperm.slane %v1918, 0
    %v2063 = vperm.slane %v1919, 0
    %v2064 = vperm.slane %v1920, 0
    %v2065 = vperm.slane %v1921, 0
    %v2066 = vperm.slane %v1922, 0
    %v2067 = vperm.slane %v1923, 0
    %v2068 = vperm.slane %v1928, 0
    %v2069 = vperm.slane %v1929, 0
    %v2070 = vperm.slane %v1930, 0
    %v2071 = vperm.slane %v1931, 0
    %v2072 = vperm.slane %v1932, 0
    %v2073 = vperm.slane %v1933, 0
    %v2074 = vperm.slane %v1934, 0
    %v2075 = vperm.slane %v1935, 0
    %v2076 = vperm.slane %v1940, 0
    %v2077 = vperm.slane %v1941, 0
    %v2078 = vperm.slane %v1942, 0
    %v2079 = vperm.slane %v1943, 0
    %v2080 = vperm.slane %v1944, 0
    %v2081 = vperm.slane %v1945, 0
    %v2082 = vperm.slane %v1946, 0
    %v2083 = vperm.slane %v1947, 0
    %v2084 = vperm.slane %v1952, 0
    %v2085 = vperm.slane %v1953, 0
    %v2086 = vperm.slane %v1954, 0
    %v2087 = vperm.slane %v1955, 0
    %v2088 = vperm.slane %v1956, 0
    %v2089 = vperm.slane %v1957, 0
    %v2090 = vperm.slane %v1958, 0
    %v2091 = vperm.slane %v1959, 0
    %vm2092 = vcmask 1041409
    %v2093 = vsel %vm2092, %v2029, %v2028
    %vm2094 = vcmask 1042434
    %v2095 = vsel %vm2094, %v2030, %v2093
    %vm2096 = vcmask 1043459
    %v2097 = vsel %vm2096, %v2031, %v2095
    %vm2098 = vcmask 1044484
    %v2099 = vsel %vm2098, %v2032, %v2097
    %vm2100 = vcmask 1045509
    %v2101 = vsel %vm2100, %v2033, %v2099
    %vm2102 = vcmask 1046534
    %v2103 = vsel %vm2102, %v2034, %v2101
    %vm2104 = vcmask 1047559
    %v2105 = vsel %vm2104, %v2035, %v2103
    %v2106 = vsel %vm2092, %v2037, %v2036
    %v2107 = vsel %vm2094, %v2038, %v2106
    %v2108 = vsel %vm2096, %v2039, %v2107
    %v2109 = vsel %vm2098, %v2040, %v2108
    %v2110 = vsel %vm2100, %v2041, %v2109
    %v2111 = vsel %vm2102, %v2042, %v2110
    %v2112 = vsel %vm2104, %v2043, %v2111
    %v2113 = vsel %vm2092, %v2045, %v2044
    %v2114 = vsel %vm2094, %v2046, %v2113
    %v2115 = vsel %vm2096, %v2047, %v2114
    %v2116 = vsel %vm2098, %v2048, %v2115
    %v2117 = vsel %vm2100, %v2049, %v2116
    %v2118 = vsel %vm2102, %v2050, %v2117
    %v2119 = vsel %vm2104, %v2051, %v2118
    %v2120 = vsel %vm2092, %v2053, %v2052
    %v2121 = vsel %vm2094, %v2054, %v2120
    %v2122 = vsel %vm2096, %v2055, %v2121
    %v2123 = vsel %vm2098, %v2056, %v2122
    %v2124 = vsel %vm2100, %v2057, %v2123
    %v2125 = vsel %vm2102, %v2058, %v2124
    %v2126 = vsel %vm2104, %v2059, %v2125
    %v2127 = vsel %vm2092, %v2061, %v2060
    %v2128 = vsel %vm2094, %v2062, %v2127
    %v2129 = vsel %vm2096, %v2063, %v2128
    %v2130 = vsel %vm2098, %v2064, %v2129
    %v2131 = vsel %vm2100, %v2065, %v2130
    %v2132 = vsel %vm2102, %v2066, %v2131
    %v2133 = vsel %vm2104, %v2067, %v2132
    %v2134 = vsel %vm2092, %v2069, %v2068
    %v2135 = vsel %vm2094, %v2070, %v2134
    %v2136 = vsel %vm2096, %v2071, %v2135
    %v2137 = vsel %vm2098, %v2072, %v2136
    %v2138 = vsel %vm2100, %v2073, %v2137
    %v2139 = vsel %vm2102, %v2074, %v2138
    %v2140 = vsel %vm2104, %v2075, %v2139
    %v2141 = vsel %vm2092, %v2077, %v2076
    %v2142 = vsel %vm2094, %v2078, %v2141
    %v2143 = vsel %vm2096, %v2079, %v2142
    %v2144 = vsel %vm2098, %v2080, %v2143
    %v2145 = vsel %vm2100, %v2081, %v2144
    %v2146 = vsel %vm2102, %v2082, %v2145
    %v2147 = vsel %vm2104, %v2083, %v2146
    %v2148 = vsel %vm2092, %v2085, %v2084
    %v2149 = vsel %vm2094, %v2086, %v2148
    %v2150 = vsel %vm2096, %v2087, %v2149
    %v2151 = vsel %vm2098, %v2088, %v2150
    %v2152 = vsel %vm2100, %v2089, %v2151
    %v2153 = vsel %vm2102, %v2090, %v2152
    %v2154 = vsel %vm2104, %v2091, %v2153
    %v2171 = vperm.slane %v1876, 0
    %v2172 = vperm.slane %v1888, 0
    %v2173 = vperm.slane %v1900, 0
    %v2174 = vperm.slane %v1912, 0
    %v2175 = vperm.slane %v1924, 0
    %v2176 = vperm.slane %v1936, 0
    %v2177 = vperm.slane %v1948, 0
    %v2178 = vperm.slane %v1960, 0
    %v2179 = vsel %vm2092, %v2030, %v2029
    %v2180 = vsel %vm2094, %v2031, %v2179
    %v2181 = vsel %vm2096, %v2032, %v2180
    %v2182 = vsel %vm2098, %v2033, %v2181
    %v2183 = vsel %vm2100, %v2034, %v2182
    %v2184 = vsel %vm2102, %v2035, %v2183
    %v2185 = vsel %vm2104, %v2171, %v2184
    %v2186 = vsel %vm2092, %v2038, %v2037
    %v2187 = vsel %vm2094, %v2039, %v2186
    %v2188 = vsel %vm2096, %v2040, %v2187
    %v2189 = vsel %vm2098, %v2041, %v2188
    %v2190 = vsel %vm2100, %v2042, %v2189
    %v2191 = vsel %vm2102, %v2043, %v2190
    %v2192 = vsel %vm2104, %v2172, %v2191
    %v2193 = vsel %vm2092, %v2046, %v2045
    %v2194 = vsel %vm2094, %v2047, %v2193
    %v2195 = vsel %vm2096, %v2048, %v2194
    %v2196 = vsel %vm2098, %v2049, %v2195
    %v2197 = vsel %vm2100, %v2050, %v2196
    %v2198 = vsel %vm2102, %v2051, %v2197
    %v2199 = vsel %vm2104, %v2173, %v2198
    %v2200 = vsel %vm2092, %v2054, %v2053
    %v2201 = vsel %vm2094, %v2055, %v2200
    %v2202 = vsel %vm2096, %v2056, %v2201
    %v2203 = vsel %vm2098, %v2057, %v2202
    %v2204 = vsel %vm2100, %v2058, %v2203
    %v2205 = vsel %vm2102, %v2059, %v2204
    %v2206 = vsel %vm2104, %v2174, %v2205
    %v2207 = vsel %vm2092, %v2062, %v2061
    %v2208 = vsel %vm2094, %v2063, %v2207
    %v2209 = vsel %vm2096, %v2064, %v2208
    %v2210 = vsel %vm2098, %v2065, %v2209
    %v2211 = vsel %vm2100, %v2066, %v2210
    %v2212 = vsel %vm2102, %v2067, %v2211
    %v2213 = vsel %vm2104, %v2175, %v2212
    %v2214 = vsel %vm2092, %v2070, %v2069
    %v2215 = vsel %vm2094, %v2071, %v2214
    %v2216 = vsel %vm2096, %v2072, %v2215
    %v2217 = vsel %vm2098, %v2073, %v2216
    %v2218 = vsel %vm2100, %v2074, %v2217
    %v2219 = vsel %vm2102, %v2075, %v2218
    %v2220 = vsel %vm2104, %v2176, %v2219
    %v2221 = vsel %vm2092, %v2078, %v2077
    %v2222 = vsel %vm2094, %v2079, %v2221
    %v2223 = vsel %vm2096, %v2080, %v2222
    %v2224 = vsel %vm2098, %v2081, %v2223
    %v2225 = vsel %vm2100, %v2082, %v2224
    %v2226 = vsel %vm2102, %v2083, %v2225
    %v2227 = vsel %vm2104, %v2177, %v2226
    %v2228 = vsel %vm2092, %v2086, %v2085
    %v2229 = vsel %vm2094, %v2087, %v2228
    %v2230 = vsel %vm2096, %v2088, %v2229
    %v2231 = vsel %vm2098, %v2089, %v2230
    %v2232 = vsel %vm2100, %v2090, %v2231
    %v2233 = vsel %vm2102, %v2091, %v2232
    %v2234 = vsel %vm2104, %v2178, %v2233
    %v2251 = vperm.slane %v1877, 0
    %v2252 = vperm.slane %v1889, 0
    %v2253 = vperm.slane %v1901, 0
    %v2254 = vperm.slane %v1913, 0
    %v2255 = vperm.slane %v1925, 0
    %v2256 = vperm.slane %v1937, 0
    %v2257 = vperm.slane %v1949, 0
    %v2258 = vperm.slane %v1961, 0
    %v2259 = vsel %vm2092, %v2031, %v2030
    %v2260 = vsel %vm2094, %v2032, %v2259
    %v2261 = vsel %vm2096, %v2033, %v2260
    %v2262 = vsel %vm2098, %v2034, %v2261
    %v2263 = vsel %vm2100, %v2035, %v2262
    %v2264 = vsel %vm2102, %v2171, %v2263
    %v2265 = vsel %vm2104, %v2251, %v2264
    %v2266 = vsel %vm2092, %v2039, %v2038
    %v2267 = vsel %vm2094, %v2040, %v2266
    %v2268 = vsel %vm2096, %v2041, %v2267
    %v2269 = vsel %vm2098, %v2042, %v2268
    %v2270 = vsel %vm2100, %v2043, %v2269
    %v2271 = vsel %vm2102, %v2172, %v2270
    %v2272 = vsel %vm2104, %v2252, %v2271
    %v2273 = vsel %vm2092, %v2047, %v2046
    %v2274 = vsel %vm2094, %v2048, %v2273
    %v2275 = vsel %vm2096, %v2049, %v2274
    %v2276 = vsel %vm2098, %v2050, %v2275
    %v2277 = vsel %vm2100, %v2051, %v2276
    %v2278 = vsel %vm2102, %v2173, %v2277
    %v2279 = vsel %vm2104, %v2253, %v2278
    %v2280 = vsel %vm2092, %v2055, %v2054
    %v2281 = vsel %vm2094, %v2056, %v2280
    %v2282 = vsel %vm2096, %v2057, %v2281
    %v2283 = vsel %vm2098, %v2058, %v2282
    %v2284 = vsel %vm2100, %v2059, %v2283
    %v2285 = vsel %vm2102, %v2174, %v2284
    %v2286 = vsel %vm2104, %v2254, %v2285
    %v2287 = vsel %vm2092, %v2063, %v2062
    %v2288 = vsel %vm2094, %v2064, %v2287
    %v2289 = vsel %vm2096, %v2065, %v2288
    %v2290 = vsel %vm2098, %v2066, %v2289
    %v2291 = vsel %vm2100, %v2067, %v2290
    %v2292 = vsel %vm2102, %v2175, %v2291
    %v2293 = vsel %vm2104, %v2255, %v2292
    %v2294 = vsel %vm2092, %v2071, %v2070
    %v2295 = vsel %vm2094, %v2072, %v2294
    %v2296 = vsel %vm2096, %v2073, %v2295
    %v2297 = vsel %vm2098, %v2074, %v2296
    %v2298 = vsel %vm2100, %v2075, %v2297
    %v2299 = vsel %vm2102, %v2176, %v2298
    %v2300 = vsel %vm2104, %v2256, %v2299
    %v2301 = vsel %vm2092, %v2079, %v2078
    %v2302 = vsel %vm2094, %v2080, %v2301
    %v2303 = vsel %vm2096, %v2081, %v2302
    %v2304 = vsel %vm2098, %v2082, %v2303
    %v2305 = vsel %vm2100, %v2083, %v2304
    %v2306 = vsel %vm2102, %v2177, %v2305
    %v2307 = vsel %vm2104, %v2257, %v2306
    %v2308 = vsel %vm2092, %v2087, %v2086
    %v2309 = vsel %vm2094, %v2088, %v2308
    %v2310 = vsel %vm2096, %v2089, %v2309
    %v2311 = vsel %vm2098, %v2090, %v2310
    %v2312 = vsel %vm2100, %v2091, %v2311
    %v2313 = vsel %vm2102, %v2178, %v2312
    %v2314 = vsel %vm2104, %v2258, %v2313
    %v2331 = vperm.slane %v1878, 0
    %v2332 = vperm.slane %v1890, 0
    %v2333 = vperm.slane %v1902, 0
    %v2334 = vperm.slane %v1914, 0
    %v2335 = vperm.slane %v1926, 0
    %v2336 = vperm.slane %v1938, 0
    %v2337 = vperm.slane %v1950, 0
    %v2338 = vperm.slane %v1962, 0
    %v2339 = vsel %vm2092, %v2032, %v2031
    %v2340 = vsel %vm2094, %v2033, %v2339
    %v2341 = vsel %vm2096, %v2034, %v2340
    %v2342 = vsel %vm2098, %v2035, %v2341
    %v2343 = vsel %vm2100, %v2171, %v2342
    %v2344 = vsel %vm2102, %v2251, %v2343
    %v2345 = vsel %vm2104, %v2331, %v2344
    %v2346 = vsel %vm2092, %v2040, %v2039
    %v2347 = vsel %vm2094, %v2041, %v2346
    %v2348 = vsel %vm2096, %v2042, %v2347
    %v2349 = vsel %vm2098, %v2043, %v2348
    %v2350 = vsel %vm2100, %v2172, %v2349
    %v2351 = vsel %vm2102, %v2252, %v2350
    %v2352 = vsel %vm2104, %v2332, %v2351
    %v2353 = vsel %vm2092, %v2048, %v2047
    %v2354 = vsel %vm2094, %v2049, %v2353
    %v2355 = vsel %vm2096, %v2050, %v2354
    %v2356 = vsel %vm2098, %v2051, %v2355
    %v2357 = vsel %vm2100, %v2173, %v2356
    %v2358 = vsel %vm2102, %v2253, %v2357
    %v2359 = vsel %vm2104, %v2333, %v2358
    %v2360 = vsel %vm2092, %v2056, %v2055
    %v2361 = vsel %vm2094, %v2057, %v2360
    %v2362 = vsel %vm2096, %v2058, %v2361
    %v2363 = vsel %vm2098, %v2059, %v2362
    %v2364 = vsel %vm2100, %v2174, %v2363
    %v2365 = vsel %vm2102, %v2254, %v2364
    %v2366 = vsel %vm2104, %v2334, %v2365
    %v2367 = vsel %vm2092, %v2064, %v2063
    %v2368 = vsel %vm2094, %v2065, %v2367
    %v2369 = vsel %vm2096, %v2066, %v2368
    %v2370 = vsel %vm2098, %v2067, %v2369
    %v2371 = vsel %vm2100, %v2175, %v2370
    %v2372 = vsel %vm2102, %v2255, %v2371
    %v2373 = vsel %vm2104, %v2335, %v2372
    %v2374 = vsel %vm2092, %v2072, %v2071
    %v2375 = vsel %vm2094, %v2073, %v2374
    %v2376 = vsel %vm2096, %v2074, %v2375
    %v2377 = vsel %vm2098, %v2075, %v2376
    %v2378 = vsel %vm2100, %v2176, %v2377
    %v2379 = vsel %vm2102, %v2256, %v2378
    %v2380 = vsel %vm2104, %v2336, %v2379
    %v2381 = vsel %vm2092, %v2080, %v2079
    %v2382 = vsel %vm2094, %v2081, %v2381
    %v2383 = vsel %vm2096, %v2082, %v2382
    %v2384 = vsel %vm2098, %v2083, %v2383
    %v2385 = vsel %vm2100, %v2177, %v2384
    %v2386 = vsel %vm2102, %v2257, %v2385
    %v2387 = vsel %vm2104, %v2337, %v2386
    %v2388 = vsel %vm2092, %v2088, %v2087
    %v2389 = vsel %vm2094, %v2089, %v2388
    %v2390 = vsel %vm2096, %v2090, %v2389
    %v2391 = vsel %vm2098, %v2091, %v2390
    %v2392 = vsel %vm2100, %v2178, %v2391
    %v2393 = vsel %vm2102, %v2258, %v2392
    %v2394 = vsel %vm2104, %v2338, %v2393
    %v2411 = vperm.slane %v1879, 0
    %v2412 = vperm.slane %v1891, 0
    %v2413 = vperm.slane %v1903, 0
    %v2414 = vperm.slane %v1915, 0
    %v2415 = vperm.slane %v1927, 0
    %v2416 = vperm.slane %v1939, 0
    %v2417 = vperm.slane %v1951, 0
    %v2418 = vperm.slane %v1963, 0
    %v2419 = vsel %vm2092, %v2033, %v2032
    %v2420 = vsel %vm2094, %v2034, %v2419
    %v2421 = vsel %vm2096, %v2035, %v2420
    %v2422 = vsel %vm2098, %v2171, %v2421
    %v2423 = vsel %vm2100, %v2251, %v2422
    %v2424 = vsel %vm2102, %v2331, %v2423
    %v2425 = vsel %vm2104, %v2411, %v2424
    %v2426 = vsel %vm2092, %v2041, %v2040
    %v2427 = vsel %vm2094, %v2042, %v2426
    %v2428 = vsel %vm2096, %v2043, %v2427
    %v2429 = vsel %vm2098, %v2172, %v2428
    %v2430 = vsel %vm2100, %v2252, %v2429
    %v2431 = vsel %vm2102, %v2332, %v2430
    %v2432 = vsel %vm2104, %v2412, %v2431
    %v2433 = vsel %vm2092, %v2049, %v2048
    %v2434 = vsel %vm2094, %v2050, %v2433
    %v2435 = vsel %vm2096, %v2051, %v2434
    %v2436 = vsel %vm2098, %v2173, %v2435
    %v2437 = vsel %vm2100, %v2253, %v2436
    %v2438 = vsel %vm2102, %v2333, %v2437
    %v2439 = vsel %vm2104, %v2413, %v2438
    %v2440 = vsel %vm2092, %v2057, %v2056
    %v2441 = vsel %vm2094, %v2058, %v2440
    %v2442 = vsel %vm2096, %v2059, %v2441
    %v2443 = vsel %vm2098, %v2174, %v2442
    %v2444 = vsel %vm2100, %v2254, %v2443
    %v2445 = vsel %vm2102, %v2334, %v2444
    %v2446 = vsel %vm2104, %v2414, %v2445
    %v2447 = vsel %vm2092, %v2065, %v2064
    %v2448 = vsel %vm2094, %v2066, %v2447
    %v2449 = vsel %vm2096, %v2067, %v2448
    %v2450 = vsel %vm2098, %v2175, %v2449
    %v2451 = vsel %vm2100, %v2255, %v2450
    %v2452 = vsel %vm2102, %v2335, %v2451
    %v2453 = vsel %vm2104, %v2415, %v2452
    %v2454 = vsel %vm2092, %v2073, %v2072
    %v2455 = vsel %vm2094, %v2074, %v2454
    %v2456 = vsel %vm2096, %v2075, %v2455
    %v2457 = vsel %vm2098, %v2176, %v2456
    %v2458 = vsel %vm2100, %v2256, %v2457
    %v2459 = vsel %vm2102, %v2336, %v2458
    %v2460 = vsel %vm2104, %v2416, %v2459
    %v2461 = vsel %vm2092, %v2081, %v2080
    %v2462 = vsel %vm2094, %v2082, %v2461
    %v2463 = vsel %vm2096, %v2083, %v2462
    %v2464 = vsel %vm2098, %v2177, %v2463
    %v2465 = vsel %vm2100, %v2257, %v2464
    %v2466 = vsel %vm2102, %v2337, %v2465
    %v2467 = vsel %vm2104, %v2417, %v2466
    %v2468 = vsel %vm2092, %v2089, %v2088
    %v2469 = vsel %vm2094, %v2090, %v2468
    %v2470 = vsel %vm2096, %v2091, %v2469
    %v2471 = vsel %vm2098, %v2178, %v2470
    %v2472 = vsel %vm2100, %v2258, %v2471
    %v2473 = vsel %vm2102, %v2338, %v2472
    %v2474 = vsel %vm2104, %v2418, %v2473
    %v2483 = vpack.c.bf16 %v2112, %v2105
    %v2484 = vpack.c.bf16 %v2192, %v2185
    %v2485 = vpack.c.bf16 %v2272, %v2265
    %v2486 = vpack.c.bf16 %v2352, %v2345
    %v2487 = vpack.c.bf16 %v2432, %v2425
    %v2488 = vpack.c.bf16 %v2126, %v2119
    %v2489 = vpack.c.bf16 %v2206, %v2199
    %v2490 = vpack.c.bf16 %v2286, %v2279
    %v2491 = vpack.c.bf16 %v2366, %v2359
    %v2492 = vpack.c.bf16 %v2446, %v2439
    %v2493 = vpack.c.bf16 %v2140, %v2133
    %v2494 = vpack.c.bf16 %v2220, %v2213
    %v2495 = vpack.c.bf16 %v2300, %v2293
    %v2496 = vpack.c.bf16 %v2380, %v2373
    %v2497 = vpack.c.bf16 %v2460, %v2453
    %v2498 = vpack.c.bf16 %v2154, %v2147
    %v2499 = vpack.c.bf16 %v2234, %v2227
    %v2500 = vpack.c.bf16 %v2314, %v2307
    %v2501 = vpack.c.bf16 %v2394, %v2387
    %v2502 = vpack.c.bf16 %v2474, %v2467
    %v2503 = vld [vmem:[#allocation2] sm:$0xff]
    %v2504 = vld [vmem:[#allocation2 + $0x8] sm:$0xff]
    %v2505 = vld [vmem:[#allocation2 + $0x10] sm:$0xff]
    %v2506 = vld [vmem:[#allocation2 + $0x18] sm:$0xff]
    %v2507 = vld [vmem:[#allocation2 + $0x20] sm:$0xff]
    %v2508 = vld [vmem:[#allocation2 + $0x28] sm:$0xff]
    %v2509 = vld [vmem:[#allocation2 + $0x30] sm:$0xff]
    %v2510 = vld [vmem:[#allocation2 + $0x38] sm:$0xff]
    %v2511 = vld [vmem:[#allocation2 + $0x40] sm:$0xff]
    %v2512 = vld [vmem:[#allocation2 + $0x48] sm:$0xff]
    %v2513 = vld [vmem:[#allocation2 + $0x50] sm:$0xff]
    %v2514 = vld [vmem:[#allocation2 + $0x58] sm:$0xff]
    %v2515 = vld [vmem:[#allocation2 + $0x60] sm:$0xff]
    %v2516 = vld [vmem:[#allocation2 + $0x68] sm:$0xff]
    %v2517 = vld [vmem:[#allocation2 + $0x70] sm:$0xff]
    %v2518 = vld [vmem:[#allocation2 + $0x78] sm:$0xff]
    %v2519 = vld [vmem:[#allocation2 + $0x80] sm:$0xff]
    %v2520 = vld [vmem:[#allocation2 + $0x88] sm:$0xff]
    %v2521 = vld [vmem:[#allocation2 + $0x90] sm:$0xff]
    %v2522 = vld [vmem:[#allocation2 + $0x98] sm:$0xff]
    %v2523 = vld [vmem:[#allocation2 + $0xa0] sm:$0xff]
    %v2524 = vld [vmem:[#allocation2 + $0xa8] sm:$0xff]
    %v2525 = vld [vmem:[#allocation2 + $0xb0] sm:$0xff]
    %v2526 = vld [vmem:[#allocation2 + $0xb8] sm:$0xff]
    %v2527 = vld [vmem:[#allocation2 + $0xc0] sm:$0xff]
    %v2528 = vld [vmem:[#allocation2 + $0xc8] sm:$0xff]
    %v2529 = vld [vmem:[#allocation2 + $0xd0] sm:$0xff]
    %v2530 = vld [vmem:[#allocation2 + $0xd8] sm:$0xff]
    %v2531 = vld [vmem:[#allocation2 + $0xe0] sm:$0xff]
    %v2532 = vld [vmem:[#allocation2 + $0xe8] sm:$0xff]
    %v2533 = vld [vmem:[#allocation2 + $0xf0] sm:$0xff]
    %v2534 = vld [vmem:[#allocation2 + $0xf8] sm:$0xff]
    %v2535 = vld [vmem:[#allocation2 + $0x100] sm:$0xff]
    %v2536 = vld [vmem:[#allocation2 + $0x108] sm:$0xff]
    %v2537 = vld [vmem:[#allocation2 + $0x110] sm:$0xff]
    %v2538 = vld [vmem:[#allocation2 + $0x118] sm:$0xff]
    %v2539 = vld [vmem:[#allocation2 + $0x120] sm:$0xff]
    %v2540 = vld [vmem:[#allocation2 + $0x128] sm:$0xff]
    %v2541 = vld [vmem:[#allocation2 + $0x130] sm:$0xff]
    %v2542 = vld [vmem:[#allocation2 + $0x138] sm:$0xff]
    %v2543 = vld [vmem:[#allocation2 + $0x140] sm:$0xff]
    %v2544 = vld [vmem:[#allocation2 + $0x148] sm:$0xff]
    %v2545 = vld [vmem:[#allocation2 + $0x150] sm:$0xff]
    %v2546 = vld [vmem:[#allocation2 + $0x158] sm:$0xff]
    %v2547 = vld [vmem:[#allocation2 + $0x160] sm:$0xff]
    %v2548 = vld [vmem:[#allocation2 + $0x168] sm:$0xff]
    %v2549 = vld [vmem:[#allocation2 + $0x170] sm:$0xff]
    %v2550 = vld [vmem:[#allocation2 + $0x178] sm:$0xff]
    %v2551 = vld [vmem:[#allocation2 + $0x180] sm:$0xff]
    %v2552 = vld [vmem:[#allocation2 + $0x188] sm:$0xff]
    %v2553 = vld [vmem:[#allocation2 + $0x190] sm:$0xff]
    %v2554 = vld [vmem:[#allocation2 + $0x198] sm:$0xff]
    %v2555 = vld [vmem:[#allocation2 + $0x1a0] sm:$0xff]
    %v2556 = vld [vmem:[#allocation2 + $0x1a8] sm:$0xff]
    %v2557 = vld [vmem:[#allocation2 + $0x1b0] sm:$0xff]
    %v2558 = vld [vmem:[#allocation2 + $0x1b8] sm:$0xff]
    %v2559 = vld [vmem:[#allocation2 + $0x1c0] sm:$0xff]
    %v2560 = vld [vmem:[#allocation2 + $0x1c8] sm:$0xff]
    %v2561 = vld [vmem:[#allocation2 + $0x1d0] sm:$0xff]
    %v2562 = vld [vmem:[#allocation2 + $0x1d8] sm:$0xff]
    %v2563 = vld [vmem:[#allocation2 + $0x1e0] sm:$0xff]
    %v2564 = vld [vmem:[#allocation2 + $0x1e8] sm:$0xff]
    %v2565 = vld [vmem:[#allocation2 + $0x1f0] sm:$0xff]
    %v2566 = vld [vmem:[#allocation2 + $0x1f8] sm:$0xff]
    %v2567 = vld [vmem:[#allocation2 + $0x200] sm:$0xff]
    %v2568 = vld [vmem:[#allocation2 + $0x208] sm:$0xff]
    %v2569 = vld [vmem:[#allocation2 + $0x210] sm:$0xff]
    %v2570 = vld [vmem:[#allocation2 + $0x218] sm:$0xff]
    %v2571 = vld [vmem:[#allocation2 + $0x220] sm:$0xff]
    %v2572 = vld [vmem:[#allocation2 + $0x228] sm:$0xff]
    %v2573 = vld [vmem:[#allocation2 + $0x230] sm:$0xff]
    %v2574 = vld [vmem:[#allocation2 + $0x238] sm:$0xff]
    %v2575 = vld [vmem:[#allocation2 + $0x240] sm:$0xff]
    %v2576 = vld [vmem:[#allocation2 + $0x248] sm:$0xff]
    %v2577 = vld [vmem:[#allocation2 + $0x250] sm:$0xff]
    %v2578 = vld [vmem:[#allocation2 + $0x258] sm:$0xff]
    %v2579 = vld [vmem:[#allocation2 + $0x260] sm:$0xff]
    %v2580 = vld [vmem:[#allocation2 + $0x268] sm:$0xff]
    %v2581 = vld [vmem:[#allocation2 + $0x270] sm:$0xff]
    %v2582 = vld [vmem:[#allocation2 + $0x278] sm:$0xff]
    %v2663 = vunpack.c.l.b16 %v2503
    %v2664 = vunpack.c.h.b16 %v2503
    %v2665 = vunpack.c.l.b16 %v2504
    %v2666 = vunpack.c.h.b16 %v2504
    %v2667 = vunpack.c.l.b16 %v2505
    %v2668 = vunpack.c.h.b16 %v2505
    %v2669 = vunpack.c.l.b16 %v2506
    %v2670 = vunpack.c.h.b16 %v2506
    %v2671 = vunpack.c.l.b16 %v2507
    %v2672 = vunpack.c.h.b16 %v2507
    %v2673 = vunpack.c.l.b16 %v2508
    %v2674 = vunpack.c.h.b16 %v2508
    %v2675 = vunpack.c.l.b16 %v2509
    %v2676 = vunpack.c.h.b16 %v2509
    %v2677 = vunpack.c.l.b16 %v2510
    %v2678 = vunpack.c.h.b16 %v2510
    %v2679 = vunpack.c.l.b16 %v2511
    %v2680 = vunpack.c.h.b16 %v2511
    %v2681 = vunpack.c.l.b16 %v2512
    %v2682 = vunpack.c.h.b16 %v2512
    %v2683 = vunpack.c.l.b16 %v2513
    %v2684 = vunpack.c.h.b16 %v2513
    %v2685 = vunpack.c.l.b16 %v2514
    %v2686 = vunpack.c.h.b16 %v2514
    %v2687 = vunpack.c.l.b16 %v2515
    %v2688 = vunpack.c.h.b16 %v2515
    %v2689 = vunpack.c.l.b16 %v2516
    %v2690 = vunpack.c.h.b16 %v2516
    %v2691 = vunpack.c.l.b16 %v2517
    %v2692 = vunpack.c.h.b16 %v2517
    %v2693 = vunpack.c.l.b16 %v2518
    %v2694 = vunpack.c.h.b16 %v2518
    %v2695 = vunpack.c.l.b16 %v2519
    %v2696 = vunpack.c.h.b16 %v2519
    %v2697 = vunpack.c.l.b16 %v2520
    %v2698 = vunpack.c.h.b16 %v2520
    %v2699 = vunpack.c.l.b16 %v2521
    %v2700 = vunpack.c.h.b16 %v2521
    %v2701 = vunpack.c.l.b16 %v2522
    %v2702 = vunpack.c.h.b16 %v2522
    %v2703 = vunpack.c.l.b16 %v2523
    %v2704 = vunpack.c.h.b16 %v2523
    %v2705 = vunpack.c.l.b16 %v2524
    %v2706 = vunpack.c.h.b16 %v2524
    %v2707 = vunpack.c.l.b16 %v2525
    %v2708 = vunpack.c.h.b16 %v2525
    %v2709 = vunpack.c.l.b16 %v2526
    %v2710 = vunpack.c.h.b16 %v2526
    %v2711 = vunpack.c.l.b16 %v2527
    %v2712 = vunpack.c.h.b16 %v2527
    %v2713 = vunpack.c.l.b16 %v2528
    %v2714 = vunpack.c.h.b16 %v2528
    %v2715 = vunpack.c.l.b16 %v2529
    %v2716 = vunpack.c.h.b16 %v2529
    %v2717 = vunpack.c.l.b16 %v2530
    %v2718 = vunpack.c.h.b16 %v2530
    %v2719 = vunpack.c.l.b16 %v2531
    %v2720 = vunpack.c.h.b16 %v2531
    %v2721 = vunpack.c.l.b16 %v2532
    %v2722 = vunpack.c.h.b16 %v2532
    %v2723 = vunpack.c.l.b16 %v2533
    %v2724 = vunpack.c.h.b16 %v2533
    %v2725 = vunpack.c.l.b16 %v2534
    %v2726 = vunpack.c.h.b16 %v2534
    %v2727 = vunpack.c.l.b16 %v2535
    %v2728 = vunpack.c.h.b16 %v2535
    %v2729 = vunpack.c.l.b16 %v2536
    %v2730 = vunpack.c.h.b16 %v2536
    %v2731 = vunpack.c.l.b16 %v2537
    %v2732 = vunpack.c.h.b16 %v2537
    %v2733 = vunpack.c.l.b16 %v2538
    %v2734 = vunpack.c.h.b16 %v2538
    %v2735 = vunpack.c.l.b16 %v2539
    %v2736 = vunpack.c.h.b16 %v2539
    %v2737 = vunpack.c.l.b16 %v2540
    %v2738 = vunpack.c.h.b16 %v2540
    %v2739 = vunpack.c.l.b16 %v2541
    %v2740 = vunpack.c.h.b16 %v2541
    %v2741 = vunpack.c.l.b16 %v2542
    %v2742 = vunpack.c.h.b16 %v2542
    %v2743 = vunpack.c.l.b16 %v2543
    %v2744 = vunpack.c.h.b16 %v2543
    %v2745 = vunpack.c.l.b16 %v2544
    %v2746 = vunpack.c.h.b16 %v2544
    %v2747 = vunpack.c.l.b16 %v2545
    %v2748 = vunpack.c.h.b16 %v2545
    %v2749 = vunpack.c.l.b16 %v2546
    %v2750 = vunpack.c.h.b16 %v2546
    %v2751 = vunpack.c.l.b16 %v2547
    %v2752 = vunpack.c.h.b16 %v2547
    %v2753 = vunpack.c.l.b16 %v2548
    %v2754 = vunpack.c.h.b16 %v2548
    %v2755 = vunpack.c.l.b16 %v2549
    %v2756 = vunpack.c.h.b16 %v2549
    %v2757 = vunpack.c.l.b16 %v2550
    %v2758 = vunpack.c.h.b16 %v2550
    %v2759 = vunpack.c.l.b16 %v2551
    %v2760 = vunpack.c.h.b16 %v2551
    %v2761 = vunpack.c.l.b16 %v2552
    %v2762 = vunpack.c.h.b16 %v2552
    %v2763 = vunpack.c.l.b16 %v2553
    %v2764 = vunpack.c.h.b16 %v2553
    %v2765 = vunpack.c.l.b16 %v2554
    %v2766 = vunpack.c.h.b16 %v2554
    %v2767 = vunpack.c.l.b16 %v2555
    %v2768 = vunpack.c.h.b16 %v2555
    %v2769 = vunpack.c.l.b16 %v2556
    %v2770 = vunpack.c.h.b16 %v2556
    %v2771 = vunpack.c.l.b16 %v2557
    %v2772 = vunpack.c.h.b16 %v2557
    %v2773 = vunpack.c.l.b16 %v2558
    %v2774 = vunpack.c.h.b16 %v2558
    %v2775 = vunpack.c.l.b16 %v2559
    %v2776 = vunpack.c.h.b16 %v2559
    %v2777 = vunpack.c.l.b16 %v2560
    %v2778 = vunpack.c.h.b16 %v2560
    %v2779 = vunpack.c.l.b16 %v2561
    %v2780 = vunpack.c.h.b16 %v2561
    %v2781 = vunpack.c.l.b16 %v2562
    %v2782 = vunpack.c.h.b16 %v2562
    %v2783 = vunpack.c.l.b16 %v2563
    %v2784 = vunpack.c.h.b16 %v2563
    %v2785 = vunpack.c.l.b16 %v2564
    %v2786 = vunpack.c.h.b16 %v2564
    %v2787 = vunpack.c.l.b16 %v2565
    %v2788 = vunpack.c.h.b16 %v2565
    %v2789 = vunpack.c.l.b16 %v2566
    %v2790 = vunpack.c.h.b16 %v2566
    %v2791 = vunpack.c.l.b16 %v2567
    %v2792 = vunpack.c.h.b16 %v2567
    %v2793 = vunpack.c.l.b16 %v2568
    %v2794 = vunpack.c.h.b16 %v2568
    %v2795 = vunpack.c.l.b16 %v2569
    %v2796 = vunpack.c.h.b16 %v2569
    %v2797 = vunpack.c.l.b16 %v2570
    %v2798 = vunpack.c.h.b16 %v2570
    %v2799 = vunpack.c.l.b16 %v2571
    %v2800 = vunpack.c.h.b16 %v2571
    %v2801 = vunpack.c.l.b16 %v2572
    %v2802 = vunpack.c.h.b16 %v2572
    %v2803 = vunpack.c.l.b16 %v2573
    %v2804 = vunpack.c.h.b16 %v2573
    %v2805 = vunpack.c.l.b16 %v2574
    %v2806 = vunpack.c.h.b16 %v2574
    %v2807 = vunpack.c.l.b16 %v2575
    %v2808 = vunpack.c.h.b16 %v2575
    %v2809 = vunpack.c.l.b16 %v2576
    %v2810 = vunpack.c.h.b16 %v2576
    %v2811 = vunpack.c.l.b16 %v2577
    %v2812 = vunpack.c.h.b16 %v2577
    %v2813 = vunpack.c.l.b16 %v2578
    %v2814 = vunpack.c.h.b16 %v2578
    %v2815 = vunpack.c.l.b16 %v2579
    %v2816 = vunpack.c.h.b16 %v2579
    %v2817 = vunpack.c.l.b16 %v2580
    %v2818 = vunpack.c.h.b16 %v2580
    %v2819 = vunpack.c.l.b16 %v2581
    %v2820 = vunpack.c.h.b16 %v2581
    %v2821 = vunpack.c.l.b16 %v2582
    %v2822 = vunpack.c.h.b16 %v2582
    %v2823 = vpack.c.b16 %v2665, %v2663
    %v2824 = vpack.c.b16 %v2666, %v2664
    %v2825 = vpack.c.b16 %v2669, %v2667
    %v2826 = vpack.c.b16 %v2670, %v2668
    %v2827 = vpack.c.b16 %v2673, %v2671
    %v2828 = vpack.c.b16 %v2674, %v2672
    %v2829 = vpack.c.b16 %v2677, %v2675
    %v2830 = vpack.c.b16 %v2678, %v2676
    %v2831 = vpack.c.b16 %v2681, %v2679
    %v2832 = vpack.c.b16 %v2682, %v2680
    %v2833 = vpack.c.b16 %v2685, %v2683
    %v2834 = vpack.c.b16 %v2686, %v2684
    %v2835 = vpack.c.b16 %v2689, %v2687
    %v2836 = vpack.c.b16 %v2690, %v2688
    %v2837 = vpack.c.b16 %v2693, %v2691
    %v2838 = vpack.c.b16 %v2694, %v2692
    %v2839 = vpack.c.b16 %v2697, %v2695
    %v2840 = vpack.c.b16 %v2698, %v2696
    %v2841 = vpack.c.b16 %v2701, %v2699
    %v2842 = vpack.c.b16 %v2702, %v2700
    %v2843 = vpack.c.b16 %v2705, %v2703
    %v2844 = vpack.c.b16 %v2706, %v2704
    %v2845 = vpack.c.b16 %v2709, %v2707
    %v2846 = vpack.c.b16 %v2710, %v2708
    %v2847 = vpack.c.b16 %v2713, %v2711
    %v2848 = vpack.c.b16 %v2714, %v2712
    %v2849 = vpack.c.b16 %v2717, %v2715
    %v2850 = vpack.c.b16 %v2718, %v2716
    %v2851 = vpack.c.b16 %v2721, %v2719
    %v2852 = vpack.c.b16 %v2722, %v2720
    %v2853 = vpack.c.b16 %v2725, %v2723
    %v2854 = vpack.c.b16 %v2726, %v2724
    %v2855 = vpack.c.b16 %v2729, %v2727
    %v2856 = vpack.c.b16 %v2730, %v2728
    %v2857 = vpack.c.b16 %v2733, %v2731
    %v2858 = vpack.c.b16 %v2734, %v2732
    %v2859 = vpack.c.b16 %v2737, %v2735
    %v2860 = vpack.c.b16 %v2738, %v2736
    %v2861 = vpack.c.b16 %v2741, %v2739
    %v2862 = vpack.c.b16 %v2742, %v2740
    %v2863 = vpack.c.b16 %v2745, %v2743
    %v2864 = vpack.c.b16 %v2746, %v2744
    %v2865 = vpack.c.b16 %v2749, %v2747
    %v2866 = vpack.c.b16 %v2750, %v2748
    %v2867 = vpack.c.b16 %v2753, %v2751
    %v2868 = vpack.c.b16 %v2754, %v2752
    %v2869 = vpack.c.b16 %v2757, %v2755
    %v2870 = vpack.c.b16 %v2758, %v2756
    %v2871 = vpack.c.b16 %v2761, %v2759
    %v2872 = vpack.c.b16 %v2762, %v2760
    %v2873 = vpack.c.b16 %v2765, %v2763
    %v2874 = vpack.c.b16 %v2766, %v2764
    %v2875 = vpack.c.b16 %v2769, %v2767
    %v2876 = vpack.c.b16 %v2770, %v2768
    %v2877 = vpack.c.b16 %v2773, %v2771
    %v2878 = vpack.c.b16 %v2774, %v2772
    %v2879 = vpack.c.b16 %v2777, %v2775
    %v2880 = vpack.c.b16 %v2778, %v2776
    %v2881 = vpack.c.b16 %v2781, %v2779
    %v2882 = vpack.c.b16 %v2782, %v2780
    %v2883 = vpack.c.b16 %v2785, %v2783
    %v2884 = vpack.c.b16 %v2786, %v2784
    %v2885 = vpack.c.b16 %v2789, %v2787
    %v2886 = vpack.c.b16 %v2790, %v2788
    %v2887 = vpack.c.b16 %v2793, %v2791
    %v2888 = vpack.c.b16 %v2794, %v2792
    %v2889 = vpack.c.b16 %v2797, %v2795
    %v2890 = vpack.c.b16 %v2798, %v2796
    %v2891 = vpack.c.b16 %v2801, %v2799
    %v2892 = vpack.c.b16 %v2802, %v2800
    %v2893 = vpack.c.b16 %v2805, %v2803
    %v2894 = vpack.c.b16 %v2806, %v2804
    %v2895 = vpack.c.b16 %v2809, %v2807
    %v2896 = vpack.c.b16 %v2810, %v2808
    %v2897 = vpack.c.b16 %v2813, %v2811
    %v2898 = vpack.c.b16 %v2814, %v2812
    %v2899 = vpack.c.b16 %v2817, %v2815
    %v2900 = vpack.c.b16 %v2818, %v2816
    %v2901 = vpack.c.b16 %v2821, %v2819
    %v2902 = vpack.c.b16 %v2822, %v2820
    %2983 = vmatpush.bf16.msra.mxu0 %v2837
    %2984 = vmatpush.bf16.msra.mxu0 %v2835
    %2985 = vmatpush.bf16.msra.mxu0 %v2833
    %2986 = vmatpush.bf16.msra.mxu0 %v2831
    %2987 = vmatpush.bf16.msra.mxu0 %v2829
    %2988 = vmatpush.bf16.msra.mxu0 %v2827
    %2989 = vmatpush.bf16.msra.mxu0 %v2825
    %2990 = vmatpush.bf16.msra.mxu0 %v2823
    %2991 = vmatmul.bf16.gmra.mxu0 %v2483
    %v2992 = vpop.f32.mrf.mxu0
    %v2993 = vadd.f32 0.0, %v2992
    %v2994 = vpop.f32.mrf.mxu0
    %v2995 = vadd.f32 0.0, %v2994
    %2996 = vmatmul.bf16.gmra.mxu0 %v2488
    %v2997 = vpop.f32.mrf.mxu0
    %v2998 = vadd.f32 0.0, %v2997
    %v2999 = vpop.f32.mrf.mxu0
    %v3000 = vadd.f32 0.0, %v2999
    %3001 = vmatmul.bf16.gmra.mxu0 %v2493
    %v3002 = vpop.f32.mrf.mxu0
    %v3003 = vadd.f32 0.0, %v3002
    %v3004 = vpop.f32.mrf.mxu0
    %v3005 = vadd.f32 0.0, %v3004
    %3006 = vmatmul.bf16.gmra.mxu0 %v2498
    %v3007 = vpop.f32.mrf.mxu0
    %v3008 = vadd.f32 0.0, %v3007
    %v3009 = vpop.f32.mrf.mxu0
    %v3010 = vadd.f32 0.0, %v3009
    %3011 = vdwg.mxu0
    %3012 = vmatpush.bf16.msra.mxu0 %v2853
    %3013 = vmatpush.bf16.msra.mxu0 %v2851
    %3014 = vmatpush.bf16.msra.mxu0 %v2849
    %3015 = vmatpush.bf16.msra.mxu0 %v2847
    %3016 = vmatpush.bf16.msra.mxu0 %v2845
    %3017 = vmatpush.bf16.msra.mxu0 %v2843
    %3018 = vmatpush.bf16.msra.mxu0 %v2841
    %3019 = vmatpush.bf16.msra.mxu0 %v2839
    %3020 = vmatmul.bf16.gmra.mxu0 %v2484
    %v3021 = vpop.f32.mrf.mxu0
    %v3022 = vadd.f32 %v2993, %v3021
    %v3023 = vpop.f32.mrf.mxu0
    %v3024 = vadd.f32 %v2995, %v3023
    %3025 = vmatmul.bf16.gmra.mxu0 %v2489
    %v3026 = vpop.f32.mrf.mxu0
    %v3027 = vadd.f32 %v2998, %v3026
    %v3028 = vpop.f32.mrf.mxu0
    %v3029 = vadd.f32 %v3000, %v3028
    %3030 = vmatmul.bf16.gmra.mxu0 %v2494
    %v3031 = vpop.f32.mrf.mxu0
    %v3032 = vadd.f32 %v3003, %v3031
    %v3033 = vpop.f32.mrf.mxu0
    %v3034 = vadd.f32 %v3005, %v3033
    %3035 = vmatmul.bf16.gmra.mxu0 %v2499
    %v3036 = vpop.f32.mrf.mxu0
    %v3037 = vadd.f32 %v3008, %v3036
    %v3038 = vpop.f32.mrf.mxu0
    %v3039 = vadd.f32 %v3010, %v3038
    %3040 = vdwg.mxu0
    %3041 = vmatpush.bf16.msra.mxu0 %v2869
    %3042 = vmatpush.bf16.msra.mxu0 %v2867
    %3043 = vmatpush.bf16.msra.mxu0 %v2865
    %3044 = vmatpush.bf16.msra.mxu0 %v2863
    %3045 = vmatpush.bf16.msra.mxu0 %v2861
    %3046 = vmatpush.bf16.msra.mxu0 %v2859
    %3047 = vmatpush.bf16.msra.mxu0 %v2857
    %3048 = vmatpush.bf16.msra.mxu0 %v2855
    %3049 = vmatmul.bf16.gmra.mxu0 %v2485
    %v3050 = vpop.f32.mrf.mxu0
    %v3051 = vadd.f32 %v3022, %v3050
    %v3052 = vpop.f32.mrf.mxu0
    %v3053 = vadd.f32 %v3024, %v3052
    %3054 = vmatmul.bf16.gmra.mxu0 %v2490
    %v3055 = vpop.f32.mrf.mxu0
    %v3056 = vadd.f32 %v3027, %v3055
    %v3057 = vpop.f32.mrf.mxu0
    %v3058 = vadd.f32 %v3029, %v3057
    %3059 = vmatmul.bf16.gmra.mxu0 %v2495
    %v3060 = vpop.f32.mrf.mxu0
    %v3061 = vadd.f32 %v3032, %v3060
    %v3062 = vpop.f32.mrf.mxu0
    %v3063 = vadd.f32 %v3034, %v3062
    %3064 = vmatmul.bf16.gmra.mxu0 %v2500
    %v3065 = vpop.f32.mrf.mxu0
    %v3066 = vadd.f32 %v3037, %v3065
    %v3067 = vpop.f32.mrf.mxu0
    %v3068 = vadd.f32 %v3039, %v3067
    %3069 = vdwg.mxu0
    %3070 = vmatpush.bf16.msra.mxu0 %v2885
    %3071 = vmatpush.bf16.msra.mxu0 %v2883
    %3072 = vmatpush.bf16.msra.mxu0 %v2881
    %3073 = vmatpush.bf16.msra.mxu0 %v2879
    %3074 = vmatpush.bf16.msra.mxu0 %v2877
    %3075 = vmatpush.bf16.msra.mxu0 %v2875
    %3076 = vmatpush.bf16.msra.mxu0 %v2873
    %3077 = vmatpush.bf16.msra.mxu0 %v2871
    %3078 = vmatmul.bf16.gmra.mxu0 %v2486
    %v3079 = vpop.f32.mrf.mxu0
    %v3080 = vadd.f32 %v3051, %v3079
    %v3081 = vpop.f32.mrf.mxu0
    %v3082 = vadd.f32 %v3053, %v3081
    %3083 = vmatmul.bf16.gmra.mxu0 %v2491
    %v3084 = vpop.f32.mrf.mxu0
    %v3085 = vadd.f32 %v3056, %v3084
    %v3086 = vpop.f32.mrf.mxu0
    %v3087 = vadd.f32 %v3058, %v3086
    %3088 = vmatmul.bf16.gmra.mxu0 %v2496
    %v3089 = vpop.f32.mrf.mxu0
    %v3090 = vadd.f32 %v3061, %v3089
    %v3091 = vpop.f32.mrf.mxu0
    %v3092 = vadd.f32 %v3063, %v3091
    %3093 = vmatmul.bf16.gmra.mxu0 %v2501
    %v3094 = vpop.f32.mrf.mxu0
    %v3095 = vadd.f32 %v3066, %v3094
    %v3096 = vpop.f32.mrf.mxu0
    %v3097 = vadd.f32 %v3068, %v3096
    %3098 = vdwg.mxu0
    %3099 = vmatpush.bf16.msra.mxu0 %v2901
    %3100 = vmatpush.bf16.msra.mxu0 %v2899
    %3101 = vmatpush.bf16.msra.mxu0 %v2897
    %3102 = vmatpush.bf16.msra.mxu0 %v2895
    %3103 = vmatpush.bf16.msra.mxu0 %v2893
    %3104 = vmatpush.bf16.msra.mxu0 %v2891
    %3105 = vmatpush.bf16.msra.mxu0 %v2889
    %3106 = vmatpush.bf16.msra.mxu0 %v2887
    %3107 = vmatmul.bf16.gmra.mxu0 %v2487
    %v3108 = vpop.f32.mrf.mxu0
    %v3109 = vadd.f32 %v3080, %v3108
    %v3110 = vpop.f32.mrf.mxu0
    %v3111 = vadd.f32 %v3082, %v3110
    %3112 = vmatmul.bf16.gmra.mxu0 %v2492
    %v3113 = vpop.f32.mrf.mxu0
    %v3114 = vadd.f32 %v3085, %v3113
    %v3115 = vpop.f32.mrf.mxu0
    %v3116 = vadd.f32 %v3087, %v3115
    %3117 = vmatmul.bf16.gmra.mxu0 %v2497
    %v3118 = vpop.f32.mrf.mxu0
    %v3119 = vadd.f32 %v3090, %v3118
    %v3120 = vpop.f32.mrf.mxu0
    %v3121 = vadd.f32 %v3092, %v3120
    %3122 = vmatmul.bf16.gmra.mxu0 %v2502
    %v3123 = vpop.f32.mrf.mxu0
    %v3124 = vadd.f32 %v3095, %v3123
    %v3125 = vpop.f32.mrf.mxu0
    %v3126 = vadd.f32 %v3097, %v3125
    %3127 = vdwg.mxu0
    %3128 = vmatpush.bf16.msra.mxu0 %v2838
    %3129 = vmatpush.bf16.msra.mxu0 %v2836
    %3130 = vmatpush.bf16.msra.mxu0 %v2834
    %3131 = vmatpush.bf16.msra.mxu0 %v2832
    %3132 = vmatpush.bf16.msra.mxu0 %v2830
    %3133 = vmatpush.bf16.msra.mxu0 %v2828
    %3134 = vmatpush.bf16.msra.mxu0 %v2826
    %3135 = vmatpush.bf16.msra.mxu0 %v2824
    %3136 = vmatmul.bf16.gmra.mxu0 %v2483
    %v3137 = vpop.f32.mrf.mxu0
    %v3138 = vadd.f32 0.0, %v3137
    %v3139 = vpop.f32.mrf.mxu0
    %v3140 = vadd.f32 0.0, %v3139
    %3141 = vmatmul.bf16.gmra.mxu0 %v2488
    %v3142 = vpop.f32.mrf.mxu0
    %v3143 = vadd.f32 0.0, %v3142
    %v3144 = vpop.f32.mrf.mxu0
    %v3145 = vadd.f32 0.0, %v3144
    %3146 = vmatmul.bf16.gmra.mxu0 %v2493
    %v3147 = vpop.f32.mrf.mxu0
    %v3148 = vadd.f32 0.0, %v3147
    %v3149 = vpop.f32.mrf.mxu0
    %v3150 = vadd.f32 0.0, %v3149
    %3151 = vmatmul.bf16.gmra.mxu0 %v2498
    %v3152 = vpop.f32.mrf.mxu0
    %v3153 = vadd.f32 0.0, %v3152
    %v3154 = vpop.f32.mrf.mxu0
    %v3155 = vadd.f32 0.0, %v3154
    %3156 = vdwg.mxu0
    %3157 = vmatpush.bf16.msra.mxu0 %v2854
    %3158 = vmatpush.bf16.msra.mxu0 %v2852
    %3159 = vmatpush.bf16.msra.mxu0 %v2850
    %3160 = vmatpush.bf16.msra.mxu0 %v2848
    %3161 = vmatpush.bf16.msra.mxu0 %v2846
    %3162 = vmatpush.bf16.msra.mxu0 %v2844
    %3163 = vmatpush.bf16.msra.mxu0 %v2842
    %3164 = vmatpush.bf16.msra.mxu0 %v2840
    %3165 = vmatmul.bf16.gmra.mxu0 %v2484
    %v3166 = vpop.f32.mrf.mxu0
    %v3167 = vadd.f32 %v3138, %v3166
    %v3168 = vpop.f32.mrf.mxu0
    %v3169 = vadd.f32 %v3140, %v3168
    %3170 = vmatmul.bf16.gmra.mxu0 %v2489
    %v3171 = vpop.f32.mrf.mxu0
    %v3172 = vadd.f32 %v3143, %v3171
    %v3173 = vpop.f32.mrf.mxu0
    %v3174 = vadd.f32 %v3145, %v3173
    %3175 = vmatmul.bf16.gmra.mxu0 %v2494
    %v3176 = vpop.f32.mrf.mxu0
    %v3177 = vadd.f32 %v3148, %v3176
    %v3178 = vpop.f32.mrf.mxu0
    %v3179 = vadd.f32 %v3150, %v3178
    %3180 = vmatmul.bf16.gmra.mxu0 %v2499
    %v3181 = vpop.f32.mrf.mxu0
    %v3182 = vadd.f32 %v3153, %v3181
    %v3183 = vpop.f32.mrf.mxu0
    %v3184 = vadd.f32 %v3155, %v3183
    %3185 = vdwg.mxu0
    %3186 = vmatpush.bf16.msra.mxu0 %v2870
    %3187 = vmatpush.bf16.msra.mxu0 %v2868
    %3188 = vmatpush.bf16.msra.mxu0 %v2866
    %3189 = vmatpush.bf16.msra.mxu0 %v2864
    %3190 = vmatpush.bf16.msra.mxu0 %v2862
    %3191 = vmatpush.bf16.msra.mxu0 %v2860
    %3192 = vmatpush.bf16.msra.mxu0 %v2858
    %3193 = vmatpush.bf16.msra.mxu0 %v2856
    %3194 = vmatmul.bf16.gmra.mxu0 %v2485
    %v3195 = vpop.f32.mrf.mxu0
    %v3196 = vadd.f32 %v3167, %v3195
    %v3197 = vpop.f32.mrf.mxu0
    %v3198 = vadd.f32 %v3169, %v3197
    %3199 = vmatmul.bf16.gmra.mxu0 %v2490
    %v3200 = vpop.f32.mrf.mxu0
    %v3201 = vadd.f32 %v3172, %v3200
    %v3202 = vpop.f32.mrf.mxu0
    %v3203 = vadd.f32 %v3174, %v3202
    %3204 = vmatmul.bf16.gmra.mxu0 %v2495
    %v3205 = vpop.f32.mrf.mxu0
    %v3206 = vadd.f32 %v3177, %v3205
    %v3207 = vpop.f32.mrf.mxu0
    %v3208 = vadd.f32 %v3179, %v3207
    %3209 = vmatmul.bf16.gmra.mxu0 %v2500
    %v3210 = vpop.f32.mrf.mxu0
    %v3211 = vadd.f32 %v3182, %v3210
    %v3212 = vpop.f32.mrf.mxu0
    %v3213 = vadd.f32 %v3184, %v3212
    %3214 = vdwg.mxu0
    %3215 = vmatpush.bf16.msra.mxu0 %v2886
    %3216 = vmatpush.bf16.msra.mxu0 %v2884
    %3217 = vmatpush.bf16.msra.mxu0 %v2882
    %3218 = vmatpush.bf16.msra.mxu0 %v2880
    %3219 = vmatpush.bf16.msra.mxu0 %v2878
    %3220 = vmatpush.bf16.msra.mxu0 %v2876
    %3221 = vmatpush.bf16.msra.mxu0 %v2874
    %3222 = vmatpush.bf16.msra.mxu0 %v2872
    %3223 = vmatmul.bf16.gmra.mxu0 %v2486
    %v3224 = vpop.f32.mrf.mxu0
    %v3225 = vadd.f32 %v3196, %v3224
    %v3226 = vpop.f32.mrf.mxu0
    %v3227 = vadd.f32 %v3198, %v3226
    %3228 = vmatmul.bf16.gmra.mxu0 %v2491
    %v3229 = vpop.f32.mrf.mxu0
    %v3230 = vadd.f32 %v3201, %v3229
    %v3231 = vpop.f32.mrf.mxu0
    %v3232 = vadd.f32 %v3203, %v3231
    %3233 = vmatmul.bf16.gmra.mxu0 %v2496
    %v3234 = vpop.f32.mrf.mxu0
    %v3235 = vadd.f32 %v3206, %v3234
    %v3236 = vpop.f32.mrf.mxu0
    %v3237 = vadd.f32 %v3208, %v3236
    %3238 = vmatmul.bf16.gmra.mxu0 %v2501
    %v3239 = vpop.f32.mrf.mxu0
    %v3240 = vadd.f32 %v3211, %v3239
    %v3241 = vpop.f32.mrf.mxu0
    %v3242 = vadd.f32 %v3213, %v3241
    %3243 = vdwg.mxu0
    %3244 = vmatpush.bf16.msra.mxu0 %v2902
    %3245 = vmatpush.bf16.msra.mxu0 %v2900
    %3246 = vmatpush.bf16.msra.mxu0 %v2898
    %3247 = vmatpush.bf16.msra.mxu0 %v2896
    %3248 = vmatpush.bf16.msra.mxu0 %v2894
    %3249 = vmatpush.bf16.msra.mxu0 %v2892
    %3250 = vmatpush.bf16.msra.mxu0 %v2890
    %3251 = vmatpush.bf16.msra.mxu0 %v2888
    %3252 = vmatmul.bf16.gmra.mxu0 %v2487
    %v3253 = vpop.f32.mrf.mxu0
    %v3254 = vadd.f32 %v3225, %v3253
    %v3255 = vpop.f32.mrf.mxu0
    %v3256 = vadd.f32 %v3227, %v3255
    %3257 = vmatmul.bf16.gmra.mxu0 %v2492
    %v3258 = vpop.f32.mrf.mxu0
    %v3259 = vadd.f32 %v3230, %v3258
    %v3260 = vpop.f32.mrf.mxu0
    %v3261 = vadd.f32 %v3232, %v3260
    %3262 = vmatmul.bf16.gmra.mxu0 %v2497
    %v3263 = vpop.f32.mrf.mxu0
    %v3264 = vadd.f32 %v3235, %v3263
    %v3265 = vpop.f32.mrf.mxu0
    %v3266 = vadd.f32 %v3237, %v3265
    %3267 = vmatmul.bf16.gmra.mxu0 %v2502
    %v3268 = vpop.f32.mrf.mxu0
    %v3269 = vadd.f32 %v3240, %v3268
    %v3270 = vpop.f32.mrf.mxu0
    %v3271 = vadd.f32 %v3242, %v3270
    %3272 = vdwg.mxu0
    %v3273 = vmax.f32 %v3109, %v3254
    %v3274 = vmax.f32 %v3111, %v3256
    %v3275 = vmax.f32 %v3114, %v3259
    %v3276 = vmax.f32 %v3116, %v3261
    %v3277 = vmax.f32 %v3119, %v3264
    %v3278 = vmax.f32 %v3121, %v3266
    %v3279 = vmax.f32 %v3124, %v3269
    %v3280 = vmax.f32 %v3126, %v3271
    %v3289 = vrot.slane %v3273, 2
    %v3290 = vrot.slane %v3273, 4
    %v3291 = vrot.slane %v3273, 6
    %v3292 = vrot.slane %v3274, 2
    %v3293 = vrot.slane %v3274, 4
    %v3294 = vrot.slane %v3274, 6
    %v3295 = vrot.slane %v3275, 2
    %v3296 = vrot.slane %v3275, 4
    %v3297 = vrot.slane %v3275, 6
    %v3298 = vrot.slane %v3276, 2
    %v3299 = vrot.slane %v3276, 4
    %v3300 = vrot.slane %v3276, 6
    %v3301 = vrot.slane %v3277, 2
    %v3302 = vrot.slane %v3277, 4
    %v3303 = vrot.slane %v3277, 6
    %v3304 = vrot.slane %v3278, 2
    %v3305 = vrot.slane %v3278, 4
    %v3306 = vrot.slane %v3278, 6
    %v3307 = vrot.slane %v3279, 2
    %v3308 = vrot.slane %v3279, 4
    %v3309 = vrot.slane %v3279, 6
    %v3310 = vrot.slane %v3280, 2
    %v3311 = vrot.slane %v3280, 4
    %v3312 = vrot.slane %v3280, 6
    %v3337 = vrot.slane %v3273, 7
    %v3338 = vrot.slane %v3337, 2
    %v3339 = vrot.slane %v3289, 7
    %v3340 = vrot.slane %v3339, 2
    %v3341 = vrot.slane %v3290, 7
    %v3342 = vrot.slane %v3341, 2
    %v3343 = vrot.slane %v3291, 7
    %v3344 = vrot.slane %v3343, 2
    %v3345 = vrot.slane %v3274, 7
    %v3346 = vrot.slane %v3345, 2
    %v3347 = vrot.slane %v3292, 7
    %v3348 = vrot.slane %v3347, 2
    %v3349 = vrot.slane %v3293, 7
    %v3350 = vrot.slane %v3349, 2
    %v3351 = vrot.slane %v3294, 7
    %v3352 = vrot.slane %v3351, 2
    %v3353 = vrot.slane %v3275, 7
    %v3354 = vrot.slane %v3353, 2
    %v3355 = vrot.slane %v3295, 7
    %v3356 = vrot.slane %v3355, 2
    %v3357 = vrot.slane %v3296, 7
    %v3358 = vrot.slane %v3357, 2
    %v3359 = vrot.slane %v3297, 7
    %v3360 = vrot.slane %v3359, 2
    %v3361 = vrot.slane %v3276, 7
    %v3362 = vrot.slane %v3361, 2
    %v3363 = vrot.slane %v3298, 7
    %v3364 = vrot.slane %v3363, 2
    %v3365 = vrot.slane %v3299, 7
    %v3366 = vrot.slane %v3365, 2
    %v3367 = vrot.slane %v3300, 7
    %v3368 = vrot.slane %v3367, 2
    %v3369 = vrot.slane %v3277, 7
    %v3370 = vrot.slane %v3369, 2
    %v3371 = vrot.slane %v3301, 7
    %v3372 = vrot.slane %v3371, 2
    %v3373 = vrot.slane %v3302, 7
    %v3374 = vrot.slane %v3373, 2
    %v3375 = vrot.slane %v3303, 7
    %v3376 = vrot.slane %v3375, 2
    %v3377 = vrot.slane %v3278, 7
    %v3378 = vrot.slane %v3377, 2
    %v3379 = vrot.slane %v3304, 7
    %v3380 = vrot.slane %v3379, 2
    %v3381 = vrot.slane %v3305, 7
    %v3382 = vrot.slane %v3381, 2
    %v3383 = vrot.slane %v3306, 7
    %v3384 = vrot.slane %v3383, 2
    %v3385 = vrot.slane %v3279, 7
    %v3386 = vrot.slane %v3385, 2
    %v3387 = vrot.slane %v3307, 7
    %v3388 = vrot.slane %v3387, 2
    %v3389 = vrot.slane %v3308, 7
    %v3390 = vrot.slane %v3389, 2
    %v3391 = vrot.slane %v3309, 7
    %v3392 = vrot.slane %v3391, 2
    %v3393 = vrot.slane %v3280, 7
    %v3394 = vrot.slane %v3393, 2
    %v3395 = vrot.slane %v3310, 7
    %v3396 = vrot.slane %v3395, 2
    %v3397 = vrot.slane %v3311, 7
    %v3398 = vrot.slane %v3397, 2
    %v3399 = vrot.slane %v3312, 7
    %v3400 = vrot.slane %v3399, 2
    %v3433 = vmax.f32 %v3273, %v3338
    %v3434 = vmax.f32 %v3289, %v3340
    %v3435 = vmax.f32 %v3290, %v3342
    %v3436 = vmax.f32 %v3291, %v3344
    %v3437 = vmax.f32 %v3274, %v3346
    %v3438 = vmax.f32 %v3292, %v3348
    %v3439 = vmax.f32 %v3293, %v3350
    %v3440 = vmax.f32 %v3294, %v3352
    %v3441 = vmax.f32 %v3275, %v3354
    %v3442 = vmax.f32 %v3295, %v3356
    %v3443 = vmax.f32 %v3296, %v3358
    %v3444 = vmax.f32 %v3297, %v3360
    %v3445 = vmax.f32 %v3276, %v3362
    %v3446 = vmax.f32 %v3298, %v3364
    %v3447 = vmax.f32 %v3299, %v3366
    %v3448 = vmax.f32 %v3300, %v3368
    %v3449 = vmax.f32 %v3277, %v3370
    %v3450 = vmax.f32 %v3301, %v3372
    %v3451 = vmax.f32 %v3302, %v3374
    %v3452 = vmax.f32 %v3303, %v3376
    %v3453 = vmax.f32 %v3278, %v3378
    %v3454 = vmax.f32 %v3304, %v3380
    %v3455 = vmax.f32 %v3305, %v3382
    %v3456 = vmax.f32 %v3306, %v3384
    %v3457 = vmax.f32 %v3279, %v3386
    %v3458 = vmax.f32 %v3307, %v3388
    %v3459 = vmax.f32 %v3308, %v3390
    %v3460 = vmax.f32 %v3309, %v3392
    %v3461 = vmax.f32 %v3280, %v3394
    %v3462 = vmax.f32 %v3310, %v3396
    %v3463 = vmax.f32 %v3311, %v3398
    %v3464 = vmax.f32 %v3312, %v3400
    %v3465 = vld [vmem:[%s4] sm:$0x1]
    %v3467 = vperm.slane %v3465, 0
    %v3468 = vrot.slane %v3467, 2
    %v3469 = vrot.slane %v3467, 1
    %v3470 = vrot.slane %v3468, 1
    %v3475 = vadd.f32 %v3433, %v3467
    %v3476 = vadd.f32 %v3434, %v3469
    %v3477 = vadd.f32 %v3435, %v3468
    %v3478 = vadd.f32 %v3436, %v3470
    %v3479 = vadd.f32 %v3437, %v3467
    %v3480 = vadd.f32 %v3438, %v3469
    %v3481 = vadd.f32 %v3439, %v3468
    %v3482 = vadd.f32 %v3440, %v3470
    %v3483 = vadd.f32 %v3441, %v3467
    %v3484 = vadd.f32 %v3442, %v3469
    %v3485 = vadd.f32 %v3443, %v3468
    %v3486 = vadd.f32 %v3444, %v3470
    %v3487 = vadd.f32 %v3445, %v3467
    %v3488 = vadd.f32 %v3446, %v3469
    %v3489 = vadd.f32 %v3447, %v3468
    %v3490 = vadd.f32 %v3448, %v3470
    %v3491 = vadd.f32 %v3449, %v3467
    %v3492 = vadd.f32 %v3450, %v3469
    %v3493 = vadd.f32 %v3451, %v3468
    %v3494 = vadd.f32 %v3452, %v3470
    %v3495 = vadd.f32 %v3453, %v3467
    %v3496 = vadd.f32 %v3454, %v3469
    %v3497 = vadd.f32 %v3455, %v3468
    %v3498 = vadd.f32 %v3456, %v3470
    %v3499 = vadd.f32 %v3457, %v3467
    %v3500 = vadd.f32 %v3458, %v3469
    %v3501 = vadd.f32 %v3459, %v3468
    %v3502 = vadd.f32 %v3460, %v3470
    %v3503 = vadd.f32 %v3461, %v3467
    %v3504 = vadd.f32 %v3462, %v3469
    %v3505 = vadd.f32 %v3463, %v3468
    %v3506 = vadd.f32 %v3464, %v3470
    %v3507 = vmax.f32 %v3475, 0.0
    %v3508 = vmax.f32 %v3476, 0.0
    %v3509 = vmax.f32 %v3477, 0.0
    %v3510 = vmax.f32 %v3478, 0.0
    %v3511 = vmax.f32 %v3479, 0.0
    %v3512 = vmax.f32 %v3480, 0.0
    %v3513 = vmax.f32 %v3481, 0.0
    %v3514 = vmax.f32 %v3482, 0.0
    %v3515 = vmax.f32 %v3483, 0.0
    %v3516 = vmax.f32 %v3484, 0.0
    %v3517 = vmax.f32 %v3485, 0.0
    %v3518 = vmax.f32 %v3486, 0.0
    %v3519 = vmax.f32 %v3487, 0.0
    %v3520 = vmax.f32 %v3488, 0.0
    %v3521 = vmax.f32 %v3489, 0.0
    %v3522 = vmax.f32 %v3490, 0.0
    %v3523 = vmax.f32 %v3491, 0.0
    %v3524 = vmax.f32 %v3492, 0.0
    %v3525 = vmax.f32 %v3493, 0.0
    %v3526 = vmax.f32 %v3494, 0.0
    %v3527 = vmax.f32 %v3495, 0.0
    %v3528 = vmax.f32 %v3496, 0.0
    %v3529 = vmax.f32 %v3497, 0.0
    %v3530 = vmax.f32 %v3498, 0.0
    %v3531 = vmax.f32 %v3499, 0.0
    %v3532 = vmax.f32 %v3500, 0.0
    %v3533 = vmax.f32 %v3501, 0.0
    %v3534 = vmax.f32 %v3502, 0.0
    %v3535 = vmax.f32 %v3503, 0.0
    %v3536 = vmax.f32 %v3504, 0.0
    %v3537 = vmax.f32 %v3505, 0.0
    %v3538 = vmax.f32 %v3506, 0.0
    %v3539 = vpack.c.bf16 %v3507, %v3507
    %v3540 = vpack.c.bf16 %v3511, %v3511
    %v3541 = vpack.c.bf16 %v3515, %v3515
    %v3542 = vpack.c.bf16 %v3519, %v3519
    %v3543 = vpack.c.bf16 %v3523, %v3523
    %v3544 = vpack.c.bf16 %v3527, %v3527
    %v3545 = vpack.c.bf16 %v3531, %v3531
    %v3546 = vpack.c.bf16 %v3535, %v3535
    %v3547 = vld [vmem:[%s5] sm:$0xf]
    %v3548 = vld [vmem:[%s5 + $0x4] sm:$0xf]
    %v3549 = vld [vmem:[%s5 + $0x8] sm:$0xf]
    %v3550 = vld [vmem:[%s5 + $0xc] sm:$0xf]
    %v3551 = vld [vmem:[%s5 + $0x10] sm:$0xf]
    %v3552 = vld [vmem:[%s5 + $0x14] sm:$0xf]
    %v3553 = vld [vmem:[%s5 + $0x18] sm:$0xf]
    %v3554 = vld [vmem:[%s5 + $0x1c] sm:$0xf]
    %v3555 = vld [vmem:[%s5 + $0x20] sm:$0xf]
    %v3556 = vld [vmem:[%s5 + $0x24] sm:$0xf]
    %v3557 = vld [vmem:[%s5 + $0x28] sm:$0xf]
    %v3558 = vld [vmem:[%s5 + $0x2c] sm:$0xf]
    %v3559 = vld [vmem:[%s5 + $0x30] sm:$0xf]
    %v3560 = vld [vmem:[%s5 + $0x34] sm:$0xf]
    %v3561 = vld [vmem:[%s5 + $0x38] sm:$0xf]
    %v3562 = vld [vmem:[%s5 + $0x3c] sm:$0xf]
    %v3563 = vpack.c.bf16 %v3508, %v3508
    %v3564 = vpack.c.bf16 %v3512, %v3512
    %v3565 = vpack.c.bf16 %v3516, %v3516
    %v3566 = vpack.c.bf16 %v3520, %v3520
    %v3567 = vpack.c.bf16 %v3524, %v3524
    %v3568 = vpack.c.bf16 %v3528, %v3528
    %v3569 = vpack.c.bf16 %v3532, %v3532
    %v3570 = vpack.c.bf16 %v3536, %v3536
    %s3571 = scalar_lea.vmem %s5, 64
    %v3572 = vld [vmem:[%s3571] sm:$0xf]
    %v3573 = vld [vmem:[%s3571 + $0x4] sm:$0xf]
    %v3574 = vld [vmem:[%s3571 + $0x8] sm:$0xf]
    %v3575 = vld [vmem:[%s3571 + $0xc] sm:$0xf]
    %v3576 = vld [vmem:[%s3571 + $0x10] sm:$0xf]
    %v3577 = vld [vmem:[%s3571 + $0x14] sm:$0xf]
    %v3578 = vld [vmem:[%s3571 + $0x18] sm:$0xf]
    %v3579 = vld [vmem:[%s3571 + $0x1c] sm:$0xf]
    %v3580 = vld [vmem:[%s3571 + $0x20] sm:$0xf]
    %v3581 = vld [vmem:[%s3571 + $0x24] sm:$0xf]
    %v3582 = vld [vmem:[%s3571 + $0x28] sm:$0xf]
    %v3583 = vld [vmem:[%s3571 + $0x2c] sm:$0xf]
    %v3584 = vld [vmem:[%s3571 + $0x30] sm:$0xf]
    %v3585 = vld [vmem:[%s3571 + $0x34] sm:$0xf]
    %v3586 = vld [vmem:[%s3571 + $0x38] sm:$0xf]
    %v3587 = vld [vmem:[%s3571 + $0x3c] sm:$0xf]
    %v3596 = vunpack.c.l.b16 %v3563
    %v3597 = vunpack.c.l.b16 %v3564
    %v3598 = vunpack.c.l.b16 %v3565
    %v3599 = vunpack.c.l.b16 %v3566
    %v3600 = vunpack.c.l.b16 %v3567
    %v3601 = vunpack.c.l.b16 %v3568
    %v3602 = vunpack.c.l.b16 %v3569
    %v3603 = vunpack.c.l.b16 %v3570
    %v3604 = vrot.slane %v3597, 7
    %v3605 = vsel %vm2092, %v3604, %v3596
    %v3606 = vrot.slane %v3598, 6
    %v3607 = vsel %vm2094, %v3606, %v3605
    %v3608 = vrot.slane %v3599, 5
    %v3609 = vsel %vm2096, %v3608, %v3607
    %v3610 = vrot.slane %v3600, 4
    %v3611 = vsel %vm2098, %v3610, %v3609
    %v3612 = vrot.slane %v3601, 3
    %v3613 = vsel %vm2100, %v3612, %v3611
    %v3614 = vrot.slane %v3602, 2
    %v3615 = vsel %vm2102, %v3614, %v3613
    %v3616 = vrot.slane %v3603, 1
    %v3617 = vsel %vm2104, %v3616, %v3615
    %v3618 = vpack.c.b16 %v3617, %v3617
    %v3636 = vunpack.c.l.b16 %v3572
    %v3637 = vunpack.c.l.b16 %v3573
    %v3638 = vunpack.c.l.b16 %v3574
    %v3639 = vunpack.c.l.b16 %v3575
    %v3640 = vunpack.c.l.b16 %v3576
    %v3641 = vunpack.c.l.b16 %v3577
    %v3642 = vunpack.c.l.b16 %v3578
    %v3643 = vunpack.c.l.b16 %v3579
    %v3644 = vunpack.c.l.b16 %v3580
    %v3645 = vunpack.c.l.b16 %v3581
    %v3646 = vunpack.c.l.b16 %v3582
    %v3647 = vunpack.c.l.b16 %v3583
    %v3648 = vunpack.c.l.b16 %v3584
    %v3649 = vunpack.c.l.b16 %v3585
    %v3650 = vunpack.c.l.b16 %v3586
    %v3651 = vunpack.c.l.b16 %v3587
    %v3652 = vpack.c.b16 %v3637, %v3636
    %v3653 = vpack.c.b16 %v3639, %v3638
    %v3654 = vpack.c.b16 %v3641, %v3640
    %v3655 = vpack.c.b16 %v3643, %v3642
    %v3656 = vpack.c.b16 %v3645, %v3644
    %v3657 = vpack.c.b16 %v3647, %v3646
    %v3658 = vpack.c.b16 %v3649, %v3648
    %v3659 = vpack.c.b16 %v3651, %v3650
    %3668 = vmatpush.bf16.msra.mxu0 %v3659
    %3669 = vmatpush.bf16.msra.mxu0 %v3658
    %3670 = vmatpush.bf16.msra.mxu0 %v3657
    %3671 = vmatpush.bf16.msra.mxu0 %v3656
    %3672 = vmatpush.bf16.msra.mxu0 %v3655
    %3673 = vmatpush.bf16.msra.mxu0 %v3654
    %3674 = vmatpush.bf16.msra.mxu0 %v3653
    %3675 = vmatpush.bf16.msra.mxu0 %v3652
    %3676 = vmatmul.bf16.gmra.mxu0 %v3618
    %v3677 = vpop.f32.mrf.mxu0
    %v3678 = vadd.f32 0.0, %v3677
    %v3679 = vpop.f32.mrf.mxu0
    %3680 = vdwg.mxu0
    %v3689 = vunpack.c.l.b16 %v3539
    %v3690 = vunpack.c.l.b16 %v3540
    %v3691 = vunpack.c.l.b16 %v3541
    %v3692 = vunpack.c.l.b16 %v3542
    %v3693 = vunpack.c.l.b16 %v3543
    %v3694 = vunpack.c.l.b16 %v3544
    %v3695 = vunpack.c.l.b16 %v3545
    %v3696 = vunpack.c.l.b16 %v3546
    %v3697 = vrot.slane %v3690, 7
    %v3698 = vsel %vm2092, %v3697, %v3689
    %v3699 = vrot.slane %v3691, 6
    %v3700 = vsel %vm2094, %v3699, %v3698
    %v3701 = vrot.slane %v3692, 5
    %v3702 = vsel %vm2096, %v3701, %v3700
    %v3703 = vrot.slane %v3693, 4
    %v3704 = vsel %vm2098, %v3703, %v3702
    %v3705 = vrot.slane %v3694, 3
    %v3706 = vsel %vm2100, %v3705, %v3704
    %v3707 = vrot.slane %v3695, 2
    %v3708 = vsel %vm2102, %v3707, %v3706
    %v3709 = vrot.slane %v3696, 1
    %v3710 = vsel %vm2104, %v3709, %v3708
    %v3711 = vpack.c.b16 %v3710, %v3710
    %v3729 = vunpack.c.l.b16 %v3547
    %v3730 = vunpack.c.l.b16 %v3548
    %v3731 = vunpack.c.l.b16 %v3549
    %v3732 = vunpack.c.l.b16 %v3550
    %v3733 = vunpack.c.l.b16 %v3551
    %v3734 = vunpack.c.l.b16 %v3552
    %v3735 = vunpack.c.l.b16 %v3553
    %v3736 = vunpack.c.l.b16 %v3554
    %v3737 = vunpack.c.l.b16 %v3555
    %v3738 = vunpack.c.l.b16 %v3556
    %v3739 = vunpack.c.l.b16 %v3557
    %v3740 = vunpack.c.l.b16 %v3558
    %v3741 = vunpack.c.l.b16 %v3559
    %v3742 = vunpack.c.l.b16 %v3560
    %v3743 = vunpack.c.l.b16 %v3561
    %v3744 = vunpack.c.l.b16 %v3562
    %v3745 = vpack.c.b16 %v3730, %v3729
    %v3746 = vpack.c.b16 %v3732, %v3731
    %v3747 = vpack.c.b16 %v3734, %v3733
    %v3748 = vpack.c.b16 %v3736, %v3735
    %v3749 = vpack.c.b16 %v3738, %v3737
    %v3750 = vpack.c.b16 %v3740, %v3739
    %v3751 = vpack.c.b16 %v3742, %v3741
    %v3752 = vpack.c.b16 %v3744, %v3743
    %3761 = vmatpush.bf16.msra.mxu0 %v3752
    %3762 = vmatpush.bf16.msra.mxu0 %v3751
    %3763 = vmatpush.bf16.msra.mxu0 %v3750
    %3764 = vmatpush.bf16.msra.mxu0 %v3749
    %3765 = vmatpush.bf16.msra.mxu0 %v3748
    %3766 = vmatpush.bf16.msra.mxu0 %v3747
    %3767 = vmatpush.bf16.msra.mxu0 %v3746
    %3768 = vmatpush.bf16.msra.mxu0 %v3745
    %3769 = vmatmul.bf16.gmra.mxu0 %v3711
    %v3770 = vpop.f32.mrf.mxu0
    %v3771 = vadd.f32 %v3678, %v3770
    %v3772 = vpop.f32.mrf.mxu0
    %3773 = vdwg.mxu0
    %v3774 = vpack.c.bf16 %v3509, %v3509
    %v3775 = vpack.c.bf16 %v3513, %v3513
    %v3776 = vpack.c.bf16 %v3517, %v3517
    %v3777 = vpack.c.bf16 %v3521, %v3521
    %v3778 = vpack.c.bf16 %v3525, %v3525
    %v3779 = vpack.c.bf16 %v3529, %v3529
    %v3780 = vpack.c.bf16 %v3533, %v3533
    %v3781 = vpack.c.bf16 %v3537, %v3537
    %s3782 = scalar_lea.vmem %s5, 128
    %v3783 = vld [vmem:[%s3782] sm:$0xf]
    %v3784 = vld [vmem:[%s3782 + $0x4] sm:$0xf]
    %v3785 = vld [vmem:[%s3782 + $0x8] sm:$0xf]
    %v3786 = vld [vmem:[%s3782 + $0xc] sm:$0xf]
    %v3787 = vld [vmem:[%s3782 + $0x10] sm:$0xf]
    %v3788 = vld [vmem:[%s3782 + $0x14] sm:$0xf]
    %v3789 = vld [vmem:[%s3782 + $0x18] sm:$0xf]
    %v3790 = vld [vmem:[%s3782 + $0x1c] sm:$0xf]
    %v3791 = vld [vmem:[%s3782 + $0x20] sm:$0xf]
    %v3792 = vld [vmem:[%s3782 + $0x24] sm:$0xf]
    %v3793 = vld [vmem:[%s3782 + $0x28] sm:$0xf]
    %v3794 = vld [vmem:[%s3782 + $0x2c] sm:$0xf]
    %v3795 = vld [vmem:[%s3782 + $0x30] sm:$0xf]
    %v3796 = vld [vmem:[%s3782 + $0x34] sm:$0xf]
    %v3797 = vld [vmem:[%s3782 + $0x38] sm:$0xf]
    %v3798 = vld [vmem:[%s3782 + $0x3c] sm:$0xf]
    %v3807 = vunpack.c.l.b16 %v3774
    %v3808 = vunpack.c.l.b16 %v3775
    %v3809 = vunpack.c.l.b16 %v3776
    %v3810 = vunpack.c.l.b16 %v3777
    %v3811 = vunpack.c.l.b16 %v3778
    %v3812 = vunpack.c.l.b16 %v3779
    %v3813 = vunpack.c.l.b16 %v3780
    %v3814 = vunpack.c.l.b16 %v3781
    %v3815 = vrot.slane %v3808, 7
    %v3816 = vsel %vm2092, %v3815, %v3807
    %v3817 = vrot.slane %v3809, 6
    %v3818 = vsel %vm2094, %v3817, %v3816
    %v3819 = vrot.slane %v3810, 5
    %v3820 = vsel %vm2096, %v3819, %v3818
    %v3821 = vrot.slane %v3811, 4
    %v3822 = vsel %vm2098, %v3821, %v3820
    %v3823 = vrot.slane %v3812, 3
    %v3824 = vsel %vm2100, %v3823, %v3822
    %v3825 = vrot.slane %v3813, 2
    %v3826 = vsel %vm2102, %v3825, %v3824
    %v3827 = vrot.slane %v3814, 1
    %v3828 = vsel %vm2104, %v3827, %v3826
    %v3829 = vpack.c.b16 %v3828, %v3828
    %v3847 = vunpack.c.l.b16 %v3783
    %v3848 = vunpack.c.l.b16 %v3784
    %v3849 = vunpack.c.l.b16 %v3785
    %v3850 = vunpack.c.l.b16 %v3786
    %v3851 = vunpack.c.l.b16 %v3787
    %v3852 = vunpack.c.l.b16 %v3788
    %v3853 = vunpack.c.l.b16 %v3789
    %v3854 = vunpack.c.l.b16 %v3790
    %v3855 = vunpack.c.l.b16 %v3791
    %v3856 = vunpack.c.l.b16 %v3792
    %v3857 = vunpack.c.l.b16 %v3793
    %v3858 = vunpack.c.l.b16 %v3794
    %v3859 = vunpack.c.l.b16 %v3795
    %v3860 = vunpack.c.l.b16 %v3796
    %v3861 = vunpack.c.l.b16 %v3797
    %v3862 = vunpack.c.l.b16 %v3798
    %v3863 = vpack.c.b16 %v3848, %v3847
    %v3864 = vpack.c.b16 %v3850, %v3849
    %v3865 = vpack.c.b16 %v3852, %v3851
    %v3866 = vpack.c.b16 %v3854, %v3853
    %v3867 = vpack.c.b16 %v3856, %v3855
    %v3868 = vpack.c.b16 %v3858, %v3857
    %v3869 = vpack.c.b16 %v3860, %v3859
    %v3870 = vpack.c.b16 %v3862, %v3861
    %3879 = vmatpush.bf16.msra.mxu0 %v3870
    %3880 = vmatpush.bf16.msra.mxu0 %v3869
    %3881 = vmatpush.bf16.msra.mxu0 %v3868
    %3882 = vmatpush.bf16.msra.mxu0 %v3867
    %3883 = vmatpush.bf16.msra.mxu0 %v3866
    %3884 = vmatpush.bf16.msra.mxu0 %v3865
    %3885 = vmatpush.bf16.msra.mxu0 %v3864
    %3886 = vmatpush.bf16.msra.mxu0 %v3863
    %3887 = vmatmul.bf16.gmra.mxu0 %v3829
    %v3888 = vpop.f32.mrf.mxu0
    %v3889 = vadd.f32 0.0, %v3888
    %v3890 = vpop.f32.mrf.mxu0
    %3891 = vdwg.mxu0
    %v3892 = vadd.f32 %v3771, %v3889
    %v3893 = vpack.c.bf16 %v3510, %v3510
    %v3894 = vpack.c.bf16 %v3514, %v3514
    %v3895 = vpack.c.bf16 %v3518, %v3518
    %v3896 = vpack.c.bf16 %v3522, %v3522
    %v3897 = vpack.c.bf16 %v3526, %v3526
    %v3898 = vpack.c.bf16 %v3530, %v3530
    %v3899 = vpack.c.bf16 %v3534, %v3534
    %v3900 = vpack.c.bf16 %v3538, %v3538
    %s3901 = scalar_lea.vmem %s5, 192
    %v3902 = vld [vmem:[%s3901] sm:$0xf]
    %v3903 = vld [vmem:[%s3901 + $0x4] sm:$0xf]
    %v3904 = vld [vmem:[%s3901 + $0x8] sm:$0xf]
    %v3905 = vld [vmem:[%s3901 + $0xc] sm:$0xf]
    %v3906 = vld [vmem:[%s3901 + $0x10] sm:$0xf]
    %v3907 = vld [vmem:[%s3901 + $0x14] sm:$0xf]
    %v3908 = vld [vmem:[%s3901 + $0x18] sm:$0xf]
    %v3909 = vld [vmem:[%s3901 + $0x1c] sm:$0xf]
    %v3910 = vld [vmem:[%s3901 + $0x20] sm:$0xf]
    %v3911 = vld [vmem:[%s3901 + $0x24] sm:$0xf]
    %v3912 = vld [vmem:[%s3901 + $0x28] sm:$0xf]
    %v3913 = vld [vmem:[%s3901 + $0x2c] sm:$0xf]
    %v3914 = vld [vmem:[%s3901 + $0x30] sm:$0xf]
    %v3915 = vld [vmem:[%s3901 + $0x34] sm:$0xf]
    %v3916 = vld [vmem:[%s3901 + $0x38] sm:$0xf]
    %v3917 = vld [vmem:[%s3901 + $0x3c] sm:$0xf]
    %v3926 = vunpack.c.l.b16 %v3893
    %v3927 = vunpack.c.l.b16 %v3894
    %v3928 = vunpack.c.l.b16 %v3895
    %v3929 = vunpack.c.l.b16 %v3896
    %v3930 = vunpack.c.l.b16 %v3897
    %v3931 = vunpack.c.l.b16 %v3898
    %v3932 = vunpack.c.l.b16 %v3899
    %v3933 = vunpack.c.l.b16 %v3900
    %v3934 = vrot.slane %v3927, 7
    %v3935 = vsel %vm2092, %v3934, %v3926
    %v3936 = vrot.slane %v3928, 6
    %v3937 = vsel %vm2094, %v3936, %v3935
    %v3938 = vrot.slane %v3929, 5
    %v3939 = vsel %vm2096, %v3938, %v3937
    %v3940 = vrot.slane %v3930, 4
    %v3941 = vsel %vm2098, %v3940, %v3939
    %v3942 = vrot.slane %v3931, 3
    %v3943 = vsel %vm2100, %v3942, %v3941
    %v3944 = vrot.slane %v3932, 2
    %v3945 = vsel %vm2102, %v3944, %v3943
    %v3946 = vrot.slane %v3933, 1
    %v3947 = vsel %vm2104, %v3946, %v3945
    %v3948 = vpack.c.b16 %v3947, %v3947
    %v3966 = vunpack.c.l.b16 %v3902
    %v3967 = vunpack.c.l.b16 %v3903
    %v3968 = vunpack.c.l.b16 %v3904
    %v3969 = vunpack.c.l.b16 %v3905
    %v3970 = vunpack.c.l.b16 %v3906
    %v3971 = vunpack.c.l.b16 %v3907
    %v3972 = vunpack.c.l.b16 %v3908
    %v3973 = vunpack.c.l.b16 %v3909
    %v3974 = vunpack.c.l.b16 %v3910
    %v3975 = vunpack.c.l.b16 %v3911
    %v3976 = vunpack.c.l.b16 %v3912
    %v3977 = vunpack.c.l.b16 %v3913
    %v3978 = vunpack.c.l.b16 %v3914
    %v3979 = vunpack.c.l.b16 %v3915
    %v3980 = vunpack.c.l.b16 %v3916
    %v3981 = vunpack.c.l.b16 %v3917
    %v3982 = vpack.c.b16 %v3967, %v3966
    %v3983 = vpack.c.b16 %v3969, %v3968
    %v3984 = vpack.c.b16 %v3971, %v3970
    %v3985 = vpack.c.b16 %v3973, %v3972
    %v3986 = vpack.c.b16 %v3975, %v3974
    %v3987 = vpack.c.b16 %v3977, %v3976
    %v3988 = vpack.c.b16 %v3979, %v3978
    %v3989 = vpack.c.b16 %v3981, %v3980
    %3998 = vmatpush.bf16.msra.mxu0 %v3989
    %3999 = vmatpush.bf16.msra.mxu0 %v3988
    %4000 = vmatpush.bf16.msra.mxu0 %v3987
    %4001 = vmatpush.bf16.msra.mxu0 %v3986
    %4002 = vmatpush.bf16.msra.mxu0 %v3985
    %4003 = vmatpush.bf16.msra.mxu0 %v3984
    %4004 = vmatpush.bf16.msra.mxu0 %v3983
    %4005 = vmatpush.bf16.msra.mxu0 %v3982
    %4006 = vmatmul.bf16.gmra.mxu0 %v3948
    %v4007 = vpop.f32.mrf.mxu0
    %v4008 = vadd.f32 0.0, %v4007
    %v4009 = vpop.f32.mrf.mxu0
    %4010 = vdwg.mxu0
    %v4011 = vadd.f32 %v3892, %v4008
    %v4012 = vld [vmem:[%s6] sm:$0x1]
    %v4014 = vperm.slane %v4012, 0
    %v4016 = vadd.f32 %v4011, %v4014
    %v4017 = vmax.f32 %v4016, 0.0
    %v4018 = vpack.c.bf16 %v4017, %v4017
    %v4019 = vld [vmem:[%s7] sm:$0xf]
    %v4020 = vld [vmem:[%s7 + $0x4] sm:$0xf]
    %v4021 = vld [vmem:[%s7 + $0x8] sm:$0xf]
    %v4022 = vld [vmem:[%s7 + $0xc] sm:$0xf]
    %v4023 = vld [vmem:[%s7 + $0x10] sm:$0xf]
    %v4024 = vld [vmem:[%s7 + $0x14] sm:$0xf]
    %v4025 = vld [vmem:[%s7 + $0x18] sm:$0xf]
    %v4026 = vld [vmem:[%s7 + $0x1c] sm:$0xf]
    %v4027 = vld [vmem:[%s7 + $0x20] sm:$0xf]
    %v4028 = vld [vmem:[%s7 + $0x24] sm:$0xf]
    %v4029 = vld [vmem:[%s7 + $0x28] sm:$0xf]
    %v4030 = vld [vmem:[%s7 + $0x2c] sm:$0xf]
    %v4031 = vld [vmem:[%s7 + $0x30] sm:$0xf]
    %v4032 = vld [vmem:[%s7 + $0x34] sm:$0xf]
    %v4033 = vld [vmem:[%s7 + $0x38] sm:$0xf]
    %v4034 = vld [vmem:[%s7 + $0x3c] sm:$0xf]
    %v4035 = vld [vmem:[%s8] sm:$0x1]
    %v4037 = vperm.slane %v4035, 0
    %v4055 = vunpack.c.l.b16 %v4019
    %v4056 = vunpack.c.l.b16 %v4020
    %v4057 = vunpack.c.l.b16 %v4021
    %v4058 = vunpack.c.l.b16 %v4022
    %v4059 = vunpack.c.l.b16 %v4023
    %v4060 = vunpack.c.l.b16 %v4024
    %v4061 = vunpack.c.l.b16 %v4025
    %v4062 = vunpack.c.l.b16 %v4026
    %v4063 = vunpack.c.l.b16 %v4027
    %v4064 = vunpack.c.l.b16 %v4028
    %v4065 = vunpack.c.l.b16 %v4029
    %v4066 = vunpack.c.l.b16 %v4030
    %v4067 = vunpack.c.l.b16 %v4031
    %v4068 = vunpack.c.l.b16 %v4032
    %v4069 = vunpack.c.l.b16 %v4033
    %v4070 = vunpack.c.l.b16 %v4034
    %v4071 = vpack.c.b16 %v4056, %v4055
    %v4072 = vpack.c.b16 %v4058, %v4057
    %v4073 = vpack.c.b16 %v4060, %v4059
    %v4074 = vpack.c.b16 %v4062, %v4061
    %v4075 = vpack.c.b16 %v4064, %v4063
    %v4076 = vpack.c.b16 %v4066, %v4065
    %v4077 = vpack.c.b16 %v4068, %v4067
    %v4078 = vpack.c.b16 %v4070, %v4069
    %4087 = vmatpush.bf16.msra.mxu0 %v4078
    %4088 = vmatpush.bf16.msra.mxu0 %v4077
    %4089 = vmatpush.bf16.msra.mxu0 %v4076
    %4090 = vmatpush.bf16.msra.mxu0 %v4075
    %4091 = vmatpush.bf16.msra.mxu0 %v4074
    %4092 = vmatpush.bf16.msra.mxu0 %v4073
    %4093 = vmatpush.bf16.msra.mxu0 %v4072
    %4094 = vmatpush.bf16.msra.mxu0 %v4071
    %4095 = vmatmul.bf16.gmra.mxu0 %v4018
    %v4096 = vpop.f32.mrf.mxu0
    %v4097 = vadd.f32 %v4037, %v4096
    %v4098 = vpop.f32.mrf.mxu0
    %4099 = vdwg.mxu0
    %v4100 = vlaneseq
    %v4101 = vand.u32 %v4100, 127
    %vm4102 = vcmp.lt.s32.totalorder %v4101, 10
    %v4103 = vsel %vm4102, %v4097, -inf
    %4104 = vmax.xlane.f32.xlu0 %v4103
    %v4105 = vpop.xlane.xlu0 %4104
    %v4106 = vsub.f32 %v4103, %v4105
    %v4107 = vmul.f32 %v4106, 1.442695
    %v4108 = vpow.pop %v4107
    %4109 = vadd.xlane.f32.xlu0 %v4108
    %v4110 = vpop.xlane.xlu0 %4109
    %v4111 = vlog2.pop %v4110
    %v4112 = vmul.f32 %v4111, 0.6931472
    %v4113 = vadd.f32 %v4112, %v4105
    %v4114 = vsub.f32 %v4097, %v4113
    %4115 = vst [vmem:[%s9] sm:$0xff] %v4114
    // Predicated region
    $region42: #{net_forward.1} parent=1 // pred_check
      _
    $region43: #{net_forward.1} parent=1 // pred_check_branch
      %4117 = sbr.rel (0) target = $region45
    $region44: #{net_forward.1} parent=1 // pred_region
      _
    $region45: #{net_forward.1} parent=1 // pred_fallthru
      _
    // Predicated region
    $region46: #{net_forward.1} parent=1 // pred_check
      _
    $region47: #{net_forward.1} parent=1 // pred_check_branch
      %4119 = sbr.rel (0) target = $region49
    $region48: #{net_forward.1} parent=1 // pred_region
      _
    $region49: #{net_forward.1} parent=1 // pred_fallthru
      _
    %4120 = vsyncpa [#allocation3], 1

</llo_original>
